<compile_context>
chip_gen: v7x
topology: tpu7x:2x2x1
jax: 0.10.0
libtpu: 0.0.40
codegen_flags: <defaults>
</compile_context>

<pallas_src>
import functools

import jax
import jax.numpy as jnp
from jax.experimental import pallas as pl
from jax.experimental.pallas import tpu as pltpu


_LANE = 128
_MIN_TB = 1024                  # (tb // 128) must be a multiple of 8 for the output tile
_VMEM_SOFT_BUDGET = 48 << 20    # stay well under v7x's 64 MiB physical VMEM


# ----------------------------------------------------------------------------
# Pallas kernel: full MLP on one (tb, feat) batch tile, weights VMEM-resident.
# ----------------------------------------------------------------------------
def _mlp_kernel(nlayers, acs_on_vpu, obs_ref, acs_ref, w0_obs_ref, w0_acs_ref, *rest):
    # rest: hidden weights for layers 1..nlayers-1 (bf16), packed hidden biases
    #       (nlayers, 1, nunits) f32, w_out (1, nunits) f32, b_out (1, 1) SMEM, out_ref.
    hidden_w_refs = rest[: nlayers - 1]
    b_hidden_ref, w_out_ref, b_out_ref, out_ref = rest[nlayers - 1:]

    # Layer 0: split GEMM over [obs | acs]  ==  Linear(cat([obs, acs], -1)).
    # Inputs arrive in caller dtype; cast to bf16 right before the MXU (f32 accumulate).
    acc = jnp.dot(obs_ref[...].astype(jnp.bfloat16), w0_obs_ref[...],
                  preferred_element_type=jnp.float32)
    if acs_on_vpu:
        # Tiny K (= acs_dim): per-column VPU FMAs instead of a second, mostly-empty
        # MXU push+pop. Stays in f32 (better numerics, VPU-only).
        acs = acs_ref[...].astype(jnp.float32)            # (tb, acs_dim)
        w0a = w0_acs_ref[...].astype(jnp.float32)         # (acs_dim, nunits)
        for d in range(acs.shape[1]):
            acc = acc + acs[:, d:d + 1] * w0a[d:d + 1, :]
    else:
        acc = acc + jnp.dot(acs_ref[...].astype(jnp.bfloat16), w0_acs_ref[...],
                            preferred_element_type=jnp.float32)
    h = jnp.tanh(acc + b_hidden_ref[0])                   # f32 bias + tanh (EUP)

    # Remaining hidden layers: bf16 into the MXU, f32 accumulate / bias / tanh.
    for layer in range(1, nlayers):
        acc = jnp.dot(h.astype(jnp.bfloat16), hidden_w_refs[layer - 1][...],
                      preferred_element_type=jnp.float32)
        h = jnp.tanh(acc + b_hidden_ref[layer])

    # Output Linear(nunits -> 1), identity out-activation: VPU multiply + lane
    # reduction (no N=1 MXU pass), stored as a tile-aligned lane-dense (tb//128, 128)
    # block (unmasked stores).
    y = jnp.sum(h * w_out_ref[...], axis=-1) + b_out_ref[0, 0]       # (tb,)
    out_ref[...] = y.reshape(out_ref.shape).astype(out_ref.dtype)


# ----------------------------------------------------------------------------
# Wrapper: flatten (no copy/cast/pad), size the batch tile, launch gridded kernel.
# ----------------------------------------------------------------------------
def cont_obs_cont_acs_to_rews_forward(obs, acs, kparams, *, block_rows=2048):
    nlayers = kparams["nlayers"]
    nunits = kparams["nunits"]
    w0_obs, w0_acs = kparams["w0_obs"], kparams["w0_acs"]
    hidden_ws = kparams["hidden_ws"]
    b_hidden, w_out, b_out = kparams["b_hidden"], kparams["w_out"], kparams["b_out"]

    B = obs.shape[0]
    obs_flat = obs.reshape(B, -1)          # torch.flatten(obs, start_dim=1) — view only
    acs_flat = acs.reshape(B, -1)          # continuous action vector — view only
    obs_dim = obs_flat.shape[1]
    acs_dim = acs_flat.shape[1]
    assert w0_obs.shape[0] == obs_dim and w0_acs.shape[0] == acs_dim

    if block_rows % _MIN_TB != 0:
        raise ValueError("block_rows must be a multiple of 1024")
    tb = int(block_rows)

    # --- VMEM sizing (v7x: 64 MiB physical, 32 MiB default scoped) -------------
    in_item = obs_flat.dtype.itemsize
    def vmem_bytes(t):
        act_in = 2 * t * (obs_dim + acs_dim) * in_item               # double-buffered inputs
        act_out = 2 * t * 4                                          # double-buffered output
        work = 6 * t * nunits * 4                                    # acc / h / temps (generous)
        wts = 2 * ((obs_dim + acs_dim) * nunits
                   + max(nlayers - 1, 0) * nunits * nunits) * 2      # bf16 weights
        bia = 2 * ((nlayers + 1) * nunits + 1) * 4
        return act_in + act_out + work + wts + bia

    while tb > _MIN_TB and vmem_bytes(tb) > _VMEM_SOFT_BUDGET:
        tb = max(_MIN_TB, (tb // 2) // _MIN_TB * _MIN_TB)

    # Don't make the tile (much) bigger than the batch itself.
    tb = min(tb, max(_MIN_TB, pl.cdiv(B, _MIN_TB) * _MIN_TB))

    # v7x megacore: keep >= 2 grid steps when the batch allows, so the "parallel"
    # batch axis can shard across the two TensorCores.
    if B > _MIN_TB and pl.cdiv(B, tb) < 2:
        tb = max(_MIN_TB, pl.cdiv(B, 2 * _MIN_TB) * _MIN_TB)

    num_tiles = pl.cdiv(B, tb)
    rows = tb // _LANE
    b_pad = num_tiles * tb

    need = vmem_bytes(tb)
    vmem_limit = min(int(need * 1.5), 60 << 20) if need > (24 << 20) else None

    acs_on_vpu = acs_dim <= 8
    kernel = functools.partial(_mlp_kernel, nlayers, acs_on_vpu)

    in_specs = [
        pl.BlockSpec((tb, obs_dim), lambda i: (i, 0)),            # obs tile (ragged last block OK)
        pl.BlockSpec((tb, acs_dim), lambda i: (i, 0)),            # acs tile
        pl.BlockSpec((obs_dim, nunits), lambda i: (0, 0)),        # W0_obs (VMEM-resident)
        pl.BlockSpec((acs_dim, nunits), lambda i: (0, 0)),        # W0_acs (VMEM-resident)
    ]
    in_specs += [pl.BlockSpec((nunits, nunits), lambda i: (0, 0)) for _ in hidden_ws]
    in_specs += [
        pl.BlockSpec((nlayers, 1, nunits), lambda i: (0, 0, 0)),  # packed hidden biases
        pl.BlockSpec((1, nunits), lambda i: (0, 0)),              # output row weight
        pl.BlockSpec(memory_space=pltpu.MemorySpace.SMEM),        # b_out scalar
    ]

    out = pl.pallas_call(
        kernel,
        out_shape=jax.ShapeDtypeStruct((num_tiles * rows, _LANE), jnp.float32),
        grid_spec=pltpu.PrefetchScalarGridSpec(
            num_scalar_prefetch=0,
            grid=(num_tiles,),
            in_specs=in_specs,
            out_specs=pl.BlockSpec((rows, _LANE), lambda i: (i, 0)),  # tile-aligned, lane-dense
        ),
        compiler_params=pltpu.CompilerParams(
            dimension_semantics=("parallel",),
            vmem_limit_bytes=vmem_limit,
        ),
    )(obs_flat, acs_flat, w0_obs, w0_acs, *hidden_ws, b_hidden, w_out, b_out)

    # Row-major (tile, sublane, lane) flatten == batch order; drop the padded rows.
    return out.reshape(b_pad)[:B].reshape(B, 1)


# ----------------------------------------------------------------------------
# Parameter construction (PyTorch nn.Linear default init, f32 master copies).
# ----------------------------------------------------------------------------
def init_params(key, input_obs_dim, acs_dim, nlayers, nunits):
    keys = jax.random.split(key, 2 * (nlayers + 1))
    in_size = input_obs_dim + acs_dim
    ws, bs = [], []
    k = 0
    for _ in range(nlayers):
        bound = 1.0 / float(in_size) ** 0.5
        ws.append(jax.random.uniform(keys[k], (in_size, nunits), jnp.float32, -bound, bound))
        bs.append(jax.random.uniform(keys[k + 1], (1, nunits), jnp.float32, -bound, bound))
        in_size = nunits
        k += 2
    bound = 1.0 / float(nunits) ** 0.5
    w_out = jax.random.uniform(keys[k], (1, nunits), jnp.float32, -bound, bound)
    b_out = jax.random.uniform(keys[k + 1], (1, 1), jnp.float32, -bound, bound)
    return {"ws": ws, "bs": bs, "w_out": w_out, "b_out": b_out,
            "nlayers": nlayers, "nunits": nunits}


def prepare_params(params, input_obs_dim):
    """One-time kernel prep (hoisted out of the forward): split layer-0 weight so no
    concat is ever built, pre-cast matmul weights to bf16, pack hidden biases."""
    w0 = params["ws"][0]
    return {
        "w0_obs": w0[:input_obs_dim].astype(jnp.bfloat16),           # (obs_dim, nunits)
        "w0_acs": w0[input_obs_dim:].astype(jnp.bfloat16),           # (acs_dim, nunits)
        "hidden_ws": tuple(w.astype(jnp.bfloat16) for w in params["ws"][1:]),
        "b_hidden": jnp.stack(params["bs"], axis=0),                 # (nlayers, 1, nunits) f32
        "w_out": params["w_out"],                                    # (1, nunits) f32
        "b_out": params["b_out"],                                    # (1, 1) f32 -> SMEM
        "nlayers": params["nlayers"],
        "nunits": params["nunits"],
    }


# ----------------------------------------------------------------------------
# Pure-JAX f32 reference (mirrors the PyTorch forward exactly).
# ----------------------------------------------------------------------------
def reference_forward(obs, acs, params):
    B = obs.shape[0]
    h = jnp.concatenate([obs.reshape(B, -1), acs.reshape(B, -1)], axis=-1).astype(jnp.float32)
    for w, b in zip(params["ws"], params["bs"]):
        h = jnp.tanh(h @ w + b)
    return h @ params["w_out"].T + params["b_out"]


if __name__ == "__main__":
    # Small shapes consistent with the module's forward.
    input_obs_dim = 16     # obs is (B, 4, 4) -> flattened to 16
    acs_dim = 4            # continuous action vector (no embedding in this module)
    nlayers = 2
    nunits = 32
    B = 200                # exercises the ragged last (only) batch tile

    key = jax.random.PRNGKey(0)
    k_param, k_obs, k_acs = jax.random.split(key, 3)
    params = init_params(k_param, input_obs_dim, acs_dim, nlayers, nunits)
    kparams = prepare_params(params, input_obs_dim)

    obs = jax.random.normal(k_obs, (B, 4, 4), jnp.float32)
    acs = jax.random.normal(k_acs, (B, acs_dim), jnp.float32)

    out = cont_obs_cont_acs_to_rews_forward(obs, acs, kparams)
    out = jax.block_until_ready(out)

    ref = reference_forward(obs, acs, params)
    assert out.shape == (B, 1), out.shape
    # NOTE: the kernel feeds the MXU bf16 (f32 accumulate), so ~1e-2-level deviations
    # vs the pure-f32 reference are expected and accepted for this reward head.
    max_err = jnp.max(jnp.abs(out - ref))
    assert jnp.allclose(out, ref, atol=5e-2, rtol=5e-2), float(max_err)

    print("KERNEL_OK")
</pallas_src>

<mosaic_0001>
module attributes {stable_mosaic.version = 11 : i64} {
  func.func @_mlp_kernel(%arg0: i32, %arg1: memref<1024x16xf32, #tpu.memory_space<vmem>>, %arg2: memref<1024x4xf32, #tpu.memory_space<vmem>>, %arg3: memref<16x32xbf16, #tpu.memory_space<vmem>>, %arg4: memref<4x32xbf16, #tpu.memory_space<vmem>>, %arg5: memref<32x32xbf16, #tpu.memory_space<vmem>>, %arg6: memref<2x1x32xf32, #tpu.memory_space<vmem>>, %arg7: memref<1x32xf32, #tpu.memory_space<vmem>>, %arg8: memref<1x1xf32, #tpu.memory_space<smem>>, %arg9: memref<8x128xf32, #tpu.memory_space<vmem>>) attributes {dimension_semantics = [#tpu.dimension_semantics<parallel>], iteration_bounds = array<i64: 1>, scalar_prefetch = 0 : i64, scratch_operands = 0 : i64, tpu.core_type = #tpu.core_type<tc>, window_params = [{transform_indices = @transform_0, window_bounds = array<i64: 1024, 16>}, {transform_indices = @transform_1, window_bounds = array<i64: 1024, 4>}, {pipeline_mode = #tpu.pipeline_mode<synchronous>, transform_indices = @transform_2, window_bounds = array<i64: 16, 32>}, {pipeline_mode = #tpu.pipeline_mode<synchronous>, transform_indices = @transform_3, window_bounds = array<i64: 4, 32>}, {pipeline_mode = #tpu.pipeline_mode<synchronous>, transform_indices = @transform_4, window_bounds = array<i64: 32, 32>}, {pipeline_mode = #tpu.pipeline_mode<synchronous>, transform_indices = @transform_5, window_bounds = array<i64: 2, 1, 32>}, {pipeline_mode = #tpu.pipeline_mode<synchronous>, transform_indices = @transform_6, window_bounds = array<i64: 1, 32>}, {transform_indices = @transform_7, window_bounds = array<i64: 1, 1>}, {transform_indices = @transform_8, window_bounds = array<i64: 8, 128>}]} {
    %c0 = arith.constant 0 : index
    %c0_0 = arith.constant 0 : index
    %0 = vector.load %arg1[%c0, %c0_0] : memref<1024x16xf32, #tpu.memory_space<vmem>>, vector<1024x16xf32>
    %1 = arith.truncf %0 : vector<1024x16xf32> to vector<1024x16xbf16>
    %c0_1 = arith.constant 0 : index
    %c0_2 = arith.constant 0 : index
    %2 = vector.load %arg3[%c0_1, %c0_2] : memref<16x32xbf16, #tpu.memory_space<vmem>>, vector<16x32xbf16>
    %cst = arith.constant dense<0.000000e+00> : vector<1024x32xf32>
    %3 = tpu.matmul %1, %2, %cst {dimension_numbers = #tpu.dot_dimension_numbers<[1], [0], [0], [1], [0, 0, 1, 1], [], []>} : vector<1024x16xbf16>, vector<16x32xbf16>, vector<1024x32xf32> -> vector<1024x32xf32>
    %c0_3 = arith.constant 0 : index
    %c0_4 = arith.constant 0 : index
    %4 = vector.load %arg2[%c0_3, %c0_4] : memref<1024x4xf32, #tpu.memory_space<vmem>>, vector<1024x4xf32>
    %c0_5 = arith.constant 0 : index
    %c0_6 = arith.constant 0 : index
    %5 = vector.load %arg4[%c0_5, %c0_6] : memref<4x32xbf16, #tpu.memory_space<vmem>>, vector<4x32xbf16>
    %6 = arith.extf %5 : vector<4x32xbf16> to vector<4x32xf32>
    %7 = vector.extract_strided_slice %4 {offsets = [0, 0], sizes = [1024, 1], strides = [1, 1]} : vector<1024x4xf32> to vector<1024x1xf32>
    %8 = vector.extract_strided_slice %6 {offsets = [0, 0], sizes = [1, 32], strides = [1, 1]} : vector<4x32xf32> to vector<1x32xf32>
    %9 = vector.broadcast %7 : vector<1024x1xf32> to vector<1024x32xf32>
    %10 = vector.broadcast %8 : vector<1x32xf32> to vector<1024x32xf32>
    %11 = arith.mulf %9, %10 : vector<1024x32xf32>
    %12 = arith.addf %3, %11 : vector<1024x32xf32>
    %13 = vector.extract_strided_slice %4 {offsets = [0, 1], sizes = [1024, 1], strides = [1, 1]} : vector<1024x4xf32> to vector<1024x1xf32>
    %14 = vector.extract_strided_slice %6 {offsets = [1, 0], sizes = [1, 32], strides = [1, 1]} : vector<4x32xf32> to vector<1x32xf32>
    %15 = vector.broadcast %13 : vector<1024x1xf32> to vector<1024x32xf32>
    %16 = vector.broadcast %14 : vector<1x32xf32> to vector<1024x32xf32>
    %17 = arith.mulf %15, %16 : vector<1024x32xf32>
    %18 = arith.addf %12, %17 : vector<1024x32xf32>
    %19 = vector.extract_strided_slice %4 {offsets = [0, 2], sizes = [1024, 1], strides = [1, 1]} : vector<1024x4xf32> to vector<1024x1xf32>
    %20 = vector.extract_strided_slice %6 {offsets = [2, 0], sizes = [1, 32], strides = [1, 1]} : vector<4x32xf32> to vector<1x32xf32>
    %21 = vector.broadcast %19 : vector<1024x1xf32> to vector<1024x32xf32>
    %22 = vector.broadcast %20 : vector<1x32xf32> to vector<1024x32xf32>
    %23 = arith.mulf %21, %22 : vector<1024x32xf32>
    %24 = arith.addf %18, %23 : vector<1024x32xf32>
    %25 = vector.extract_strided_slice %4 {offsets = [0, 3], sizes = [1024, 1], strides = [1, 1]} : vector<1024x4xf32> to vector<1024x1xf32>
    %26 = vector.extract_strided_slice %6 {offsets = [3, 0], sizes = [1, 32], strides = [1, 1]} : vector<4x32xf32> to vector<1x32xf32>
    %27 = vector.broadcast %25 : vector<1024x1xf32> to vector<1024x32xf32>
    %28 = vector.broadcast %26 : vector<1x32xf32> to vector<1024x32xf32>
    %29 = arith.mulf %27, %28 : vector<1024x32xf32>
    %30 = arith.addf %24, %29 : vector<1024x32xf32>
    %c0_7 = arith.constant 0 : index
    %c0_8 = arith.constant 0 : index
    %c0_9 = arith.constant 0 : index
    %31 = vector.load %arg6[%c0_7, %c0_8, %c0_9] : memref<2x1x32xf32, #tpu.memory_space<vmem>>, vector<1x1x32xf32>
    %32 = vector.shape_cast %31 : vector<1x1x32xf32> to vector<1x32xf32>
    %33 = vector.broadcast %32 : vector<1x32xf32> to vector<1024x32xf32>
    %34 = arith.addf %30, %33 : vector<1024x32xf32>
    %35 = math.tanh %34 : vector<1024x32xf32>
    %36 = arith.truncf %35 : vector<1024x32xf32> to vector<1024x32xbf16>
    %c0_10 = arith.constant 0 : index
    %c0_11 = arith.constant 0 : index
    %37 = vector.load %arg5[%c0_10, %c0_11] : memref<32x32xbf16, #tpu.memory_space<vmem>>, vector<32x32xbf16>
    %cst_12 = arith.constant dense<0.000000e+00> : vector<1024x32xf32>
    %38 = tpu.matmul %36, %37, %cst_12 {dimension_numbers = #tpu.dot_dimension_numbers<[1], [0], [0], [1], [0, 0, 1, 1], [], []>} : vector<1024x32xbf16>, vector<32x32xbf16>, vector<1024x32xf32> -> vector<1024x32xf32>
    %c1 = arith.constant 1 : index
    %c0_13 = arith.constant 0 : index
    %c0_14 = arith.constant 0 : index
    %39 = vector.load %arg6[%c1, %c0_13, %c0_14] : memref<2x1x32xf32, #tpu.memory_space<vmem>>, vector<1x1x32xf32>
    %40 = vector.shape_cast %39 : vector<1x1x32xf32> to vector<1x32xf32>
    %41 = vector.broadcast %40 : vector<1x32xf32> to vector<1024x32xf32>
    %42 = arith.addf %38, %41 : vector<1024x32xf32>
    %43 = math.tanh %42 : vector<1024x32xf32>
    %c0_15 = arith.constant 0 : index
    %c0_16 = arith.constant 0 : index
    %44 = vector.load %arg7[%c0_15, %c0_16] : memref<1x32xf32, #tpu.memory_space<vmem>>, vector<1x32xf32>
    %45 = vector.broadcast %44 : vector<1x32xf32> to vector<1024x32xf32>
    %46 = arith.mulf %43, %45 : vector<1024x32xf32>
    %cst_17 = arith.constant dense<0.000000e+00> : vector<1024xf32>
    %47 = vector.multi_reduction <add>, %46, %cst_17 [1] : vector<1024x32xf32> to vector<1024xf32>
    %c0_18 = arith.constant 0 : index
    %c0_19 = arith.constant 0 : index
    %48 = memref.load %arg8[%c0_18, %c0_19] : memref<1x1xf32, #tpu.memory_space<smem>>
    %49 = vector.broadcast %48 : f32 to vector<1024xf32>
    %50 = arith.addf %47, %49 : vector<1024xf32>
    %51 = vector.shape_cast %50 : vector<1024xf32> to vector<8x128xf32>
    %c0_20 = arith.constant 0 : index
    %c0_21 = arith.constant 0 : index
    %52 = vector.load %arg9[%c0_20, %c0_21] : memref<8x128xf32, #tpu.memory_space<vmem>>, vector<8x128xf32>
    tpu.vector_store %arg9[%c0_20, %c0_21], %51 {strides = array<i32>} : memref<8x128xf32, #tpu.memory_space<vmem>>, vector<8x128xf32>,
    return
  }
  func.func @transform_0(%arg0: i32) -> (i32, i32) {
    %c0_i32 = arith.constant 0 : i32
    %c0_i32_0 = arith.constant 0 : i32
    return %arg0, %c0_i32 : i32, i32
  }
  func.func @transform_1(%arg0: i32) -> (i32, i32) {
    %c0_i32 = arith.constant 0 : i32
    %c0_i32_0 = arith.constant 0 : i32
    return %arg0, %c0_i32 : i32, i32
  }
  func.func @transform_2(%arg0: i32) -> (i32, i32) {
    %c0_i32 = arith.constant 0 : i32
    %c0_i32_0 = arith.constant 0 : i32
    %c0_i32_1 = arith.constant 0 : i32
    return %c0_i32, %c0_i32_0 : i32, i32
  }
  func.func @transform_3(%arg0: i32) -> (i32, i32) {
    %c0_i32 = arith.constant 0 : i32
    %c0_i32_0 = arith.constant 0 : i32
    %c0_i32_1 = arith.constant 0 : i32
    return %c0_i32, %c0_i32_0 : i32, i32
  }
  func.func @transform_4(%arg0: i32) -> (i32, i32) {
    %c0_i32 = arith.constant 0 : i32
    %c0_i32_0 = arith.constant 0 : i32
    %c0_i32_1 = arith.constant 0 : i32
    return %c0_i32, %c0_i32_0 : i32, i32
  }
  func.func @transform_5(%arg0: i32) -> (i32, i32, i32) {
    %c0_i32 = arith.constant 0 : i32
    %c0_i32_0 = arith.constant 0 : i32
    %c0_i32_1 = arith.constant 0 : i32
    %c0_i32_2 = arith.constant 0 : i32
    return %c0_i32, %c0_i32_0, %c0_i32_1 : i32, i32, i32
  }
  func.func @transform_6(%arg0: i32) -> (i32, i32) {
    %c0_i32 = arith.constant 0 : i32
    %c0_i32_0 = arith.constant 0 : i32
    %c0_i32_1 = arith.constant 0 : i32
    return %c0_i32, %c0_i32_0 : i32, i32
  }
  func.func @transform_7(%arg0: i32) -> (i32, i32) {
    %c0_i32 = arith.constant 0 : i32
    %c0_i32_0 = arith.constant 0 : i32
    %c0_i32_1 = arith.constant 0 : i32
    return %c0_i32, %c0_i32_0 : i32, i32
  }
  func.func @transform_8(%arg0: i32) -> (i32, i32) {
    %c0_i32 = arith.constant 0 : i32
    %c0_i32_0 = arith.constant 0 : i32
    return %arg0, %c0_i32 : i32, i32
  }
}

</mosaic_0001>

<llo_original>
// kernel: tpu_custom_call.1
$region0: #{tpu_custom_call.1}
  #allocation0 [shape = 'u32[]', space=smem, size = 0x4, offset = 0x4, fixed_abs, tag = 'smem constant byte address 0x4 - core index']
  #allocation1 [shape = 'u32[144,128]{1,0:T(1,128)}', space=vmem, size = 0x12000, scoped, tag = 'internal scratch']
  #allocation2 [shape = 'f32[1,1]{1,0:T(1,128)S(6)}', space=smem, size = 0x200, scoped, tag = 'scoped memory for tpu_custom_call.1']
  %s0 = inlined_call_operand.vmem [shape: f32[200,16], index: 0, kind: input, shape index: {}]
  %s1 = inlined_call_operand.vmem [shape: f32[200,4], index: 1, kind: input, shape index: {}]
  %s2 = inlined_call_operand.vmem [shape: bf16[16,32], index: 2, kind: input, shape index: {}]
  %s3 = inlined_call_operand.vmem [shape: bf16[4,32], index: 3, kind: input, shape index: {}]
  %s4 = inlined_call_operand.vmem [shape: bf16[32,32], index: 4, kind: input, shape index: {}]
  %s5 = inlined_call_operand.vmem [shape: f32[2,1,32], index: 5, kind: input, shape index: {}]
  %s6 = inlined_call_operand.vmem [shape: f32[1,32], index: 6, kind: input, shape index: {}]
  %s7 = inlined_call_operand.<no memory space> [shape: f32[1,1], index: 7, kind: input, shape index: {}]
  %s8 = inlined_call_operand.hbm [shape: f32[8,128], index: 8, kind: output, shape index: {}]
  %s9 = sld [smem:[#allocation0]]
  $region42: #{tpu_custom_call.1} parent=0
    _
  %s11 = ssub.s32 1, %s9
  %s12 = scalar_select 0, %s11, %s9
  %13 = sst [smem:[#allocation2]] %s7
  $region1: #{tpu_custom_call.1} parent=0
    #allocation3 [shape = 'u8[4096]{0}', space=vmem, size = 0x1000, scoped, tag = 'output window, operand 0, single buffered']
    #allocation4 [shape = 's32[1]{0}', space=sflag, size = 0x4, scoped, tag = 'scoped memory for tpu_custom_call.1']
    %14 = vsyncpa [#allocation4], 0
    // Predicated region
    $region2: #{tpu_custom_call.1} parent=1 // pred_check
      _
    $region3: #{tpu_custom_call.1} parent=1 // pred_check_branch
      %16 = sbr.rel (0) target = $region5
    $region4: #{tpu_custom_call.1} parent=1 // pred_region
      _
    $region5: #{tpu_custom_call.1} parent=1 // pred_fallthru
      _
    // Predicated region
    $region6: #{tpu_custom_call.1} parent=1 // pred_check
      _
    $region7: #{tpu_custom_call.1} parent=1 // pred_check_branch
      %18 = sbr.rel (0) target = $region9
    $region8: #{tpu_custom_call.1} parent=1 // pred_region
      _
    $region9: #{tpu_custom_call.1} parent=1 // pred_fallthru
      _
    // Predicated region
    $region10: #{tpu_custom_call.1} parent=1 // pred_check
      _
    $region11: #{tpu_custom_call.1} parent=1 // pred_check_branch
      %20 = sbr.rel (0) target = $region13
    $region12: #{tpu_custom_call.1} parent=1 // pred_region
      _
    $region13: #{tpu_custom_call.1} parent=1 // pred_fallthru
      _
    // Predicated region
    $region14: #{tpu_custom_call.1} parent=1 // pred_check
      _
    $region15: #{tpu_custom_call.1} parent=1 // pred_check_branch
      %22 = sbr.rel (0) target = $region17
    $region16: #{tpu_custom_call.1} parent=1 // pred_region
      _
    $region17: #{tpu_custom_call.1} parent=1 // pred_fallthru
      _
    // Predicated region
    $region18: #{tpu_custom_call.1} parent=1 // pred_check
      _
    $region19: #{tpu_custom_call.1} parent=1 // pred_check_branch
      %24 = sbr.rel (0) target = $region21
    $region20: #{tpu_custom_call.1} parent=1 // pred_region
      _
    $region21: #{tpu_custom_call.1} parent=1 // pred_fallthru
      _
    // Predicated region
    $region22: #{tpu_custom_call.1} parent=1 // pred_check
      _
    $region23: #{tpu_custom_call.1} parent=1 // pred_check_branch
      %26 = sbr.rel (0) target = $region25
    $region24: #{tpu_custom_call.1} parent=1 // pred_region
      _
    $region25: #{tpu_custom_call.1} parent=1 // pred_fallthru
      _
    // Predicated region
    $region26: #{tpu_custom_call.1} parent=1 // pred_check
      _
    $region27: #{tpu_custom_call.1} parent=1 // pred_check_branch
      %28 = sbr.rel (0) target = $region29
    $region28: #{tpu_custom_call.1} parent=1 // pred_region
      _
    $region29: #{tpu_custom_call.1} parent=1 // pred_fallthru
      _
    // Predicated region
    $region30: #{tpu_custom_call.1} parent=1 // pred_check
      _
    $region31: #{tpu_custom_call.1} parent=1 // pred_check_branch
      %30 = sbr.rel (0) target = $region33
    $region32: #{tpu_custom_call.1} parent=1 // pred_region
      _
    $region33: #{tpu_custom_call.1} parent=1 // pred_fallthru
      _
    %v32 = vld [vmem:[%s0] sm:$0xff]
    %v33 = vld [vmem:[%s0 + $0x8] sm:$0xff]
    %v34 = vld [vmem:[%s0 + $0x10] sm:$0xff]
    %v35 = vld [vmem:[%s0 + $0x18] sm:$0xff]
    %v36 = vld [vmem:[%s0 + $0x20] sm:$0xff]
    %v37 = vld [vmem:[%s0 + $0x28] sm:$0xff]
    %v38 = vld [vmem:[%s0 + $0x30] sm:$0xff]
    %v39 = vld [vmem:[%s0 + $0x38] sm:$0xff]
    %v40 = vld [vmem:[%s0 + $0x40] sm:$0xff]
    %v41 = vld [vmem:[%s0 + $0x48] sm:$0xff]
    %v42 = vld [vmem:[%s0 + $0x50] sm:$0xff]
    %v43 = vld [vmem:[%s0 + $0x58] sm:$0xff]
    %v44 = vld [vmem:[%s0 + $0x60] sm:$0xff]
    %v45 = vld [vmem:[%s0 + $0x68] sm:$0xff]
    %v46 = vld [vmem:[%s0 + $0x70] sm:$0xff]
    %v47 = vld [vmem:[%s0 + $0x78] sm:$0xff]
    %v48 = vld [vmem:[%s0 + $0x80] sm:$0xff]
    %v49 = vld [vmem:[%s0 + $0x88] sm:$0xff]
    %v50 = vld [vmem:[%s0 + $0x90] sm:$0xff]
    %v51 = vld [vmem:[%s0 + $0x98] sm:$0xff]
    %v52 = vld [vmem:[%s0 + $0xa0] sm:$0xff]
    %v53 = vld [vmem:[%s0 + $0xa8] sm:$0xff]
    %v54 = vld [vmem:[%s0 + $0xb0] sm:$0xff]
    %v55 = vld [vmem:[%s0 + $0xb8] sm:$0xff]
    %v56 = vld [vmem:[%s0 + $0xc0] sm:$0xff]
    %v57 = vld [vmem:[%s0 + $0xc8] sm:$0xff]
    %v58 = vld [vmem:[%s0 + $0xd0] sm:$0xff]
    %v59 = vld [vmem:[%s0 + $0xd8] sm:$0xff]
    %v60 = vld [vmem:[%s0 + $0xe0] sm:$0xff]
    %v61 = vld [vmem:[%s0 + $0xe8] sm:$0xff]
    %v62 = vld [vmem:[%s0 + $0xf0] sm:$0xff]
    %v63 = vld [vmem:[%s0 + $0xf8] sm:$0xff]
    %v64 = vld [vmem:[%s0 + $0x100] sm:$0xff]
    %v65 = vld [vmem:[%s0 + $0x108] sm:$0xff]
    %v66 = vld [vmem:[%s0 + $0x110] sm:$0xff]
    %v67 = vld [vmem:[%s0 + $0x118] sm:$0xff]
    %v68 = vld [vmem:[%s0 + $0x120] sm:$0xff]
    %v69 = vld [vmem:[%s0 + $0x128] sm:$0xff]
    %v70 = vld [vmem:[%s0 + $0x130] sm:$0xff]
    %v71 = vld [vmem:[%s0 + $0x138] sm:$0xff]
    %v72 = vld [vmem:[%s0 + $0x140] sm:$0xff]
    %v73 = vld [vmem:[%s0 + $0x148] sm:$0xff]
    %v74 = vld [vmem:[%s0 + $0x150] sm:$0xff]
    %v75 = vld [vmem:[%s0 + $0x158] sm:$0xff]
    %v76 = vld [vmem:[%s0 + $0x160] sm:$0xff]
    %v77 = vld [vmem:[%s0 + $0x168] sm:$0xff]
    %v78 = vld [vmem:[%s0 + $0x170] sm:$0xff]
    %v79 = vld [vmem:[%s0 + $0x178] sm:$0xff]
    %v80 = vld [vmem:[%s0 + $0x180] sm:$0xff]
    %v81 = vld [vmem:[%s0 + $0x188] sm:$0xff]
    %v82 = vld [vmem:[%s0 + $0x190] sm:$0xff]
    %v83 = vld [vmem:[%s0 + $0x198] sm:$0xff]
    %v84 = vld [vmem:[%s0 + $0x1a0] sm:$0xff]
    %v85 = vld [vmem:[%s0 + $0x1a8] sm:$0xff]
    %v86 = vld [vmem:[%s0 + $0x1b0] sm:$0xff]
    %v87 = vld [vmem:[%s0 + $0x1b8] sm:$0xff]
    %v88 = vld [vmem:[%s0 + $0x1c0] sm:$0xff]
    %v89 = vld [vmem:[%s0 + $0x1c8] sm:$0xff]
    %v90 = vld [vmem:[%s0 + $0x1d0] sm:$0xff]
    %v91 = vld [vmem:[%s0 + $0x1d8] sm:$0xff]
    %v92 = vld [vmem:[%s0 + $0x1e0] sm:$0xff]
    %v93 = vld [vmem:[%s0 + $0x1e8] sm:$0xff]
    %v94 = vld [vmem:[%s0 + $0x1f0] sm:$0xff]
    %v95 = vld [vmem:[%s0 + $0x1f8] sm:$0xff]
    %v96 = vld [vmem:[%s0 + $0x200] sm:$0xff]
    %v97 = vld [vmem:[%s0 + $0x208] sm:$0xff]
    %v98 = vld [vmem:[%s0 + $0x210] sm:$0xff]
    %v99 = vld [vmem:[%s0 + $0x218] sm:$0xff]
    %v100 = vld [vmem:[%s0 + $0x220] sm:$0xff]
    %v101 = vld [vmem:[%s0 + $0x228] sm:$0xff]
    %v102 = vld [vmem:[%s0 + $0x230] sm:$0xff]
    %v103 = vld [vmem:[%s0 + $0x238] sm:$0xff]
    %v104 = vld [vmem:[%s0 + $0x240] sm:$0xff]
    %v105 = vld [vmem:[%s0 + $0x248] sm:$0xff]
    %v106 = vld [vmem:[%s0 + $0x250] sm:$0xff]
    %v107 = vld [vmem:[%s0 + $0x258] sm:$0xff]
    %v108 = vld [vmem:[%s0 + $0x260] sm:$0xff]
    %v109 = vld [vmem:[%s0 + $0x268] sm:$0xff]
    %v110 = vld [vmem:[%s0 + $0x270] sm:$0xff]
    %v111 = vld [vmem:[%s0 + $0x278] sm:$0xff]
    %v112 = vld [vmem:[%s0 + $0x280] sm:$0xff]
    %v113 = vld [vmem:[%s0 + $0x288] sm:$0xff]
    %v114 = vld [vmem:[%s0 + $0x290] sm:$0xff]
    %v115 = vld [vmem:[%s0 + $0x298] sm:$0xff]
    %v116 = vld [vmem:[%s0 + $0x2a0] sm:$0xff]
    %v117 = vld [vmem:[%s0 + $0x2a8] sm:$0xff]
    %v118 = vld [vmem:[%s0 + $0x2b0] sm:$0xff]
    %v119 = vld [vmem:[%s0 + $0x2b8] sm:$0xff]
    %v120 = vld [vmem:[%s0 + $0x2c0] sm:$0xff]
    %v121 = vld [vmem:[%s0 + $0x2c8] sm:$0xff]
    %v122 = vld [vmem:[%s0 + $0x2d0] sm:$0xff]
    %v123 = vld [vmem:[%s0 + $0x2d8] sm:$0xff]
    %v124 = vld [vmem:[%s0 + $0x2e0] sm:$0xff]
    %v125 = vld [vmem:[%s0 + $0x2e8] sm:$0xff]
    %v126 = vld [vmem:[%s0 + $0x2f0] sm:$0xff]
    %v127 = vld [vmem:[%s0 + $0x2f8] sm:$0xff]
    %v128 = vld [vmem:[%s0 + $0x300] sm:$0xff]
    %v129 = vld [vmem:[%s0 + $0x308] sm:$0xff]
    %v130 = vld [vmem:[%s0 + $0x310] sm:$0xff]
    %v131 = vld [vmem:[%s0 + $0x318] sm:$0xff]
    %v132 = vld [vmem:[%s0 + $0x320] sm:$0xff]
    %v133 = vld [vmem:[%s0 + $0x328] sm:$0xff]
    %v134 = vld [vmem:[%s0 + $0x330] sm:$0xff]
    %v135 = vld [vmem:[%s0 + $0x338] sm:$0xff]
    %v136 = vld [vmem:[%s0 + $0x340] sm:$0xff]
    %v137 = vld [vmem:[%s0 + $0x348] sm:$0xff]
    %v138 = vld [vmem:[%s0 + $0x350] sm:$0xff]
    %v139 = vld [vmem:[%s0 + $0x358] sm:$0xff]
    %v140 = vld [vmem:[%s0 + $0x360] sm:$0xff]
    %v141 = vld [vmem:[%s0 + $0x368] sm:$0xff]
    %v142 = vld [vmem:[%s0 + $0x370] sm:$0xff]
    %v143 = vld [vmem:[%s0 + $0x378] sm:$0xff]
    %v144 = vld [vmem:[%s0 + $0x380] sm:$0xff]
    %v145 = vld [vmem:[%s0 + $0x388] sm:$0xff]
    %v146 = vld [vmem:[%s0 + $0x390] sm:$0xff]
    %v147 = vld [vmem:[%s0 + $0x398] sm:$0xff]
    %v148 = vld [vmem:[%s0 + $0x3a0] sm:$0xff]
    %v149 = vld [vmem:[%s0 + $0x3a8] sm:$0xff]
    %v150 = vld [vmem:[%s0 + $0x3b0] sm:$0xff]
    %v151 = vld [vmem:[%s0 + $0x3b8] sm:$0xff]
    %v152 = vld [vmem:[%s0 + $0x3c0] sm:$0xff]
    %v153 = vld [vmem:[%s0 + $0x3c8] sm:$0xff]
    %v154 = vld [vmem:[%s0 + $0x3d0] sm:$0xff]
    %v155 = vld [vmem:[%s0 + $0x3d8] sm:$0xff]
    %v156 = vld [vmem:[%s0 + $0x3e0] sm:$0xff]
    %v157 = vld [vmem:[%s0 + $0x3e8] sm:$0xff]
    %v158 = vld [vmem:[%s0 + $0x3f0] sm:$0xff]
    %v159 = vld [vmem:[%s0 + $0x3f8] sm:$0xff]
    %v160 = vpack.c.bf16 %v33, %v32
    %v161 = vpack.c.bf16 %v35, %v34
    %v162 = vpack.c.bf16 %v37, %v36
    %v163 = vpack.c.bf16 %v39, %v38
    %v164 = vpack.c.bf16 %v41, %v40
    %v165 = vpack.c.bf16 %v43, %v42
    %v166 = vpack.c.bf16 %v45, %v44
    %v167 = vpack.c.bf16 %v47, %v46
    %v168 = vpack.c.bf16 %v49, %v48
    %v169 = vpack.c.bf16 %v51, %v50
    %v170 = vpack.c.bf16 %v53, %v52
    %v171 = vpack.c.bf16 %v55, %v54
    %v172 = vpack.c.bf16 %v57, %v56
    %v173 = vpack.c.bf16 %v59, %v58
    %v174 = vpack.c.bf16 %v61, %v60
    %v175 = vpack.c.bf16 %v63, %v62
    %v176 = vpack.c.bf16 %v65, %v64
    %v177 = vpack.c.bf16 %v67, %v66
    %v178 = vpack.c.bf16 %v69, %v68
    %v179 = vpack.c.bf16 %v71, %v70
    %v180 = vpack.c.bf16 %v73, %v72
    %v181 = vpack.c.bf16 %v75, %v74
    %v182 = vpack.c.bf16 %v77, %v76
    %v183 = vpack.c.bf16 %v79, %v78
    %v184 = vpack.c.bf16 %v81, %v80
    %v185 = vpack.c.bf16 %v83, %v82
    %v186 = vpack.c.bf16 %v85, %v84
    %v187 = vpack.c.bf16 %v87, %v86
    %v188 = vpack.c.bf16 %v89, %v88
    %v189 = vpack.c.bf16 %v91, %v90
    %v190 = vpack.c.bf16 %v93, %v92
    %v191 = vpack.c.bf16 %v95, %v94
    %v192 = vpack.c.bf16 %v97, %v96
    %v193 = vpack.c.bf16 %v99, %v98
    %v194 = vpack.c.bf16 %v101, %v100
    %v195 = vpack.c.bf16 %v103, %v102
    %v196 = vpack.c.bf16 %v105, %v104
    %v197 = vpack.c.bf16 %v107, %v106
    %v198 = vpack.c.bf16 %v109, %v108
    %v199 = vpack.c.bf16 %v111, %v110
    %v200 = vpack.c.bf16 %v113, %v112
    %v201 = vpack.c.bf16 %v115, %v114
    %v202 = vpack.c.bf16 %v117, %v116
    %v203 = vpack.c.bf16 %v119, %v118
    %v204 = vpack.c.bf16 %v121, %v120
    %v205 = vpack.c.bf16 %v123, %v122
    %v206 = vpack.c.bf16 %v125, %v124
    %v207 = vpack.c.bf16 %v127, %v126
    %v208 = vpack.c.bf16 %v129, %v128
    %v209 = vpack.c.bf16 %v131, %v130
    %v210 = vpack.c.bf16 %v133, %v132
    %v211 = vpack.c.bf16 %v135, %v134
    %v212 = vpack.c.bf16 %v137, %v136
    %v213 = vpack.c.bf16 %v139, %v138
    %v214 = vpack.c.bf16 %v141, %v140
    %v215 = vpack.c.bf16 %v143, %v142
    %v216 = vpack.c.bf16 %v145, %v144
    %v217 = vpack.c.bf16 %v147, %v146
    %v218 = vpack.c.bf16 %v149, %v148
    %v219 = vpack.c.bf16 %v151, %v150
    %v220 = vpack.c.bf16 %v153, %v152
    %v221 = vpack.c.bf16 %v155, %v154
    %v222 = vpack.c.bf16 %v157, %v156
    %v223 = vpack.c.bf16 %v159, %v158
    %v224 = vld [vmem:[%s2] sm:$0xf]
    %v225 = vld [vmem:[%s2 + $0x4] sm:$0xf]
    %v226 = vld [vmem:[%s1] sm:$0xff]
    %v227 = vld [vmem:[%s1 + $0x8] sm:$0xff]
    %v228 = vld [vmem:[%s1 + $0x10] sm:$0xff]
    %v229 = vld [vmem:[%s1 + $0x18] sm:$0xff]
    %v230 = vld [vmem:[%s1 + $0x20] sm:$0xff]
    %v231 = vld [vmem:[%s1 + $0x28] sm:$0xff]
    %v232 = vld [vmem:[%s1 + $0x30] sm:$0xff]
    %v233 = vld [vmem:[%s1 + $0x38] sm:$0xff]
    %v234 = vld [vmem:[%s1 + $0x40] sm:$0xff]
    %v235 = vld [vmem:[%s1 + $0x48] sm:$0xff]
    %v236 = vld [vmem:[%s1 + $0x50] sm:$0xff]
    %v237 = vld [vmem:[%s1 + $0x58] sm:$0xff]
    %v238 = vld [vmem:[%s1 + $0x60] sm:$0xff]
    %v239 = vld [vmem:[%s1 + $0x68] sm:$0xff]
    %v240 = vld [vmem:[%s1 + $0x70] sm:$0xff]
    %v241 = vld [vmem:[%s1 + $0x78] sm:$0xff]
    %v242 = vld [vmem:[%s1 + $0x80] sm:$0xff]
    %v243 = vld [vmem:[%s1 + $0x88] sm:$0xff]
    %v244 = vld [vmem:[%s1 + $0x90] sm:$0xff]
    %v245 = vld [vmem:[%s1 + $0x98] sm:$0xff]
    %v246 = vld [vmem:[%s1 + $0xa0] sm:$0xff]
    %v247 = vld [vmem:[%s1 + $0xa8] sm:$0xff]
    %v248 = vld [vmem:[%s1 + $0xb0] sm:$0xff]
    %v249 = vld [vmem:[%s1 + $0xb8] sm:$0xff]
    %v250 = vld [vmem:[%s1 + $0xc0] sm:$0xff]
    %v251 = vld [vmem:[%s1 + $0xc8] sm:$0xff]
    %v252 = vld [vmem:[%s1 + $0xd0] sm:$0xff]
    %v253 = vld [vmem:[%s1 + $0xd8] sm:$0xff]
    %v254 = vld [vmem:[%s1 + $0xe0] sm:$0xff]
    %v255 = vld [vmem:[%s1 + $0xe8] sm:$0xff]
    %v256 = vld [vmem:[%s1 + $0xf0] sm:$0xff]
    %v257 = vld [vmem:[%s1 + $0xf8] sm:$0xff]
    %v258 = vld [vmem:[%s1 + $0x100] sm:$0xff]
    %v259 = vld [vmem:[%s1 + $0x108] sm:$0xff]
    %v260 = vld [vmem:[%s1 + $0x110] sm:$0xff]
    %v261 = vld [vmem:[%s1 + $0x118] sm:$0xff]
    %v262 = vld [vmem:[%s1 + $0x120] sm:$0xff]
    %v263 = vld [vmem:[%s1 + $0x128] sm:$0xff]
    %v264 = vld [vmem:[%s1 + $0x130] sm:$0xff]
    %v265 = vld [vmem:[%s1 + $0x138] sm:$0xff]
    %v266 = vld [vmem:[%s1 + $0x140] sm:$0xff]
    %v267 = vld [vmem:[%s1 + $0x148] sm:$0xff]
    %v268 = vld [vmem:[%s1 + $0x150] sm:$0xff]
    %v269 = vld [vmem:[%s1 + $0x158] sm:$0xff]
    %v270 = vld [vmem:[%s1 + $0x160] sm:$0xff]
    %v271 = vld [vmem:[%s1 + $0x168] sm:$0xff]
    %v272 = vld [vmem:[%s1 + $0x170] sm:$0xff]
    %v273 = vld [vmem:[%s1 + $0x178] sm:$0xff]
    %v274 = vld [vmem:[%s1 + $0x180] sm:$0xff]
    %v275 = vld [vmem:[%s1 + $0x188] sm:$0xff]
    %v276 = vld [vmem:[%s1 + $0x190] sm:$0xff]
    %v277 = vld [vmem:[%s1 + $0x198] sm:$0xff]
    %v278 = vld [vmem:[%s1 + $0x1a0] sm:$0xff]
    %v279 = vld [vmem:[%s1 + $0x1a8] sm:$0xff]
    %v280 = vld [vmem:[%s1 + $0x1b0] sm:$0xff]
    %v281 = vld [vmem:[%s1 + $0x1b8] sm:$0xff]
    %v282 = vld [vmem:[%s1 + $0x1c0] sm:$0xff]
    %v283 = vld [vmem:[%s1 + $0x1c8] sm:$0xff]
    %v284 = vld [vmem:[%s1 + $0x1d0] sm:$0xff]
    %v285 = vld [vmem:[%s1 + $0x1d8] sm:$0xff]
    %v286 = vld [vmem:[%s1 + $0x1e0] sm:$0xff]
    %v287 = vld [vmem:[%s1 + $0x1e8] sm:$0xff]
    %v288 = vld [vmem:[%s1 + $0x1f0] sm:$0xff]
    %v289 = vld [vmem:[%s1 + $0x1f8] sm:$0xff]
    %v290 = vld [vmem:[%s1 + $0x200] sm:$0xff]
    %v291 = vld [vmem:[%s1 + $0x208] sm:$0xff]
    %v292 = vld [vmem:[%s1 + $0x210] sm:$0xff]
    %v293 = vld [vmem:[%s1 + $0x218] sm:$0xff]
    %v294 = vld [vmem:[%s1 + $0x220] sm:$0xff]
    %v295 = vld [vmem:[%s1 + $0x228] sm:$0xff]
    %v296 = vld [vmem:[%s1 + $0x230] sm:$0xff]
    %v297 = vld [vmem:[%s1 + $0x238] sm:$0xff]
    %v298 = vld [vmem:[%s1 + $0x240] sm:$0xff]
    %v299 = vld [vmem:[%s1 + $0x248] sm:$0xff]
    %v300 = vld [vmem:[%s1 + $0x250] sm:$0xff]
    %v301 = vld [vmem:[%s1 + $0x258] sm:$0xff]
    %v302 = vld [vmem:[%s1 + $0x260] sm:$0xff]
    %v303 = vld [vmem:[%s1 + $0x268] sm:$0xff]
    %v304 = vld [vmem:[%s1 + $0x270] sm:$0xff]
    %v305 = vld [vmem:[%s1 + $0x278] sm:$0xff]
    %v306 = vld [vmem:[%s1 + $0x280] sm:$0xff]
    %v307 = vld [vmem:[%s1 + $0x288] sm:$0xff]
    %v308 = vld [vmem:[%s1 + $0x290] sm:$0xff]
    %v309 = vld [vmem:[%s1 + $0x298] sm:$0xff]
    %v310 = vld [vmem:[%s1 + $0x2a0] sm:$0xff]
    %v311 = vld [vmem:[%s1 + $0x2a8] sm:$0xff]
    %v312 = vld [vmem:[%s1 + $0x2b0] sm:$0xff]
    %v313 = vld [vmem:[%s1 + $0x2b8] sm:$0xff]
    %v314 = vld [vmem:[%s1 + $0x2c0] sm:$0xff]
    %v315 = vld [vmem:[%s1 + $0x2c8] sm:$0xff]
    %v316 = vld [vmem:[%s1 + $0x2d0] sm:$0xff]
    %v317 = vld [vmem:[%s1 + $0x2d8] sm:$0xff]
    %v318 = vld [vmem:[%s1 + $0x2e0] sm:$0xff]
    %v319 = vld [vmem:[%s1 + $0x2e8] sm:$0xff]
    %v320 = vld [vmem:[%s1 + $0x2f0] sm:$0xff]
    %v321 = vld [vmem:[%s1 + $0x2f8] sm:$0xff]
    %v322 = vld [vmem:[%s1 + $0x300] sm:$0xff]
    %v323 = vld [vmem:[%s1 + $0x308] sm:$0xff]
    %v324 = vld [vmem:[%s1 + $0x310] sm:$0xff]
    %v325 = vld [vmem:[%s1 + $0x318] sm:$0xff]
    %v326 = vld [vmem:[%s1 + $0x320] sm:$0xff]
    %v327 = vld [vmem:[%s1 + $0x328] sm:$0xff]
    %v328 = vld [vmem:[%s1 + $0x330] sm:$0xff]
    %v329 = vld [vmem:[%s1 + $0x338] sm:$0xff]
    %v330 = vld [vmem:[%s1 + $0x340] sm:$0xff]
    %v331 = vld [vmem:[%s1 + $0x348] sm:$0xff]
    %v332 = vld [vmem:[%s1 + $0x350] sm:$0xff]
    %v333 = vld [vmem:[%s1 + $0x358] sm:$0xff]
    %v334 = vld [vmem:[%s1 + $0x360] sm:$0xff]
    %v335 = vld [vmem:[%s1 + $0x368] sm:$0xff]
    %v336 = vld [vmem:[%s1 + $0x370] sm:$0xff]
    %v337 = vld [vmem:[%s1 + $0x378] sm:$0xff]
    %v338 = vld [vmem:[%s1 + $0x380] sm:$0xff]
    %v339 = vld [vmem:[%s1 + $0x388] sm:$0xff]
    %v340 = vld [vmem:[%s1 + $0x390] sm:$0xff]
    %v341 = vld [vmem:[%s1 + $0x398] sm:$0xff]
    %v342 = vld [vmem:[%s1 + $0x3a0] sm:$0xff]
    %v343 = vld [vmem:[%s1 + $0x3a8] sm:$0xff]
    %v344 = vld [vmem:[%s1 + $0x3b0] sm:$0xff]
    %v345 = vld [vmem:[%s1 + $0x3b8] sm:$0xff]
    %v346 = vld [vmem:[%s1 + $0x3c0] sm:$0xff]
    %v347 = vld [vmem:[%s1 + $0x3c8] sm:$0xff]
    %v348 = vld [vmem:[%s1 + $0x3d0] sm:$0xff]
    %v349 = vld [vmem:[%s1 + $0x3d8] sm:$0xff]
    %v350 = vld [vmem:[%s1 + $0x3e0] sm:$0xff]
    %v351 = vld [vmem:[%s1 + $0x3e8] sm:$0xff]
    %v352 = vld [vmem:[%s1 + $0x3f0] sm:$0xff]
    %v353 = vld [vmem:[%s1 + $0x3f8] sm:$0xff]
    %v354 = vld [vmem:[%s3] sm:$0x3]
    %v355 = vunpack.c.l.bf16 %v354
    %357 = vset.pattern.permute.xlu0 0
    %358 = vperm.xlu0 %357, %v226
    %v359 = vpop.permute.xlu0 %358
    %362 = vset.pattern.permute.xlu0 0
    %363 = vperm.xlu0 %362, %v227
    %v364 = vpop.permute.xlu0 %363
    %367 = vset.pattern.permute.xlu0 0
    %368 = vperm.xlu0 %367, %v228
    %v369 = vpop.permute.xlu0 %368
    %372 = vset.pattern.permute.xlu0 0
    %373 = vperm.xlu0 %372, %v229
    %v374 = vpop.permute.xlu0 %373
    %377 = vset.pattern.permute.xlu0 0
    %378 = vperm.xlu0 %377, %v230
    %v379 = vpop.permute.xlu0 %378
    %382 = vset.pattern.permute.xlu0 0
    %383 = vperm.xlu0 %382, %v231
    %v384 = vpop.permute.xlu0 %383
    %387 = vset.pattern.permute.xlu0 0
    %388 = vperm.xlu0 %387, %v232
    %v389 = vpop.permute.xlu0 %388
    %392 = vset.pattern.permute.xlu0 0
    %393 = vperm.xlu0 %392, %v233
    %v394 = vpop.permute.xlu0 %393
    %397 = vset.pattern.permute.xlu0 0
    %398 = vperm.xlu0 %397, %v234
    %v399 = vpop.permute.xlu0 %398
    %402 = vset.pattern.permute.xlu0 0
    %403 = vperm.xlu0 %402, %v235
    %v404 = vpop.permute.xlu0 %403
    %407 = vset.pattern.permute.xlu0 0
    %408 = vperm.xlu0 %407, %v236
    %v409 = vpop.permute.xlu0 %408
    %412 = vset.pattern.permute.xlu0 0
    %413 = vperm.xlu0 %412, %v237
    %v414 = vpop.permute.xlu0 %413
    %417 = vset.pattern.permute.xlu0 0
    %418 = vperm.xlu0 %417, %v238
    %v419 = vpop.permute.xlu0 %418
    %422 = vset.pattern.permute.xlu0 0
    %423 = vperm.xlu0 %422, %v239
    %v424 = vpop.permute.xlu0 %423
    %427 = vset.pattern.permute.xlu0 0
    %428 = vperm.xlu0 %427, %v240
    %v429 = vpop.permute.xlu0 %428
    %432 = vset.pattern.permute.xlu0 0
    %433 = vperm.xlu0 %432, %v241
    %v434 = vpop.permute.xlu0 %433
    %437 = vset.pattern.permute.xlu0 0
    %438 = vperm.xlu0 %437, %v242
    %v439 = vpop.permute.xlu0 %438
    %442 = vset.pattern.permute.xlu0 0
    %443 = vperm.xlu0 %442, %v243
    %v444 = vpop.permute.xlu0 %443
    %447 = vset.pattern.permute.xlu0 0
    %448 = vperm.xlu0 %447, %v244
    %v449 = vpop.permute.xlu0 %448
    %452 = vset.pattern.permute.xlu0 0
    %453 = vperm.xlu0 %452, %v245
    %v454 = vpop.permute.xlu0 %453
    %457 = vset.pattern.permute.xlu0 0
    %458 = vperm.xlu0 %457, %v246
    %v459 = vpop.permute.xlu0 %458
    %462 = vset.pattern.permute.xlu0 0
    %463 = vperm.xlu0 %462, %v247
    %v464 = vpop.permute.xlu0 %463
    %467 = vset.pattern.permute.xlu0 0
    %468 = vperm.xlu0 %467, %v248
    %v469 = vpop.permute.xlu0 %468
    %472 = vset.pattern.permute.xlu0 0
    %473 = vperm.xlu0 %472, %v249
    %v474 = vpop.permute.xlu0 %473
    %477 = vset.pattern.permute.xlu0 0
    %478 = vperm.xlu0 %477, %v250
    %v479 = vpop.permute.xlu0 %478
    %482 = vset.pattern.permute.xlu0 0
    %483 = vperm.xlu0 %482, %v251
    %v484 = vpop.permute.xlu0 %483
    %487 = vset.pattern.permute.xlu0 0
    %488 = vperm.xlu0 %487, %v252
    %v489 = vpop.permute.xlu0 %488
    %492 = vset.pattern.permute.xlu0 0
    %493 = vperm.xlu0 %492, %v253
    %v494 = vpop.permute.xlu0 %493
    %497 = vset.pattern.permute.xlu0 0
    %498 = vperm.xlu0 %497, %v254
    %v499 = vpop.permute.xlu0 %498
    %502 = vset.pattern.permute.xlu0 0
    %503 = vperm.xlu0 %502, %v255
    %v504 = vpop.permute.xlu0 %503
    %507 = vset.pattern.permute.xlu0 0
    %508 = vperm.xlu0 %507, %v256
    %v509 = vpop.permute.xlu0 %508
    %512 = vset.pattern.permute.xlu0 0
    %513 = vperm.xlu0 %512, %v257
    %v514 = vpop.permute.xlu0 %513
    %517 = vset.pattern.permute.xlu0 0
    %518 = vperm.xlu0 %517, %v258
    %v519 = vpop.permute.xlu0 %518
    %522 = vset.pattern.permute.xlu0 0
    %523 = vperm.xlu0 %522, %v259
    %v524 = vpop.permute.xlu0 %523
    %527 = vset.pattern.permute.xlu0 0
    %528 = vperm.xlu0 %527, %v260
    %v529 = vpop.permute.xlu0 %528
    %532 = vset.pattern.permute.xlu0 0
    %533 = vperm.xlu0 %532, %v261
    %v534 = vpop.permute.xlu0 %533
    %537 = vset.pattern.permute.xlu0 0
    %538 = vperm.xlu0 %537, %v262
    %v539 = vpop.permute.xlu0 %538
    %542 = vset.pattern.permute.xlu0 0
    %543 = vperm.xlu0 %542, %v263
    %v544 = vpop.permute.xlu0 %543
    %547 = vset.pattern.permute.xlu0 0
    %548 = vperm.xlu0 %547, %v264
    %v549 = vpop.permute.xlu0 %548
    %552 = vset.pattern.permute.xlu0 0
    %553 = vperm.xlu0 %552, %v265
    %v554 = vpop.permute.xlu0 %553
    %557 = vset.pattern.permute.xlu0 0
    %558 = vperm.xlu0 %557, %v266
    %v559 = vpop.permute.xlu0 %558
    %562 = vset.pattern.permute.xlu0 0
    %563 = vperm.xlu0 %562, %v267
    %v564 = vpop.permute.xlu0 %563
    %567 = vset.pattern.permute.xlu0 0
    %568 = vperm.xlu0 %567, %v268
    %v569 = vpop.permute.xlu0 %568
    %572 = vset.pattern.permute.xlu0 0
    %573 = vperm.xlu0 %572, %v269
    %v574 = vpop.permute.xlu0 %573
    %577 = vset.pattern.permute.xlu0 0
    %578 = vperm.xlu0 %577, %v270
    %v579 = vpop.permute.xlu0 %578
    %582 = vset.pattern.permute.xlu0 0
    %583 = vperm.xlu0 %582, %v271
    %v584 = vpop.permute.xlu0 %583
    %587 = vset.pattern.permute.xlu0 0
    %588 = vperm.xlu0 %587, %v272
    %v589 = vpop.permute.xlu0 %588
    %592 = vset.pattern.permute.xlu0 0
    %593 = vperm.xlu0 %592, %v273
    %v594 = vpop.permute.xlu0 %593
    %597 = vset.pattern.permute.xlu0 0
    %598 = vperm.xlu0 %597, %v274
    %v599 = vpop.permute.xlu0 %598
    %602 = vset.pattern.permute.xlu0 0
    %603 = vperm.xlu0 %602, %v275
    %v604 = vpop.permute.xlu0 %603
    %607 = vset.pattern.permute.xlu0 0
    %608 = vperm.xlu0 %607, %v276
    %v609 = vpop.permute.xlu0 %608
    %612 = vset.pattern.permute.xlu0 0
    %613 = vperm.xlu0 %612, %v277
    %v614 = vpop.permute.xlu0 %613
    %617 = vset.pattern.permute.xlu0 0
    %618 = vperm.xlu0 %617, %v278
    %v619 = vpop.permute.xlu0 %618
    %622 = vset.pattern.permute.xlu0 0
    %623 = vperm.xlu0 %622, %v279
    %v624 = vpop.permute.xlu0 %623
    %627 = vset.pattern.permute.xlu0 0
    %628 = vperm.xlu0 %627, %v280
    %v629 = vpop.permute.xlu0 %628
    %632 = vset.pattern.permute.xlu0 0
    %633 = vperm.xlu0 %632, %v281
    %v634 = vpop.permute.xlu0 %633
    %637 = vset.pattern.permute.xlu0 0
    %638 = vperm.xlu0 %637, %v282
    %v639 = vpop.permute.xlu0 %638
    %642 = vset.pattern.permute.xlu0 0
    %643 = vperm.xlu0 %642, %v283
    %v644 = vpop.permute.xlu0 %643
    %647 = vset.pattern.permute.xlu0 0
    %648 = vperm.xlu0 %647, %v284
    %v649 = vpop.permute.xlu0 %648
    %652 = vset.pattern.permute.xlu0 0
    %653 = vperm.xlu0 %652, %v285
    %v654 = vpop.permute.xlu0 %653
    %657 = vset.pattern.permute.xlu0 0
    %658 = vperm.xlu0 %657, %v286
    %v659 = vpop.permute.xlu0 %658
    %662 = vset.pattern.permute.xlu0 0
    %663 = vperm.xlu0 %662, %v287
    %v664 = vpop.permute.xlu0 %663
    %667 = vset.pattern.permute.xlu0 0
    %668 = vperm.xlu0 %667, %v288
    %v669 = vpop.permute.xlu0 %668
    %672 = vset.pattern.permute.xlu0 0
    %673 = vperm.xlu0 %672, %v289
    %v674 = vpop.permute.xlu0 %673
    %677 = vset.pattern.permute.xlu0 0
    %678 = vperm.xlu0 %677, %v290
    %v679 = vpop.permute.xlu0 %678
    %682 = vset.pattern.permute.xlu0 0
    %683 = vperm.xlu0 %682, %v291
    %v684 = vpop.permute.xlu0 %683
    %687 = vset.pattern.permute.xlu0 0
    %688 = vperm.xlu0 %687, %v292
    %v689 = vpop.permute.xlu0 %688
    %692 = vset.pattern.permute.xlu0 0
    %693 = vperm.xlu0 %692, %v293
    %v694 = vpop.permute.xlu0 %693
    %697 = vset.pattern.permute.xlu0 0
    %698 = vperm.xlu0 %697, %v294
    %v699 = vpop.permute.xlu0 %698
    %702 = vset.pattern.permute.xlu0 0
    %703 = vperm.xlu0 %702, %v295
    %v704 = vpop.permute.xlu0 %703
    %707 = vset.pattern.permute.xlu0 0
    %708 = vperm.xlu0 %707, %v296
    %v709 = vpop.permute.xlu0 %708
    %712 = vset.pattern.permute.xlu0 0
    %713 = vperm.xlu0 %712, %v297
    %v714 = vpop.permute.xlu0 %713
    %717 = vset.pattern.permute.xlu0 0
    %718 = vperm.xlu0 %717, %v298
    %v719 = vpop.permute.xlu0 %718
    %722 = vset.pattern.permute.xlu0 0
    %723 = vperm.xlu0 %722, %v299
    %v724 = vpop.permute.xlu0 %723
    %727 = vset.pattern.permute.xlu0 0
    %728 = vperm.xlu0 %727, %v300
    %v729 = vpop.permute.xlu0 %728
    %732 = vset.pattern.permute.xlu0 0
    %733 = vperm.xlu0 %732, %v301
    %v734 = vpop.permute.xlu0 %733
    %737 = vset.pattern.permute.xlu0 0
    %738 = vperm.xlu0 %737, %v302
    %v739 = vpop.permute.xlu0 %738
    %742 = vset.pattern.permute.xlu0 0
    %743 = vperm.xlu0 %742, %v303
    %v744 = vpop.permute.xlu0 %743
    %747 = vset.pattern.permute.xlu0 0
    %748 = vperm.xlu0 %747, %v304
    %v749 = vpop.permute.xlu0 %748
    %752 = vset.pattern.permute.xlu0 0
    %753 = vperm.xlu0 %752, %v305
    %v754 = vpop.permute.xlu0 %753
    %757 = vset.pattern.permute.xlu0 0
    %758 = vperm.xlu0 %757, %v306
    %v759 = vpop.permute.xlu0 %758
    %762 = vset.pattern.permute.xlu0 0
    %763 = vperm.xlu0 %762, %v307
    %v764 = vpop.permute.xlu0 %763
    %767 = vset.pattern.permute.xlu0 0
    %768 = vperm.xlu0 %767, %v308
    %v769 = vpop.permute.xlu0 %768
    %772 = vset.pattern.permute.xlu0 0
    %773 = vperm.xlu0 %772, %v309
    %v774 = vpop.permute.xlu0 %773
    %777 = vset.pattern.permute.xlu0 0
    %778 = vperm.xlu0 %777, %v310
    %v779 = vpop.permute.xlu0 %778
    %782 = vset.pattern.permute.xlu0 0
    %783 = vperm.xlu0 %782, %v311
    %v784 = vpop.permute.xlu0 %783
    %787 = vset.pattern.permute.xlu0 0
    %788 = vperm.xlu0 %787, %v312
    %v789 = vpop.permute.xlu0 %788
    %792 = vset.pattern.permute.xlu0 0
    %793 = vperm.xlu0 %792, %v313
    %v794 = vpop.permute.xlu0 %793
    %797 = vset.pattern.permute.xlu0 0
    %798 = vperm.xlu0 %797, %v314
    %v799 = vpop.permute.xlu0 %798
    %802 = vset.pattern.permute.xlu0 0
    %803 = vperm.xlu0 %802, %v315
    %v804 = vpop.permute.xlu0 %803
    %807 = vset.pattern.permute.xlu0 0
    %808 = vperm.xlu0 %807, %v316
    %v809 = vpop.permute.xlu0 %808
    %812 = vset.pattern.permute.xlu0 0
    %813 = vperm.xlu0 %812, %v317
    %v814 = vpop.permute.xlu0 %813
    %817 = vset.pattern.permute.xlu0 0
    %818 = vperm.xlu0 %817, %v318
    %v819 = vpop.permute.xlu0 %818
    %822 = vset.pattern.permute.xlu0 0
    %823 = vperm.xlu0 %822, %v319
    %v824 = vpop.permute.xlu0 %823
    %827 = vset.pattern.permute.xlu0 0
    %828 = vperm.xlu0 %827, %v320
    %v829 = vpop.permute.xlu0 %828
    %832 = vset.pattern.permute.xlu0 0
    %833 = vperm.xlu0 %832, %v321
    %v834 = vpop.permute.xlu0 %833
    %837 = vset.pattern.permute.xlu0 0
    %838 = vperm.xlu0 %837, %v322
    %v839 = vpop.permute.xlu0 %838
    %842 = vset.pattern.permute.xlu0 0
    %843 = vperm.xlu0 %842, %v323
    %v844 = vpop.permute.xlu0 %843
    %847 = vset.pattern.permute.xlu0 0
    %848 = vperm.xlu0 %847, %v324
    %v849 = vpop.permute.xlu0 %848
    %852 = vset.pattern.permute.xlu0 0
    %853 = vperm.xlu0 %852, %v325
    %v854 = vpop.permute.xlu0 %853
    %857 = vset.pattern.permute.xlu0 0
    %858 = vperm.xlu0 %857, %v326
    %v859 = vpop.permute.xlu0 %858
    %862 = vset.pattern.permute.xlu0 0
    %863 = vperm.xlu0 %862, %v327
    %v864 = vpop.permute.xlu0 %863
    %867 = vset.pattern.permute.xlu0 0
    %868 = vperm.xlu0 %867, %v328
    %v869 = vpop.permute.xlu0 %868
    %872 = vset.pattern.permute.xlu0 0
    %873 = vperm.xlu0 %872, %v329
    %v874 = vpop.permute.xlu0 %873
    %877 = vset.pattern.permute.xlu0 0
    %878 = vperm.xlu0 %877, %v330
    %v879 = vpop.permute.xlu0 %878
    %882 = vset.pattern.permute.xlu0 0
    %883 = vperm.xlu0 %882, %v331
    %v884 = vpop.permute.xlu0 %883
    %887 = vset.pattern.permute.xlu0 0
    %888 = vperm.xlu0 %887, %v332
    %v889 = vpop.permute.xlu0 %888
    %892 = vset.pattern.permute.xlu0 0
    %893 = vperm.xlu0 %892, %v333
    %v894 = vpop.permute.xlu0 %893
    %897 = vset.pattern.permute.xlu0 0
    %898 = vperm.xlu0 %897, %v334
    %v899 = vpop.permute.xlu0 %898
    %902 = vset.pattern.permute.xlu0 0
    %903 = vperm.xlu0 %902, %v335
    %v904 = vpop.permute.xlu0 %903
    %907 = vset.pattern.permute.xlu0 0
    %908 = vperm.xlu0 %907, %v336
    %v909 = vpop.permute.xlu0 %908
    %912 = vset.pattern.permute.xlu0 0
    %913 = vperm.xlu0 %912, %v337
    %v914 = vpop.permute.xlu0 %913
    %917 = vset.pattern.permute.xlu0 0
    %918 = vperm.xlu0 %917, %v338
    %v919 = vpop.permute.xlu0 %918
    %922 = vset.pattern.permute.xlu0 0
    %923 = vperm.xlu0 %922, %v339
    %v924 = vpop.permute.xlu0 %923
    %927 = vset.pattern.permute.xlu0 0
    %928 = vperm.xlu0 %927, %v340
    %v929 = vpop.permute.xlu0 %928
    %932 = vset.pattern.permute.xlu0 0
    %933 = vperm.xlu0 %932, %v341
    %v934 = vpop.permute.xlu0 %933
    %937 = vset.pattern.permute.xlu0 0
    %938 = vperm.xlu0 %937, %v342
    %v939 = vpop.permute.xlu0 %938
    %942 = vset.pattern.permute.xlu0 0
    %943 = vperm.xlu0 %942, %v343
    %v944 = vpop.permute.xlu0 %943
    %947 = vset.pattern.permute.xlu0 0
    %948 = vperm.xlu0 %947, %v344
    %v949 = vpop.permute.xlu0 %948
    %952 = vset.pattern.permute.xlu0 0
    %953 = vperm.xlu0 %952, %v345
    %v954 = vpop.permute.xlu0 %953
    %957 = vset.pattern.permute.xlu0 0
    %958 = vperm.xlu0 %957, %v346
    %v959 = vpop.permute.xlu0 %958
    %962 = vset.pattern.permute.xlu0 0
    %963 = vperm.xlu0 %962, %v347
    %v964 = vpop.permute.xlu0 %963
    %967 = vset.pattern.permute.xlu0 0
    %968 = vperm.xlu0 %967, %v348
    %v969 = vpop.permute.xlu0 %968
    %972 = vset.pattern.permute.xlu0 0
    %973 = vperm.xlu0 %972, %v349
    %v974 = vpop.permute.xlu0 %973
    %977 = vset.pattern.permute.xlu0 0
    %978 = vperm.xlu0 %977, %v350
    %v979 = vpop.permute.xlu0 %978
    %982 = vset.pattern.permute.xlu0 0
    %983 = vperm.xlu0 %982, %v351
    %v984 = vpop.permute.xlu0 %983
    %987 = vset.pattern.permute.xlu0 0
    %988 = vperm.xlu0 %987, %v352
    %v989 = vpop.permute.xlu0 %988
    %992 = vset.pattern.permute.xlu0 0
    %993 = vperm.xlu0 %992, %v353
    %v994 = vpop.permute.xlu0 %993
    %v996 = vlaneseq
    %v997 = vshrl.u32 %v996, 7
    %v998 = vsub.s32 0, %v997
    %v999 = vrot.slane %v355, %v998
    %v1000 = vmul.f32 %v359, %v999
    %v1001 = vmul.f32 %v364, %v999
    %v1002 = vmul.f32 %v369, %v999
    %v1003 = vmul.f32 %v374, %v999
    %v1004 = vmul.f32 %v379, %v999
    %v1005 = vmul.f32 %v384, %v999
    %v1006 = vmul.f32 %v389, %v999
    %v1007 = vmul.f32 %v394, %v999
    %v1008 = vmul.f32 %v399, %v999
    %v1009 = vmul.f32 %v404, %v999
    %v1010 = vmul.f32 %v409, %v999
    %v1011 = vmul.f32 %v414, %v999
    %v1012 = vmul.f32 %v419, %v999
    %v1013 = vmul.f32 %v424, %v999
    %v1014 = vmul.f32 %v429, %v999
    %v1015 = vmul.f32 %v434, %v999
    %v1016 = vmul.f32 %v439, %v999
    %v1017 = vmul.f32 %v444, %v999
    %v1018 = vmul.f32 %v449, %v999
    %v1019 = vmul.f32 %v454, %v999
    %v1020 = vmul.f32 %v459, %v999
    %v1021 = vmul.f32 %v464, %v999
    %v1022 = vmul.f32 %v469, %v999
    %v1023 = vmul.f32 %v474, %v999
    %v1024 = vmul.f32 %v479, %v999
    %v1025 = vmul.f32 %v484, %v999
    %v1026 = vmul.f32 %v489, %v999
    %v1027 = vmul.f32 %v494, %v999
    %v1028 = vmul.f32 %v499, %v999
    %v1029 = vmul.f32 %v504, %v999
    %v1030 = vmul.f32 %v509, %v999
    %v1031 = vmul.f32 %v514, %v999
    %v1032 = vmul.f32 %v519, %v999
    %v1033 = vmul.f32 %v524, %v999
    %v1034 = vmul.f32 %v529, %v999
    %v1035 = vmul.f32 %v534, %v999
    %v1036 = vmul.f32 %v539, %v999
    %v1037 = vmul.f32 %v544, %v999
    %v1038 = vmul.f32 %v549, %v999
    %v1039 = vmul.f32 %v554, %v999
    %v1040 = vmul.f32 %v559, %v999
    %v1041 = vmul.f32 %v564, %v999
    %v1042 = vmul.f32 %v569, %v999
    %v1043 = vmul.f32 %v574, %v999
    %v1044 = vmul.f32 %v579, %v999
    %v1045 = vmul.f32 %v584, %v999
    %v1046 = vmul.f32 %v589, %v999
    %v1047 = vmul.f32 %v594, %v999
    %v1048 = vmul.f32 %v599, %v999
    %v1049 = vmul.f32 %v604, %v999
    %v1050 = vmul.f32 %v609, %v999
    %v1051 = vmul.f32 %v614, %v999
    %v1052 = vmul.f32 %v619, %v999
    %v1053 = vmul.f32 %v624, %v999
    %v1054 = vmul.f32 %v629, %v999
    %v1055 = vmul.f32 %v634, %v999
    %v1056 = vmul.f32 %v639, %v999
    %v1057 = vmul.f32 %v644, %v999
    %v1058 = vmul.f32 %v649, %v999
    %v1059 = vmul.f32 %v654, %v999
    %v1060 = vmul.f32 %v659, %v999
    %v1061 = vmul.f32 %v664, %v999
    %v1062 = vmul.f32 %v669, %v999
    %v1063 = vmul.f32 %v674, %v999
    %v1064 = vmul.f32 %v679, %v999
    %v1065 = vmul.f32 %v684, %v999
    %v1066 = vmul.f32 %v689, %v999
    %v1067 = vmul.f32 %v694, %v999
    %v1068 = vmul.f32 %v699, %v999
    %v1069 = vmul.f32 %v704, %v999
    %v1070 = vmul.f32 %v709, %v999
    %v1071 = vmul.f32 %v714, %v999
    %v1072 = vmul.f32 %v719, %v999
    %v1073 = vmul.f32 %v724, %v999
    %v1074 = vmul.f32 %v729, %v999
    %v1075 = vmul.f32 %v734, %v999
    %v1076 = vmul.f32 %v739, %v999
    %v1077 = vmul.f32 %v744, %v999
    %v1078 = vmul.f32 %v749, %v999
    %v1079 = vmul.f32 %v754, %v999
    %v1080 = vmul.f32 %v759, %v999
    %v1081 = vmul.f32 %v764, %v999
    %v1082 = vmul.f32 %v769, %v999
    %v1083 = vmul.f32 %v774, %v999
    %v1084 = vmul.f32 %v779, %v999
    %v1085 = vmul.f32 %v784, %v999
    %v1086 = vmul.f32 %v789, %v999
    %v1087 = vmul.f32 %v794, %v999
    %v1088 = vmul.f32 %v799, %v999
    %v1089 = vmul.f32 %v804, %v999
    %v1090 = vmul.f32 %v809, %v999
    %v1091 = vmul.f32 %v814, %v999
    %v1092 = vmul.f32 %v819, %v999
    %v1093 = vmul.f32 %v824, %v999
    %v1094 = vmul.f32 %v829, %v999
    %v1095 = vmul.f32 %v834, %v999
    %v1096 = vmul.f32 %v839, %v999
    %v1097 = vmul.f32 %v844, %v999
    %v1098 = vmul.f32 %v849, %v999
    %v1099 = vmul.f32 %v854, %v999
    %v1100 = vmul.f32 %v859, %v999
    %v1101 = vmul.f32 %v864, %v999
    %v1102 = vmul.f32 %v869, %v999
    %v1103 = vmul.f32 %v874, %v999
    %v1104 = vmul.f32 %v879, %v999
    %v1105 = vmul.f32 %v884, %v999
    %v1106 = vmul.f32 %v889, %v999
    %v1107 = vmul.f32 %v894, %v999
    %v1108 = vmul.f32 %v899, %v999
    %v1109 = vmul.f32 %v904, %v999
    %v1110 = vmul.f32 %v909, %v999
    %v1111 = vmul.f32 %v914, %v999
    %v1112 = vmul.f32 %v919, %v999
    %v1113 = vmul.f32 %v924, %v999
    %v1114 = vmul.f32 %v929, %v999
    %v1115 = vmul.f32 %v934, %v999
    %v1116 = vmul.f32 %v939, %v999
    %v1117 = vmul.f32 %v944, %v999
    %v1118 = vmul.f32 %v949, %v999
    %v1119 = vmul.f32 %v954, %v999
    %v1120 = vmul.f32 %v959, %v999
    %v1121 = vmul.f32 %v964, %v999
    %v1122 = vmul.f32 %v969, %v999
    %v1123 = vmul.f32 %v974, %v999
    %v1124 = vmul.f32 %v979, %v999
    %v1125 = vmul.f32 %v984, %v999
    %v1126 = vmul.f32 %v989, %v999
    %v1127 = vmul.f32 %v994, %v999
    %v1130 = vunpack.c.l.b16 %v224
    %v1131 = vunpack.c.l.b16 %v225
    %v1132 = vpack.c.b16 %v1131, %v1130
    %vm1134 = vcmask 130048
    %v1136 = vsel %vm1134, %v160, 0
    %v1139 = vsel %vm1134, %v161, 0
    %v1142 = vsel %vm1134, %v162, 0
    %v1145 = vsel %vm1134, %v163, 0
    %v1148 = vsel %vm1134, %v164, 0
    %v1151 = vsel %vm1134, %v165, 0
    %v1154 = vsel %vm1134, %v166, 0
    %v1157 = vsel %vm1134, %v167, 0
    %v1160 = vsel %vm1134, %v168, 0
    %v1163 = vsel %vm1134, %v169, 0
    %v1166 = vsel %vm1134, %v170, 0
    %v1169 = vsel %vm1134, %v171, 0
    %v1172 = vsel %vm1134, %v172, 0
    %v1175 = vsel %vm1134, %v173, 0
    %v1178 = vsel %vm1134, %v174, 0
    %v1181 = vsel %vm1134, %v175, 0
    %v1184 = vsel %vm1134, %v176, 0
    %v1187 = vsel %vm1134, %v177, 0
    %v1190 = vsel %vm1134, %v178, 0
    %v1193 = vsel %vm1134, %v179, 0
    %v1196 = vsel %vm1134, %v180, 0
    %v1199 = vsel %vm1134, %v181, 0
    %v1202 = vsel %vm1134, %v182, 0
    %v1205 = vsel %vm1134, %v183, 0
    %v1208 = vsel %vm1134, %v184, 0
    %v1211 = vsel %vm1134, %v185, 0
    %v1214 = vsel %vm1134, %v186, 0
    %v1217 = vsel %vm1134, %v187, 0
    %v1220 = vsel %vm1134, %v188, 0
    %v1223 = vsel %vm1134, %v189, 0
    %v1226 = vsel %vm1134, %v190, 0
    %v1229 = vsel %vm1134, %v191, 0
    %v1232 = vsel %vm1134, %v192, 0
    %v1235 = vsel %vm1134, %v193, 0
    %v1238 = vsel %vm1134, %v194, 0
    %v1241 = vsel %vm1134, %v195, 0
    %v1244 = vsel %vm1134, %v196, 0
    %v1247 = vsel %vm1134, %v197, 0
    %v1250 = vsel %vm1134, %v198, 0
    %v1253 = vsel %vm1134, %v199, 0
    %v1256 = vsel %vm1134, %v200, 0
    %v1259 = vsel %vm1134, %v201, 0
    %v1262 = vsel %vm1134, %v202, 0
    %v1265 = vsel %vm1134, %v203, 0
    %v1268 = vsel %vm1134, %v204, 0
    %v1271 = vsel %vm1134, %v205, 0
    %v1274 = vsel %vm1134, %v206, 0
    %v1277 = vsel %vm1134, %v207, 0
    %v1280 = vsel %vm1134, %v208, 0
    %v1283 = vsel %vm1134, %v209, 0
    %v1286 = vsel %vm1134, %v210, 0
    %v1289 = vsel %vm1134, %v211, 0
    %v1292 = vsel %vm1134, %v212, 0
    %v1295 = vsel %vm1134, %v213, 0
    %v1298 = vsel %vm1134, %v214, 0
    %v1301 = vsel %vm1134, %v215, 0
    %v1304 = vsel %vm1134, %v216, 0
    %v1307 = vsel %vm1134, %v217, 0
    %v1310 = vsel %vm1134, %v218, 0
    %v1313 = vsel %vm1134, %v219, 0
    %v1316 = vsel %vm1134, %v220, 0
    %v1319 = vsel %vm1134, %v221, 0
    %v1322 = vsel %vm1134, %v222, 0
    %v1325 = vsel %vm1134, %v223, 0
    %1327 = vmatprep.subr.bf16.mxu0 0
    %1328 = vmatpush1.bf16.msra.mxu0 %v1132
    %1329 = vmatprep.subr.bf16.mxu0 0
    %1330 = vmatpush1.bf16.msra.mxu0 0
    %1331 = vmatprep.subr.bf16.mxu0 0
    %1332 = vmatpush1.bf16.msra.mxu0 0
    %1333 = vmatprep.subr.bf16.mxu0 0
    %1334 = vmatpush1.bf16.msra.mxu0 0
    %1335 = vmatprep.subr.bf16.mxu0 0
    %1336 = vmatpush1.bf16.msra.mxu0 0
    %1337 = vmatprep.subr.bf16.mxu0 0
    %1338 = vmatpush1.bf16.msra.mxu0 0
    %1339 = vmatprep.subr.bf16.mxu0 0
    %1340 = vmatpush1.bf16.msra.mxu0 0
    %1341 = vmatprep.subr.bf16.mxu0 0
    %1342 = vmatpush1.bf16.msra.mxu0 0
    %1343 = vmatprep.subr.bf16.mxu0 0
    %1344 = vmatpush1.bf16.msra.mxu0 0
    %1345 = vmatprep.subr.bf16.mxu0 0
    %1346 = vmatpush1.bf16.msra.mxu0 0
    %1347 = vmatprep.subr.bf16.mxu0 0
    %1348 = vmatpush1.bf16.msra.mxu0 0
    %1349 = vmatprep.subr.bf16.mxu0 0
    %1350 = vmatpush1.bf16.msra.mxu0 0
    %1351 = vmatprep.subr.bf16.mxu0 0
    %1352 = vmatpush1.bf16.msra.mxu0 0
    %1353 = vmatprep.subr.bf16.mxu0 0
    %1354 = vmatpush1.bf16.msra.mxu0 0
    %1355 = vmatprep.subr.bf16.mxu0 0
    %1356 = vmatpush1.bf16.msra.mxu0 0
    %1357 = vmatprep.subr.bf16.mxu0 0
    %1358 = vmatpush1.bf16.msra.mxu0 0
    %1359 = vmatprep.mubr.bf16.mxu0 0
    %1360 = vmatmul.mubr.bf16.gmra.mrb[0].mxu0 %v1136
    %v1361 = vpop.f32.mrb[0].mxu0
    %v1362 = vadd.f32 %v1000, %v1361
    %v1363 = vpop.f32.mrb[0].mxu0
    %v1364 = vpop.f32.mrb[0].mxu0
    %v1365 = vadd.f32 %v1001, %v1364
    %v1366 = vpop.f32.mrb[0].mxu0
    %1367 = vmatprep.mubr.bf16.mxu0 0
    %1368 = vmatmul.mubr.bf16.gmra.mrb[0].mxu0 %v1139
    %v1369 = vpop.f32.mrb[0].mxu0
    %v1370 = vadd.f32 %v1002, %v1369
    %v1371 = vpop.f32.mrb[0].mxu0
    %v1372 = vpop.f32.mrb[0].mxu0
    %v1373 = vadd.f32 %v1003, %v1372
    %v1374 = vpop.f32.mrb[0].mxu0
    %1375 = vmatprep.mubr.bf16.mxu0 0
    %1376 = vmatmul.mubr.bf16.gmra.mrb[0].mxu0 %v1142
    %v1377 = vpop.f32.mrb[0].mxu0
    %v1378 = vadd.f32 %v1004, %v1377
    %v1379 = vpop.f32.mrb[0].mxu0
    %v1380 = vpop.f32.mrb[0].mxu0
    %v1381 = vadd.f32 %v1005, %v1380
    %v1382 = vpop.f32.mrb[0].mxu0
    %1383 = vmatprep.mubr.bf16.mxu0 0
    %1384 = vmatmul.mubr.bf16.gmra.mrb[0].mxu0 %v1145
    %v1385 = vpop.f32.mrb[0].mxu0
    %v1386 = vadd.f32 %v1006, %v1385
    %v1387 = vpop.f32.mrb[0].mxu0
    %v1388 = vpop.f32.mrb[0].mxu0
    %v1389 = vadd.f32 %v1007, %v1388
    %v1390 = vpop.f32.mrb[0].mxu0
    %1391 = vmatprep.mubr.bf16.mxu0 0
    %1392 = vmatmul.mubr.bf16.gmra.mrb[0].mxu0 %v1148
    %v1393 = vpop.f32.mrb[0].mxu0
    %v1394 = vadd.f32 %v1008, %v1393
    %v1395 = vpop.f32.mrb[0].mxu0
    %v1396 = vpop.f32.mrb[0].mxu0
    %v1397 = vadd.f32 %v1009, %v1396
    %v1398 = vpop.f32.mrb[0].mxu0
    %1399 = vmatprep.mubr.bf16.mxu0 0
    %1400 = vmatmul.mubr.bf16.gmra.mrb[0].mxu0 %v1151
    %v1401 = vpop.f32.mrb[0].mxu0
    %v1402 = vadd.f32 %v1010, %v1401
    %v1403 = vpop.f32.mrb[0].mxu0
    %v1404 = vpop.f32.mrb[0].mxu0
    %v1405 = vadd.f32 %v1011, %v1404
    %v1406 = vpop.f32.mrb[0].mxu0
    %1407 = vmatprep.mubr.bf16.mxu0 0
    %1408 = vmatmul.mubr.bf16.gmra.mrb[0].mxu0 %v1154
    %v1409 = vpop.f32.mrb[0].mxu0
    %v1410 = vadd.f32 %v1012, %v1409
    %v1411 = vpop.f32.mrb[0].mxu0
    %v1412 = vpop.f32.mrb[0].mxu0
    %v1413 = vadd.f32 %v1013, %v1412
    %v1414 = vpop.f32.mrb[0].mxu0
    %1415 = vmatprep.mubr.bf16.mxu0 0
    %1416 = vmatmul.mubr.bf16.gmra.mrb[0].mxu0 %v1157
    %v1417 = vpop.f32.mrb[0].mxu0
    %v1418 = vadd.f32 %v1014, %v1417
    %v1419 = vpop.f32.mrb[0].mxu0
    %v1420 = vpop.f32.mrb[0].mxu0
    %v1421 = vadd.f32 %v1015, %v1420
    %v1422 = vpop.f32.mrb[0].mxu0
    %1423 = vmatprep.mubr.bf16.mxu0 0
    %1424 = vmatmul.mubr.bf16.gmra.mrb[0].mxu0 %v1160
    %v1425 = vpop.f32.mrb[0].mxu0
    %v1426 = vadd.f32 %v1016, %v1425
    %v1427 = vpop.f32.mrb[0].mxu0
    %v1428 = vpop.f32.mrb[0].mxu0
    %v1429 = vadd.f32 %v1017, %v1428
    %v1430 = vpop.f32.mrb[0].mxu0
    %1431 = vmatprep.mubr.bf16.mxu0 0
    %1432 = vmatmul.mubr.bf16.gmra.mrb[0].mxu0 %v1163
    %v1433 = vpop.f32.mrb[0].mxu0
    %v1434 = vadd.f32 %v1018, %v1433
    %v1435 = vpop.f32.mrb[0].mxu0
    %v1436 = vpop.f32.mrb[0].mxu0
    %v1437 = vadd.f32 %v1019, %v1436
    %v1438 = vpop.f32.mrb[0].mxu0
    %1439 = vmatprep.mubr.bf16.mxu0 0
    %1440 = vmatmul.mubr.bf16.gmra.mrb[0].mxu0 %v1166
    %v1441 = vpop.f32.mrb[0].mxu0
    %v1442 = vadd.f32 %v1020, %v1441
    %v1443 = vpop.f32.mrb[0].mxu0
    %v1444 = vpop.f32.mrb[0].mxu0
    %v1445 = vadd.f32 %v1021, %v1444
    %v1446 = vpop.f32.mrb[0].mxu0
    %1447 = vmatprep.mubr.bf16.mxu0 0
    %1448 = vmatmul.mubr.bf16.gmra.mrb[0].mxu0 %v1169
    %v1449 = vpop.f32.mrb[0].mxu0
    %v1450 = vadd.f32 %v1022, %v1449
    %v1451 = vpop.f32.mrb[0].mxu0
    %v1452 = vpop.f32.mrb[0].mxu0
    %v1453 = vadd.f32 %v1023, %v1452
    %v1454 = vpop.f32.mrb[0].mxu0
    %1455 = vmatprep.mubr.bf16.mxu0 0
    %1456 = vmatmul.mubr.bf16.gmra.mrb[0].mxu0 %v1172
    %v1457 = vpop.f32.mrb[0].mxu0
    %v1458 = vadd.f32 %v1024, %v1457
    %v1459 = vpop.f32.mrb[0].mxu0
    %v1460 = vpop.f32.mrb[0].mxu0
    %v1461 = vadd.f32 %v1025, %v1460
    %v1462 = vpop.f32.mrb[0].mxu0
    %1463 = vmatprep.mubr.bf16.mxu0 0
    %1464 = vmatmul.mubr.bf16.gmra.mrb[0].mxu0 %v1175
    %v1465 = vpop.f32.mrb[0].mxu0
    %v1466 = vadd.f32 %v1026, %v1465
    %v1467 = vpop.f32.mrb[0].mxu0
    %v1468 = vpop.f32.mrb[0].mxu0
    %v1469 = vadd.f32 %v1027, %v1468
    %v1470 = vpop.f32.mrb[0].mxu0
    %1471 = vmatprep.mubr.bf16.mxu0 0
    %1472 = vmatmul.mubr.bf16.gmra.mrb[0].mxu0 %v1178
    %v1473 = vpop.f32.mrb[0].mxu0
    %v1474 = vadd.f32 %v1028, %v1473
    %v1475 = vpop.f32.mrb[0].mxu0
    %v1476 = vpop.f32.mrb[0].mxu0
    %v1477 = vadd.f32 %v1029, %v1476
    %v1478 = vpop.f32.mrb[0].mxu0
    %1479 = vmatprep.mubr.bf16.mxu0 0
    %1480 = vmatmul.mubr.bf16.gmra.mrb[0].mxu0 %v1181
    %v1481 = vpop.f32.mrb[0].mxu0
    %v1482 = vadd.f32 %v1030, %v1481
    %v1483 = vpop.f32.mrb[0].mxu0
    %v1484 = vpop.f32.mrb[0].mxu0
    %v1485 = vadd.f32 %v1031, %v1484
    %v1486 = vpop.f32.mrb[0].mxu0
    %1487 = vmatprep.mubr.bf16.mxu0 0
    %1488 = vmatmul.mubr.bf16.gmra.mrb[0].mxu0 %v1184
    %v1489 = vpop.f32.mrb[0].mxu0
    %v1490 = vadd.f32 %v1032, %v1489
    %v1491 = vpop.f32.mrb[0].mxu0
    %v1492 = vpop.f32.mrb[0].mxu0
    %v1493 = vadd.f32 %v1033, %v1492
    %v1494 = vpop.f32.mrb[0].mxu0
    %1495 = vmatprep.mubr.bf16.mxu0 0
    %1496 = vmatmul.mubr.bf16.gmra.mrb[0].mxu0 %v1187
    %v1497 = vpop.f32.mrb[0].mxu0
    %v1498 = vadd.f32 %v1034, %v1497
    %v1499 = vpop.f32.mrb[0].mxu0
    %v1500 = vpop.f32.mrb[0].mxu0
    %v1501 = vadd.f32 %v1035, %v1500
    %v1502 = vpop.f32.mrb[0].mxu0
    %1503 = vmatprep.mubr.bf16.mxu0 0
    %1504 = vmatmul.mubr.bf16.gmra.mrb[0].mxu0 %v1190
    %v1505 = vpop.f32.mrb[0].mxu0
    %v1506 = vadd.f32 %v1036, %v1505
    %v1507 = vpop.f32.mrb[0].mxu0
    %v1508 = vpop.f32.mrb[0].mxu0
    %v1509 = vadd.f32 %v1037, %v1508
    %v1510 = vpop.f32.mrb[0].mxu0
    %1511 = vmatprep.mubr.bf16.mxu0 0
    %1512 = vmatmul.mubr.bf16.gmra.mrb[0].mxu0 %v1193
    %v1513 = vpop.f32.mrb[0].mxu0
    %v1514 = vadd.f32 %v1038, %v1513
    %v1515 = vpop.f32.mrb[0].mxu0
    %v1516 = vpop.f32.mrb[0].mxu0
    %v1517 = vadd.f32 %v1039, %v1516
    %v1518 = vpop.f32.mrb[0].mxu0
    %1519 = vmatprep.mubr.bf16.mxu0 0
    %1520 = vmatmul.mubr.bf16.gmra.mrb[0].mxu0 %v1196
    %v1521 = vpop.f32.mrb[0].mxu0
    %v1522 = vadd.f32 %v1040, %v1521
    %v1523 = vpop.f32.mrb[0].mxu0
    %v1524 = vpop.f32.mrb[0].mxu0
    %v1525 = vadd.f32 %v1041, %v1524
    %v1526 = vpop.f32.mrb[0].mxu0
    %1527 = vmatprep.mubr.bf16.mxu0 0
    %1528 = vmatmul.mubr.bf16.gmra.mrb[0].mxu0 %v1199
    %v1529 = vpop.f32.mrb[0].mxu0
    %v1530 = vadd.f32 %v1042, %v1529
    %v1531 = vpop.f32.mrb[0].mxu0
    %v1532 = vpop.f32.mrb[0].mxu0
    %v1533 = vadd.f32 %v1043, %v1532
    %v1534 = vpop.f32.mrb[0].mxu0
    %1535 = vmatprep.mubr.bf16.mxu0 0
    %1536 = vmatmul.mubr.bf16.gmra.mrb[0].mxu0 %v1202
    %v1537 = vpop.f32.mrb[0].mxu0
    %v1538 = vadd.f32 %v1044, %v1537
    %v1539 = vpop.f32.mrb[0].mxu0
    %v1540 = vpop.f32.mrb[0].mxu0
    %v1541 = vadd.f32 %v1045, %v1540
    %v1542 = vpop.f32.mrb[0].mxu0
    %1543 = vmatprep.mubr.bf16.mxu0 0
    %1544 = vmatmul.mubr.bf16.gmra.mrb[0].mxu0 %v1205
    %v1545 = vpop.f32.mrb[0].mxu0
    %v1546 = vadd.f32 %v1046, %v1545
    %v1547 = vpop.f32.mrb[0].mxu0
    %v1548 = vpop.f32.mrb[0].mxu0
    %v1549 = vadd.f32 %v1047, %v1548
    %v1550 = vpop.f32.mrb[0].mxu0
    %1551 = vmatprep.mubr.bf16.mxu0 0
    %1552 = vmatmul.mubr.bf16.gmra.mrb[0].mxu0 %v1208
    %v1553 = vpop.f32.mrb[0].mxu0
    %v1554 = vadd.f32 %v1048, %v1553
    %v1555 = vpop.f32.mrb[0].mxu0
    %v1556 = vpop.f32.mrb[0].mxu0
    %v1557 = vadd.f32 %v1049, %v1556
    %v1558 = vpop.f32.mrb[0].mxu0
    %1559 = vmatprep.mubr.bf16.mxu0 0
    %1560 = vmatmul.mubr.bf16.gmra.mrb[0].mxu0 %v1211
    %v1561 = vpop.f32.mrb[0].mxu0
    %v1562 = vadd.f32 %v1050, %v1561
    %v1563 = vpop.f32.mrb[0].mxu0
    %v1564 = vpop.f32.mrb[0].mxu0
    %v1565 = vadd.f32 %v1051, %v1564
    %v1566 = vpop.f32.mrb[0].mxu0
    %1567 = vmatprep.mubr.bf16.mxu0 0
    %1568 = vmatmul.mubr.bf16.gmra.mrb[0].mxu0 %v1214
    %v1569 = vpop.f32.mrb[0].mxu0
    %v1570 = vadd.f32 %v1052, %v1569
    %v1571 = vpop.f32.mrb[0].mxu0
    %v1572 = vpop.f32.mrb[0].mxu0
    %v1573 = vadd.f32 %v1053, %v1572
    %v1574 = vpop.f32.mrb[0].mxu0
    %1575 = vmatprep.mubr.bf16.mxu0 0
    %1576 = vmatmul.mubr.bf16.gmra.mrb[0].mxu0 %v1217
    %v1577 = vpop.f32.mrb[0].mxu0
    %v1578 = vadd.f32 %v1054, %v1577
    %v1579 = vpop.f32.mrb[0].mxu0
    %v1580 = vpop.f32.mrb[0].mxu0
    %v1581 = vadd.f32 %v1055, %v1580
    %v1582 = vpop.f32.mrb[0].mxu0
    %1583 = vmatprep.mubr.bf16.mxu0 0
    %1584 = vmatmul.mubr.bf16.gmra.mrb[0].mxu0 %v1220
    %v1585 = vpop.f32.mrb[0].mxu0
    %v1586 = vadd.f32 %v1056, %v1585
    %v1587 = vpop.f32.mrb[0].mxu0
    %v1588 = vpop.f32.mrb[0].mxu0
    %v1589 = vadd.f32 %v1057, %v1588
    %v1590 = vpop.f32.mrb[0].mxu0
    %1591 = vmatprep.mubr.bf16.mxu0 0
    %1592 = vmatmul.mubr.bf16.gmra.mrb[0].mxu0 %v1223
    %v1593 = vpop.f32.mrb[0].mxu0
    %v1594 = vadd.f32 %v1058, %v1593
    %v1595 = vpop.f32.mrb[0].mxu0
    %v1596 = vpop.f32.mrb[0].mxu0
    %v1597 = vadd.f32 %v1059, %v1596
    %v1598 = vpop.f32.mrb[0].mxu0
    %1599 = vmatprep.mubr.bf16.mxu0 0
    %1600 = vmatmul.mubr.bf16.gmra.mrb[0].mxu0 %v1226
    %v1601 = vpop.f32.mrb[0].mxu0
    %v1602 = vadd.f32 %v1060, %v1601
    %v1603 = vpop.f32.mrb[0].mxu0
    %v1604 = vpop.f32.mrb[0].mxu0
    %v1605 = vadd.f32 %v1061, %v1604
    %v1606 = vpop.f32.mrb[0].mxu0
    %1607 = vmatprep.mubr.bf16.mxu0 0
    %1608 = vmatmul.mubr.bf16.gmra.mrb[0].mxu0 %v1229
    %v1609 = vpop.f32.mrb[0].mxu0
    %v1610 = vadd.f32 %v1062, %v1609
    %v1611 = vpop.f32.mrb[0].mxu0
    %v1612 = vpop.f32.mrb[0].mxu0
    %v1613 = vadd.f32 %v1063, %v1612
    %v1614 = vpop.f32.mrb[0].mxu0
    %1615 = vmatprep.mubr.bf16.mxu0 0
    %1616 = vmatmul.mubr.bf16.gmra.mrb[0].mxu0 %v1232
    %v1617 = vpop.f32.mrb[0].mxu0
    %v1618 = vadd.f32 %v1064, %v1617
    %v1619 = vpop.f32.mrb[0].mxu0
    %v1620 = vpop.f32.mrb[0].mxu0
    %v1621 = vadd.f32 %v1065, %v1620
    %v1622 = vpop.f32.mrb[0].mxu0
    %1623 = vmatprep.mubr.bf16.mxu0 0
    %1624 = vmatmul.mubr.bf16.gmra.mrb[0].mxu0 %v1235
    %v1625 = vpop.f32.mrb[0].mxu0
    %v1626 = vadd.f32 %v1066, %v1625
    %v1627 = vpop.f32.mrb[0].mxu0
    %v1628 = vpop.f32.mrb[0].mxu0
    %v1629 = vadd.f32 %v1067, %v1628
    %v1630 = vpop.f32.mrb[0].mxu0
    %1631 = vmatprep.mubr.bf16.mxu0 0
    %1632 = vmatmul.mubr.bf16.gmra.mrb[0].mxu0 %v1238
    %v1633 = vpop.f32.mrb[0].mxu0
    %v1634 = vadd.f32 %v1068, %v1633
    %v1635 = vpop.f32.mrb[0].mxu0
    %v1636 = vpop.f32.mrb[0].mxu0
    %v1637 = vadd.f32 %v1069, %v1636
    %v1638 = vpop.f32.mrb[0].mxu0
    %1639 = vmatprep.mubr.bf16.mxu0 0
    %1640 = vmatmul.mubr.bf16.gmra.mrb[0].mxu0 %v1241
    %v1641 = vpop.f32.mrb[0].mxu0
    %v1642 = vadd.f32 %v1070, %v1641
    %v1643 = vpop.f32.mrb[0].mxu0
    %v1644 = vpop.f32.mrb[0].mxu0
    %v1645 = vadd.f32 %v1071, %v1644
    %v1646 = vpop.f32.mrb[0].mxu0
    %1647 = vmatprep.mubr.bf16.mxu0 0
    %1648 = vmatmul.mubr.bf16.gmra.mrb[0].mxu0 %v1244
    %v1649 = vpop.f32.mrb[0].mxu0
    %v1650 = vadd.f32 %v1072, %v1649
    %v1651 = vpop.f32.mrb[0].mxu0
    %v1652 = vpop.f32.mrb[0].mxu0
    %v1653 = vadd.f32 %v1073, %v1652
    %v1654 = vpop.f32.mrb[0].mxu0
    %1655 = vmatprep.mubr.bf16.mxu0 0
    %1656 = vmatmul.mubr.bf16.gmra.mrb[0].mxu0 %v1247
    %v1657 = vpop.f32.mrb[0].mxu0
    %v1658 = vadd.f32 %v1074, %v1657
    %v1659 = vpop.f32.mrb[0].mxu0
    %v1660 = vpop.f32.mrb[0].mxu0
    %v1661 = vadd.f32 %v1075, %v1660
    %v1662 = vpop.f32.mrb[0].mxu0
    %1663 = vmatprep.mubr.bf16.mxu0 0
    %1664 = vmatmul.mubr.bf16.gmra.mrb[0].mxu0 %v1250
    %v1665 = vpop.f32.mrb[0].mxu0
    %v1666 = vadd.f32 %v1076, %v1665
    %v1667 = vpop.f32.mrb[0].mxu0
    %v1668 = vpop.f32.mrb[0].mxu0
    %v1669 = vadd.f32 %v1077, %v1668
    %v1670 = vpop.f32.mrb[0].mxu0
    %1671 = vmatprep.mubr.bf16.mxu0 0
    %1672 = vmatmul.mubr.bf16.gmra.mrb[0].mxu0 %v1253
    %v1673 = vpop.f32.mrb[0].mxu0
    %v1674 = vadd.f32 %v1078, %v1673
    %v1675 = vpop.f32.mrb[0].mxu0
    %v1676 = vpop.f32.mrb[0].mxu0
    %v1677 = vadd.f32 %v1079, %v1676
    %v1678 = vpop.f32.mrb[0].mxu0
    %1679 = vmatprep.mubr.bf16.mxu0 0
    %1680 = vmatmul.mubr.bf16.gmra.mrb[0].mxu0 %v1256
    %v1681 = vpop.f32.mrb[0].mxu0
    %v1682 = vadd.f32 %v1080, %v1681
    %v1683 = vpop.f32.mrb[0].mxu0
    %v1684 = vpop.f32.mrb[0].mxu0
    %v1685 = vadd.f32 %v1081, %v1684
    %v1686 = vpop.f32.mrb[0].mxu0
    %1687 = vmatprep.mubr.bf16.mxu0 0
    %1688 = vmatmul.mubr.bf16.gmra.mrb[0].mxu0 %v1259
    %v1689 = vpop.f32.mrb[0].mxu0
    %v1690 = vadd.f32 %v1082, %v1689
    %v1691 = vpop.f32.mrb[0].mxu0
    %v1692 = vpop.f32.mrb[0].mxu0
    %v1693 = vadd.f32 %v1083, %v1692
    %v1694 = vpop.f32.mrb[0].mxu0
    %1695 = vmatprep.mubr.bf16.mxu0 0
    %1696 = vmatmul.mubr.bf16.gmra.mrb[0].mxu0 %v1262
    %v1697 = vpop.f32.mrb[0].mxu0
    %v1698 = vadd.f32 %v1084, %v1697
    %v1699 = vpop.f32.mrb[0].mxu0
    %v1700 = vpop.f32.mrb[0].mxu0
    %v1701 = vadd.f32 %v1085, %v1700
    %v1702 = vpop.f32.mrb[0].mxu0
    %1703 = vmatprep.mubr.bf16.mxu0 0
    %1704 = vmatmul.mubr.bf16.gmra.mrb[0].mxu0 %v1265
    %v1705 = vpop.f32.mrb[0].mxu0
    %v1706 = vadd.f32 %v1086, %v1705
    %v1707 = vpop.f32.mrb[0].mxu0
    %v1708 = vpop.f32.mrb[0].mxu0
    %v1709 = vadd.f32 %v1087, %v1708
    %v1710 = vpop.f32.mrb[0].mxu0
    %1711 = vmatprep.mubr.bf16.mxu0 0
    %1712 = vmatmul.mubr.bf16.gmra.mrb[0].mxu0 %v1268
    %v1713 = vpop.f32.mrb[0].mxu0
    %v1714 = vadd.f32 %v1088, %v1713
    %v1715 = vpop.f32.mrb[0].mxu0
    %v1716 = vpop.f32.mrb[0].mxu0
    %v1717 = vadd.f32 %v1089, %v1716
    %v1718 = vpop.f32.mrb[0].mxu0
    %1719 = vmatprep.mubr.bf16.mxu0 0
    %1720 = vmatmul.mubr.bf16.gmra.mrb[0].mxu0 %v1271
    %v1721 = vpop.f32.mrb[0].mxu0
    %v1722 = vadd.f32 %v1090, %v1721
    %v1723 = vpop.f32.mrb[0].mxu0
    %v1724 = vpop.f32.mrb[0].mxu0
    %v1725 = vadd.f32 %v1091, %v1724
    %v1726 = vpop.f32.mrb[0].mxu0
    %1727 = vmatprep.mubr.bf16.mxu0 0
    %1728 = vmatmul.mubr.bf16.gmra.mrb[0].mxu0 %v1274
    %v1729 = vpop.f32.mrb[0].mxu0
    %v1730 = vadd.f32 %v1092, %v1729
    %v1731 = vpop.f32.mrb[0].mxu0
    %v1732 = vpop.f32.mrb[0].mxu0
    %v1733 = vadd.f32 %v1093, %v1732
    %v1734 = vpop.f32.mrb[0].mxu0
    %1735 = vmatprep.mubr.bf16.mxu0 0
    %1736 = vmatmul.mubr.bf16.gmra.mrb[0].mxu0 %v1277
    %v1737 = vpop.f32.mrb[0].mxu0
    %v1738 = vadd.f32 %v1094, %v1737
    %v1739 = vpop.f32.mrb[0].mxu0
    %v1740 = vpop.f32.mrb[0].mxu0
    %v1741 = vadd.f32 %v1095, %v1740
    %v1742 = vpop.f32.mrb[0].mxu0
    %1743 = vmatprep.mubr.bf16.mxu0 0
    %1744 = vmatmul.mubr.bf16.gmra.mrb[0].mxu0 %v1280
    %v1745 = vpop.f32.mrb[0].mxu0
    %v1746 = vadd.f32 %v1096, %v1745
    %v1747 = vpop.f32.mrb[0].mxu0
    %v1748 = vpop.f32.mrb[0].mxu0
    %v1749 = vadd.f32 %v1097, %v1748
    %v1750 = vpop.f32.mrb[0].mxu0
    %1751 = vmatprep.mubr.bf16.mxu0 0
    %1752 = vmatmul.mubr.bf16.gmra.mrb[0].mxu0 %v1283
    %v1753 = vpop.f32.mrb[0].mxu0
    %v1754 = vadd.f32 %v1098, %v1753
    %v1755 = vpop.f32.mrb[0].mxu0
    %v1756 = vpop.f32.mrb[0].mxu0
    %v1757 = vadd.f32 %v1099, %v1756
    %v1758 = vpop.f32.mrb[0].mxu0
    %1759 = vmatprep.mubr.bf16.mxu0 0
    %1760 = vmatmul.mubr.bf16.gmra.mrb[0].mxu0 %v1286
    %v1761 = vpop.f32.mrb[0].mxu0
    %v1762 = vadd.f32 %v1100, %v1761
    %v1763 = vpop.f32.mrb[0].mxu0
    %v1764 = vpop.f32.mrb[0].mxu0
    %v1765 = vadd.f32 %v1101, %v1764
    %v1766 = vpop.f32.mrb[0].mxu0
    %1767 = vmatprep.mubr.bf16.mxu0 0
    %1768 = vmatmul.mubr.bf16.gmra.mrb[0].mxu0 %v1289
    %v1769 = vpop.f32.mrb[0].mxu0
    %v1770 = vadd.f32 %v1102, %v1769
    %v1771 = vpop.f32.mrb[0].mxu0
    %v1772 = vpop.f32.mrb[0].mxu0
    %v1773 = vadd.f32 %v1103, %v1772
    %v1774 = vpop.f32.mrb[0].mxu0
    %1775 = vmatprep.mubr.bf16.mxu0 0
    %1776 = vmatmul.mubr.bf16.gmra.mrb[0].mxu0 %v1292
    %v1777 = vpop.f32.mrb[0].mxu0
    %v1778 = vadd.f32 %v1104, %v1777
    %v1779 = vpop.f32.mrb[0].mxu0
    %v1780 = vpop.f32.mrb[0].mxu0
    %v1781 = vadd.f32 %v1105, %v1780
    %v1782 = vpop.f32.mrb[0].mxu0
    %1783 = vmatprep.mubr.bf16.mxu0 0
    %1784 = vmatmul.mubr.bf16.gmra.mrb[0].mxu0 %v1295
    %v1785 = vpop.f32.mrb[0].mxu0
    %v1786 = vadd.f32 %v1106, %v1785
    %v1787 = vpop.f32.mrb[0].mxu0
    %v1788 = vpop.f32.mrb[0].mxu0
    %v1789 = vadd.f32 %v1107, %v1788
    %v1790 = vpop.f32.mrb[0].mxu0
    %1791 = vmatprep.mubr.bf16.mxu0 0
    %1792 = vmatmul.mubr.bf16.gmra.mrb[0].mxu0 %v1298
    %v1793 = vpop.f32.mrb[0].mxu0
    %v1794 = vadd.f32 %v1108, %v1793
    %v1795 = vpop.f32.mrb[0].mxu0
    %v1796 = vpop.f32.mrb[0].mxu0
    %v1797 = vadd.f32 %v1109, %v1796
    %v1798 = vpop.f32.mrb[0].mxu0
    %1799 = vmatprep.mubr.bf16.mxu0 0
    %1800 = vmatmul.mubr.bf16.gmra.mrb[0].mxu0 %v1301
    %v1801 = vpop.f32.mrb[0].mxu0
    %v1802 = vadd.f32 %v1110, %v1801
    %v1803 = vpop.f32.mrb[0].mxu0
    %v1804 = vpop.f32.mrb[0].mxu0
    %v1805 = vadd.f32 %v1111, %v1804
    %v1806 = vpop.f32.mrb[0].mxu0
    %1807 = vmatprep.mubr.bf16.mxu0 0
    %1808 = vmatmul.mubr.bf16.gmra.mrb[0].mxu0 %v1304
    %v1809 = vpop.f32.mrb[0].mxu0
    %v1810 = vadd.f32 %v1112, %v1809
    %v1811 = vpop.f32.mrb[0].mxu0
    %v1812 = vpop.f32.mrb[0].mxu0
    %v1813 = vadd.f32 %v1113, %v1812
    %v1814 = vpop.f32.mrb[0].mxu0
    %1815 = vmatprep.mubr.bf16.mxu0 0
    %1816 = vmatmul.mubr.bf16.gmra.mrb[0].mxu0 %v1307
    %v1817 = vpop.f32.mrb[0].mxu0
    %v1818 = vadd.f32 %v1114, %v1817
    %v1819 = vpop.f32.mrb[0].mxu0
    %v1820 = vpop.f32.mrb[0].mxu0
    %v1821 = vadd.f32 %v1115, %v1820
    %v1822 = vpop.f32.mrb[0].mxu0
    %1823 = vmatprep.mubr.bf16.mxu0 0
    %1824 = vmatmul.mubr.bf16.gmra.mrb[0].mxu0 %v1310
    %v1825 = vpop.f32.mrb[0].mxu0
    %v1826 = vadd.f32 %v1116, %v1825
    %v1827 = vpop.f32.mrb[0].mxu0
    %v1828 = vpop.f32.mrb[0].mxu0
    %v1829 = vadd.f32 %v1117, %v1828
    %v1830 = vpop.f32.mrb[0].mxu0
    %1831 = vmatprep.mubr.bf16.mxu0 0
    %1832 = vmatmul.mubr.bf16.gmra.mrb[0].mxu0 %v1313
    %v1833 = vpop.f32.mrb[0].mxu0
    %v1834 = vadd.f32 %v1118, %v1833
    %v1835 = vpop.f32.mrb[0].mxu0
    %v1836 = vpop.f32.mrb[0].mxu0
    %v1837 = vadd.f32 %v1119, %v1836
    %v1838 = vpop.f32.mrb[0].mxu0
    %1839 = vmatprep.mubr.bf16.mxu0 0
    %1840 = vmatmul.mubr.bf16.gmra.mrb[0].mxu0 %v1316
    %v1841 = vpop.f32.mrb[0].mxu0
    %v1842 = vadd.f32 %v1120, %v1841
    %v1843 = vpop.f32.mrb[0].mxu0
    %v1844 = vpop.f32.mrb[0].mxu0
    %v1845 = vadd.f32 %v1121, %v1844
    %v1846 = vpop.f32.mrb[0].mxu0
    %1847 = vmatprep.mubr.bf16.mxu0 0
    %1848 = vmatmul.mubr.bf16.gmra.mrb[0].mxu0 %v1319
    %v1849 = vpop.f32.mrb[0].mxu0
    %v1850 = vadd.f32 %v1122, %v1849
    %v1851 = vpop.f32.mrb[0].mxu0
    %v1852 = vpop.f32.mrb[0].mxu0
    %v1853 = vadd.f32 %v1123, %v1852
    %v1854 = vpop.f32.mrb[0].mxu0
    %1855 = vmatprep.mubr.bf16.mxu0 0
    %1856 = vmatmul.mubr.bf16.gmra.mrb[0].mxu0 %v1322
    %v1857 = vpop.f32.mrb[0].mxu0
    %v1858 = vadd.f32 %v1124, %v1857
    %v1859 = vpop.f32.mrb[0].mxu0
    %v1860 = vpop.f32.mrb[0].mxu0
    %v1861 = vadd.f32 %v1125, %v1860
    %v1862 = vpop.f32.mrb[0].mxu0
    %1863 = vmatprep.mubr.bf16.mxu0 0
    %1864 = vmatmul.mubr.bf16.gmra.mrb[0].mxu0 %v1325
    %v1865 = vpop.f32.mrb[0].mxu0
    %v1866 = vadd.f32 %v1126, %v1865
    %v1867 = vpop.f32.mrb[0].mxu0
    %v1868 = vpop.f32.mrb[0].mxu0
    %v1869 = vadd.f32 %v1127, %v1868
    %v1870 = vpop.f32.mrb[0].mxu0
    %1871 = vdwg.mxu0
    %1872 = vset.pattern.permute.xlu0 1
    %1873 = vperm.xlu0 %1872, %v226
    %v1874 = vpop.permute.xlu0 %1873
    %1876 = vset.pattern.permute.xlu0 1
    %1877 = vperm.xlu0 %1876, %v227
    %v1878 = vpop.permute.xlu0 %1877
    %1880 = vset.pattern.permute.xlu0 1
    %1881 = vperm.xlu0 %1880, %v228
    %v1882 = vpop.permute.xlu0 %1881
    %1884 = vset.pattern.permute.xlu0 1
    %1885 = vperm.xlu0 %1884, %v229
    %v1886 = vpop.permute.xlu0 %1885
    %1888 = vset.pattern.permute.xlu0 1
    %1889 = vperm.xlu0 %1888, %v230
    %v1890 = vpop.permute.xlu0 %1889
    %1892 = vset.pattern.permute.xlu0 1
    %1893 = vperm.xlu0 %1892, %v231
    %v1894 = vpop.permute.xlu0 %1893
    %1896 = vset.pattern.permute.xlu0 1
    %1897 = vperm.xlu0 %1896, %v232
    %v1898 = vpop.permute.xlu0 %1897
    %1900 = vset.pattern.permute.xlu0 1
    %1901 = vperm.xlu0 %1900, %v233
    %v1902 = vpop.permute.xlu0 %1901
    %1904 = vset.pattern.permute.xlu0 1
    %1905 = vperm.xlu0 %1904, %v234
    %v1906 = vpop.permute.xlu0 %1905
    %1908 = vset.pattern.permute.xlu0 1
    %1909 = vperm.xlu0 %1908, %v235
    %v1910 = vpop.permute.xlu0 %1909
    %1912 = vset.pattern.permute.xlu0 1
    %1913 = vperm.xlu0 %1912, %v236
    %v1914 = vpop.permute.xlu0 %1913
    %1916 = vset.pattern.permute.xlu0 1
    %1917 = vperm.xlu0 %1916, %v237
    %v1918 = vpop.permute.xlu0 %1917
    %1920 = vset.pattern.permute.xlu0 1
    %1921 = vperm.xlu0 %1920, %v238
    %v1922 = vpop.permute.xlu0 %1921
    %1924 = vset.pattern.permute.xlu0 1
    %1925 = vperm.xlu0 %1924, %v239
    %v1926 = vpop.permute.xlu0 %1925
    %1928 = vset.pattern.permute.xlu0 1
    %1929 = vperm.xlu0 %1928, %v240
    %v1930 = vpop.permute.xlu0 %1929
    %1932 = vset.pattern.permute.xlu0 1
    %1933 = vperm.xlu0 %1932, %v241
    %v1934 = vpop.permute.xlu0 %1933
    %1936 = vset.pattern.permute.xlu0 1
    %1937 = vperm.xlu0 %1936, %v242
    %v1938 = vpop.permute.xlu0 %1937
    %1940 = vset.pattern.permute.xlu0 1
    %1941 = vperm.xlu0 %1940, %v243
    %v1942 = vpop.permute.xlu0 %1941
    %1944 = vset.pattern.permute.xlu0 1
    %1945 = vperm.xlu0 %1944, %v244
    %v1946 = vpop.permute.xlu0 %1945
    %1948 = vset.pattern.permute.xlu0 1
    %1949 = vperm.xlu0 %1948, %v245
    %v1950 = vpop.permute.xlu0 %1949
    %1952 = vset.pattern.permute.xlu0 1
    %1953 = vperm.xlu0 %1952, %v246
    %v1954 = vpop.permute.xlu0 %1953
    %1956 = vset.pattern.permute.xlu0 1
    %1957 = vperm.xlu0 %1956, %v247
    %v1958 = vpop.permute.xlu0 %1957
    %1960 = vset.pattern.permute.xlu0 1
    %1961 = vperm.xlu0 %1960, %v248
    %v1962 = vpop.permute.xlu0 %1961
    %1964 = vset.pattern.permute.xlu0 1
    %1965 = vperm.xlu0 %1964, %v249
    %v1966 = vpop.permute.xlu0 %1965
    %1968 = vset.pattern.permute.xlu0 1
    %1969 = vperm.xlu0 %1968, %v250
    %v1970 = vpop.permute.xlu0 %1969
    %1972 = vset.pattern.permute.xlu0 1
    %1973 = vperm.xlu0 %1972, %v251
    %v1974 = vpop.permute.xlu0 %1973
    %1976 = vset.pattern.permute.xlu0 1
    %1977 = vperm.xlu0 %1976, %v252
    %v1978 = vpop.permute.xlu0 %1977
    %1980 = vset.pattern.permute.xlu0 1
    %1981 = vperm.xlu0 %1980, %v253
    %v1982 = vpop.permute.xlu0 %1981
    %1984 = vset.pattern.permute.xlu0 1
    %1985 = vperm.xlu0 %1984, %v254
    %v1986 = vpop.permute.xlu0 %1985
    %1988 = vset.pattern.permute.xlu0 1
    %1989 = vperm.xlu0 %1988, %v255
    %v1990 = vpop.permute.xlu0 %1989
    %1992 = vset.pattern.permute.xlu0 1
    %1993 = vperm.xlu0 %1992, %v256
    %v1994 = vpop.permute.xlu0 %1993
    %1996 = vset.pattern.permute.xlu0 1
    %1997 = vperm.xlu0 %1996, %v257
    %v1998 = vpop.permute.xlu0 %1997
    %2000 = vset.pattern.permute.xlu0 1
    %2001 = vperm.xlu0 %2000, %v258
    %v2002 = vpop.permute.xlu0 %2001
    %2004 = vset.pattern.permute.xlu0 1
    %2005 = vperm.xlu0 %2004, %v259
    %v2006 = vpop.permute.xlu0 %2005
    %2008 = vset.pattern.permute.xlu0 1
    %2009 = vperm.xlu0 %2008, %v260
    %v2010 = vpop.permute.xlu0 %2009
    %2012 = vset.pattern.permute.xlu0 1
    %2013 = vperm.xlu0 %2012, %v261
    %v2014 = vpop.permute.xlu0 %2013
    %2016 = vset.pattern.permute.xlu0 1
    %2017 = vperm.xlu0 %2016, %v262
    %v2018 = vpop.permute.xlu0 %2017
    %2020 = vset.pattern.permute.xlu0 1
    %2021 = vperm.xlu0 %2020, %v263
    %v2022 = vpop.permute.xlu0 %2021
    %2024 = vset.pattern.permute.xlu0 1
    %2025 = vperm.xlu0 %2024, %v264
    %v2026 = vpop.permute.xlu0 %2025
    %2028 = vset.pattern.permute.xlu0 1
    %2029 = vperm.xlu0 %2028, %v265
    %v2030 = vpop.permute.xlu0 %2029
    %2032 = vset.pattern.permute.xlu0 1
    %2033 = vperm.xlu0 %2032, %v266
    %v2034 = vpop.permute.xlu0 %2033
    %2036 = vset.pattern.permute.xlu0 1
    %2037 = vperm.xlu0 %2036, %v267
    %v2038 = vpop.permute.xlu0 %2037
    %2040 = vset.pattern.permute.xlu0 1
    %2041 = vperm.xlu0 %2040, %v268
    %v2042 = vpop.permute.xlu0 %2041
    %2044 = vset.pattern.permute.xlu0 1
    %2045 = vperm.xlu0 %2044, %v269
    %v2046 = vpop.permute.xlu0 %2045
    %2048 = vset.pattern.permute.xlu0 1
    %2049 = vperm.xlu0 %2048, %v270
    %v2050 = vpop.permute.xlu0 %2049
    %2052 = vset.pattern.permute.xlu0 1
    %2053 = vperm.xlu0 %2052, %v271
    %v2054 = vpop.permute.xlu0 %2053
    %2056 = vset.pattern.permute.xlu0 1
    %2057 = vperm.xlu0 %2056, %v272
    %v2058 = vpop.permute.xlu0 %2057
    %2060 = vset.pattern.permute.xlu0 1
    %2061 = vperm.xlu0 %2060, %v273
    %v2062 = vpop.permute.xlu0 %2061
    %2064 = vset.pattern.permute.xlu0 1
    %2065 = vperm.xlu0 %2064, %v274
    %v2066 = vpop.permute.xlu0 %2065
    %2068 = vset.pattern.permute.xlu0 1
    %2069 = vperm.xlu0 %2068, %v275
    %v2070 = vpop.permute.xlu0 %2069
    %2072 = vset.pattern.permute.xlu0 1
    %2073 = vperm.xlu0 %2072, %v276
    %v2074 = vpop.permute.xlu0 %2073
    %2076 = vset.pattern.permute.xlu0 1
    %2077 = vperm.xlu0 %2076, %v277
    %v2078 = vpop.permute.xlu0 %2077
    %2080 = vset.pattern.permute.xlu0 1
    %2081 = vperm.xlu0 %2080, %v278
    %v2082 = vpop.permute.xlu0 %2081
    %2084 = vset.pattern.permute.xlu0 1
    %2085 = vperm.xlu0 %2084, %v279
    %v2086 = vpop.permute.xlu0 %2085
    %2088 = vset.pattern.permute.xlu0 1
    %2089 = vperm.xlu0 %2088, %v280
    %v2090 = vpop.permute.xlu0 %2089
    %2092 = vset.pattern.permute.xlu0 1
    %2093 = vperm.xlu0 %2092, %v281
    %v2094 = vpop.permute.xlu0 %2093
    %2096 = vset.pattern.permute.xlu0 1
    %2097 = vperm.xlu0 %2096, %v282
    %v2098 = vpop.permute.xlu0 %2097
    %2100 = vset.pattern.permute.xlu0 1
    %2101 = vperm.xlu0 %2100, %v283
    %v2102 = vpop.permute.xlu0 %2101
    %2104 = vset.pattern.permute.xlu0 1
    %2105 = vperm.xlu0 %2104, %v284
    %v2106 = vpop.permute.xlu0 %2105
    %2108 = vset.pattern.permute.xlu0 1
    %2109 = vperm.xlu0 %2108, %v285
    %v2110 = vpop.permute.xlu0 %2109
    %2112 = vset.pattern.permute.xlu0 1
    %2113 = vperm.xlu0 %2112, %v286
    %v2114 = vpop.permute.xlu0 %2113
    %2116 = vset.pattern.permute.xlu0 1
    %2117 = vperm.xlu0 %2116, %v287
    %v2118 = vpop.permute.xlu0 %2117
    %2120 = vset.pattern.permute.xlu0 1
    %2121 = vperm.xlu0 %2120, %v288
    %v2122 = vpop.permute.xlu0 %2121
    %2124 = vset.pattern.permute.xlu0 1
    %2125 = vperm.xlu0 %2124, %v289
    %v2126 = vpop.permute.xlu0 %2125
    %2128 = vset.pattern.permute.xlu0 1
    %2129 = vperm.xlu0 %2128, %v290
    %v2130 = vpop.permute.xlu0 %2129
    %2132 = vset.pattern.permute.xlu0 1
    %2133 = vperm.xlu0 %2132, %v291
    %v2134 = vpop.permute.xlu0 %2133
    %2136 = vset.pattern.permute.xlu0 1
    %2137 = vperm.xlu0 %2136, %v292
    %v2138 = vpop.permute.xlu0 %2137
    %2140 = vset.pattern.permute.xlu0 1
    %2141 = vperm.xlu0 %2140, %v293
    %v2142 = vpop.permute.xlu0 %2141
    %2144 = vset.pattern.permute.xlu0 1
    %2145 = vperm.xlu0 %2144, %v294
    %v2146 = vpop.permute.xlu0 %2145
    %2148 = vset.pattern.permute.xlu0 1
    %2149 = vperm.xlu0 %2148, %v295
    %v2150 = vpop.permute.xlu0 %2149
    %2152 = vset.pattern.permute.xlu0 1
    %2153 = vperm.xlu0 %2152, %v296
    %v2154 = vpop.permute.xlu0 %2153
    %2156 = vset.pattern.permute.xlu0 1
    %2157 = vperm.xlu0 %2156, %v297
    %v2158 = vpop.permute.xlu0 %2157
    %2160 = vset.pattern.permute.xlu0 1
    %2161 = vperm.xlu0 %2160, %v298
    %v2162 = vpop.permute.xlu0 %2161
    %2164 = vset.pattern.permute.xlu0 1
    %2165 = vperm.xlu0 %2164, %v299
    %v2166 = vpop.permute.xlu0 %2165
    %2168 = vset.pattern.permute.xlu0 1
    %2169 = vperm.xlu0 %2168, %v300
    %v2170 = vpop.permute.xlu0 %2169
    %2172 = vset.pattern.permute.xlu0 1
    %2173 = vperm.xlu0 %2172, %v301
    %v2174 = vpop.permute.xlu0 %2173
    %2176 = vset.pattern.permute.xlu0 1
    %2177 = vperm.xlu0 %2176, %v302
    %v2178 = vpop.permute.xlu0 %2177
    %2180 = vset.pattern.permute.xlu0 1
    %2181 = vperm.xlu0 %2180, %v303
    %v2182 = vpop.permute.xlu0 %2181
    %2184 = vset.pattern.permute.xlu0 1
    %2185 = vperm.xlu0 %2184, %v304
    %v2186 = vpop.permute.xlu0 %2185
    %2188 = vset.pattern.permute.xlu0 1
    %2189 = vperm.xlu0 %2188, %v305
    %v2190 = vpop.permute.xlu0 %2189
    %2192 = vset.pattern.permute.xlu0 1
    %2193 = vperm.xlu0 %2192, %v306
    %v2194 = vpop.permute.xlu0 %2193
    %2196 = vset.pattern.permute.xlu0 1
    %2197 = vperm.xlu0 %2196, %v307
    %v2198 = vpop.permute.xlu0 %2197
    %2200 = vset.pattern.permute.xlu0 1
    %2201 = vperm.xlu0 %2200, %v308
    %v2202 = vpop.permute.xlu0 %2201
    %2204 = vset.pattern.permute.xlu0 1
    %2205 = vperm.xlu0 %2204, %v309
    %v2206 = vpop.permute.xlu0 %2205
    %2208 = vset.pattern.permute.xlu0 1
    %2209 = vperm.xlu0 %2208, %v310
    %v2210 = vpop.permute.xlu0 %2209
    %2212 = vset.pattern.permute.xlu0 1
    %2213 = vperm.xlu0 %2212, %v311
    %v2214 = vpop.permute.xlu0 %2213
    %2216 = vset.pattern.permute.xlu0 1
    %2217 = vperm.xlu0 %2216, %v312
    %v2218 = vpop.permute.xlu0 %2217
    %2220 = vset.pattern.permute.xlu0 1
    %2221 = vperm.xlu0 %2220, %v313
    %v2222 = vpop.permute.xlu0 %2221
    %2224 = vset.pattern.permute.xlu0 1
    %2225 = vperm.xlu0 %2224, %v314
    %v2226 = vpop.permute.xlu0 %2225
    %2228 = vset.pattern.permute.xlu0 1
    %2229 = vperm.xlu0 %2228, %v315
    %v2230 = vpop.permute.xlu0 %2229
    %2232 = vset.pattern.permute.xlu0 1
    %2233 = vperm.xlu0 %2232, %v316
    %v2234 = vpop.permute.xlu0 %2233
    %2236 = vset.pattern.permute.xlu0 1
    %2237 = vperm.xlu0 %2236, %v317
    %v2238 = vpop.permute.xlu0 %2237
    %2240 = vset.pattern.permute.xlu0 1
    %2241 = vperm.xlu0 %2240, %v318
    %v2242 = vpop.permute.xlu0 %2241
    %2244 = vset.pattern.permute.xlu0 1
    %2245 = vperm.xlu0 %2244, %v319
    %v2246 = vpop.permute.xlu0 %2245
    %2248 = vset.pattern.permute.xlu0 1
    %2249 = vperm.xlu0 %2248, %v320
    %v2250 = vpop.permute.xlu0 %2249
    %2252 = vset.pattern.permute.xlu0 1
    %2253 = vperm.xlu0 %2252, %v321
    %v2254 = vpop.permute.xlu0 %2253
    %2256 = vset.pattern.permute.xlu0 1
    %2257 = vperm.xlu0 %2256, %v322
    %v2258 = vpop.permute.xlu0 %2257
    %2260 = vset.pattern.permute.xlu0 1
    %2261 = vperm.xlu0 %2260, %v323
    %v2262 = vpop.permute.xlu0 %2261
    %2264 = vset.pattern.permute.xlu0 1
    %2265 = vperm.xlu0 %2264, %v324
    %v2266 = vpop.permute.xlu0 %2265
    %2268 = vset.pattern.permute.xlu0 1
    %2269 = vperm.xlu0 %2268, %v325
    %v2270 = vpop.permute.xlu0 %2269
    %2272 = vset.pattern.permute.xlu0 1
    %2273 = vperm.xlu0 %2272, %v326
    %v2274 = vpop.permute.xlu0 %2273
    %2276 = vset.pattern.permute.xlu0 1
    %2277 = vperm.xlu0 %2276, %v327
    %v2278 = vpop.permute.xlu0 %2277
    %2280 = vset.pattern.permute.xlu0 1
    %2281 = vperm.xlu0 %2280, %v328
    %v2282 = vpop.permute.xlu0 %2281
    %2284 = vset.pattern.permute.xlu0 1
    %2285 = vperm.xlu0 %2284, %v329
    %v2286 = vpop.permute.xlu0 %2285
    %2288 = vset.pattern.permute.xlu0 1
    %2289 = vperm.xlu0 %2288, %v330
    %v2290 = vpop.permute.xlu0 %2289
    %2292 = vset.pattern.permute.xlu0 1
    %2293 = vperm.xlu0 %2292, %v331
    %v2294 = vpop.permute.xlu0 %2293
    %2296 = vset.pattern.permute.xlu0 1
    %2297 = vperm.xlu0 %2296, %v332
    %v2298 = vpop.permute.xlu0 %2297
    %2300 = vset.pattern.permute.xlu0 1
    %2301 = vperm.xlu0 %2300, %v333
    %v2302 = vpop.permute.xlu0 %2301
    %2304 = vset.pattern.permute.xlu0 1
    %2305 = vperm.xlu0 %2304, %v334
    %v2306 = vpop.permute.xlu0 %2305
    %2308 = vset.pattern.permute.xlu0 1
    %2309 = vperm.xlu0 %2308, %v335
    %v2310 = vpop.permute.xlu0 %2309
    %2312 = vset.pattern.permute.xlu0 1
    %2313 = vperm.xlu0 %2312, %v336
    %v2314 = vpop.permute.xlu0 %2313
    %2316 = vset.pattern.permute.xlu0 1
    %2317 = vperm.xlu0 %2316, %v337
    %v2318 = vpop.permute.xlu0 %2317
    %2320 = vset.pattern.permute.xlu0 1
    %2321 = vperm.xlu0 %2320, %v338
    %v2322 = vpop.permute.xlu0 %2321
    %2324 = vset.pattern.permute.xlu0 1
    %2325 = vperm.xlu0 %2324, %v339
    %v2326 = vpop.permute.xlu0 %2325
    %2328 = vset.pattern.permute.xlu0 1
    %2329 = vperm.xlu0 %2328, %v340
    %v2330 = vpop.permute.xlu0 %2329
    %2332 = vset.pattern.permute.xlu0 1
    %2333 = vperm.xlu0 %2332, %v341
    %v2334 = vpop.permute.xlu0 %2333
    %2336 = vset.pattern.permute.xlu0 1
    %2337 = vperm.xlu0 %2336, %v342
    %v2338 = vpop.permute.xlu0 %2337
    %2340 = vset.pattern.permute.xlu0 1
    %2341 = vperm.xlu0 %2340, %v343
    %v2342 = vpop.permute.xlu0 %2341
    %2344 = vset.pattern.permute.xlu0 1
    %2345 = vperm.xlu0 %2344, %v344
    %v2346 = vpop.permute.xlu0 %2345
    %2348 = vset.pattern.permute.xlu0 1
    %2349 = vperm.xlu0 %2348, %v345
    %v2350 = vpop.permute.xlu0 %2349
    %2352 = vset.pattern.permute.xlu0 1
    %2353 = vperm.xlu0 %2352, %v346
    %v2354 = vpop.permute.xlu0 %2353
    %2356 = vset.pattern.permute.xlu0 1
    %2357 = vperm.xlu0 %2356, %v347
    %v2358 = vpop.permute.xlu0 %2357
    %2360 = vset.pattern.permute.xlu0 1
    %2361 = vperm.xlu0 %2360, %v348
    %v2362 = vpop.permute.xlu0 %2361
    %2364 = vset.pattern.permute.xlu0 1
    %2365 = vperm.xlu0 %2364, %v349
    %v2366 = vpop.permute.xlu0 %2365
    %2368 = vset.pattern.permute.xlu0 1
    %2369 = vperm.xlu0 %2368, %v350
    %v2370 = vpop.permute.xlu0 %2369
    %2372 = vset.pattern.permute.xlu0 1
    %2373 = vperm.xlu0 %2372, %v351
    %v2374 = vpop.permute.xlu0 %2373
    %2376 = vset.pattern.permute.xlu0 1
    %2377 = vperm.xlu0 %2376, %v352
    %v2378 = vpop.permute.xlu0 %2377
    %2380 = vset.pattern.permute.xlu0 1
    %2381 = vperm.xlu0 %2380, %v353
    %v2382 = vpop.permute.xlu0 %2381
    %v2384 = vlaneseq
    %v2385 = vshrl.u32 %v2384, 7
    %v2386 = vsub.s32 1, %v2385
    %v2387 = vrot.slane %v355, %v2386
    %v2388 = vmul.f32 %v1874, %v2387
    %v2389 = vmul.f32 %v1878, %v2387
    %v2390 = vmul.f32 %v1882, %v2387
    %v2391 = vmul.f32 %v1886, %v2387
    %v2392 = vmul.f32 %v1890, %v2387
    %v2393 = vmul.f32 %v1894, %v2387
    %v2394 = vmul.f32 %v1898, %v2387
    %v2395 = vmul.f32 %v1902, %v2387
    %v2396 = vmul.f32 %v1906, %v2387
    %v2397 = vmul.f32 %v1910, %v2387
    %v2398 = vmul.f32 %v1914, %v2387
    %v2399 = vmul.f32 %v1918, %v2387
    %v2400 = vmul.f32 %v1922, %v2387
    %v2401 = vmul.f32 %v1926, %v2387
    %v2402 = vmul.f32 %v1930, %v2387
    %v2403 = vmul.f32 %v1934, %v2387
    %v2404 = vmul.f32 %v1938, %v2387
    %v2405 = vmul.f32 %v1942, %v2387
    %v2406 = vmul.f32 %v1946, %v2387
    %v2407 = vmul.f32 %v1950, %v2387
    %v2408 = vmul.f32 %v1954, %v2387
    %v2409 = vmul.f32 %v1958, %v2387
    %v2410 = vmul.f32 %v1962, %v2387
    %v2411 = vmul.f32 %v1966, %v2387
    %v2412 = vmul.f32 %v1970, %v2387
    %v2413 = vmul.f32 %v1974, %v2387
    %v2414 = vmul.f32 %v1978, %v2387
    %v2415 = vmul.f32 %v1982, %v2387
    %v2416 = vmul.f32 %v1986, %v2387
    %v2417 = vmul.f32 %v1990, %v2387
    %v2418 = vmul.f32 %v1994, %v2387
    %v2419 = vmul.f32 %v1998, %v2387
    %v2420 = vmul.f32 %v2002, %v2387
    %v2421 = vmul.f32 %v2006, %v2387
    %v2422 = vmul.f32 %v2010, %v2387
    %v2423 = vmul.f32 %v2014, %v2387
    %v2424 = vmul.f32 %v2018, %v2387
    %v2425 = vmul.f32 %v2022, %v2387
    %v2426 = vmul.f32 %v2026, %v2387
    %v2427 = vmul.f32 %v2030, %v2387
    %v2428 = vmul.f32 %v2034, %v2387
    %v2429 = vmul.f32 %v2038, %v2387
    %v2430 = vmul.f32 %v2042, %v2387
    %v2431 = vmul.f32 %v2046, %v2387
    %v2432 = vmul.f32 %v2050, %v2387
    %v2433 = vmul.f32 %v2054, %v2387
    %v2434 = vmul.f32 %v2058, %v2387
    %v2435 = vmul.f32 %v2062, %v2387
    %v2436 = vmul.f32 %v2066, %v2387
    %v2437 = vmul.f32 %v2070, %v2387
    %v2438 = vmul.f32 %v2074, %v2387
    %v2439 = vmul.f32 %v2078, %v2387
    %v2440 = vmul.f32 %v2082, %v2387
    %v2441 = vmul.f32 %v2086, %v2387
    %v2442 = vmul.f32 %v2090, %v2387
    %v2443 = vmul.f32 %v2094, %v2387
    %v2444 = vmul.f32 %v2098, %v2387
    %v2445 = vmul.f32 %v2102, %v2387
    %v2446 = vmul.f32 %v2106, %v2387
    %v2447 = vmul.f32 %v2110, %v2387
    %v2448 = vmul.f32 %v2114, %v2387
    %v2449 = vmul.f32 %v2118, %v2387
    %v2450 = vmul.f32 %v2122, %v2387
    %v2451 = vmul.f32 %v2126, %v2387
    %v2452 = vmul.f32 %v2130, %v2387
    %v2453 = vmul.f32 %v2134, %v2387
    %v2454 = vmul.f32 %v2138, %v2387
    %v2455 = vmul.f32 %v2142, %v2387
    %v2456 = vmul.f32 %v2146, %v2387
    %v2457 = vmul.f32 %v2150, %v2387
    %v2458 = vmul.f32 %v2154, %v2387
    %v2459 = vmul.f32 %v2158, %v2387
    %v2460 = vmul.f32 %v2162, %v2387
    %v2461 = vmul.f32 %v2166, %v2387
    %v2462 = vmul.f32 %v2170, %v2387
    %v2463 = vmul.f32 %v2174, %v2387
    %v2464 = vmul.f32 %v2178, %v2387
    %v2465 = vmul.f32 %v2182, %v2387
    %v2466 = vmul.f32 %v2186, %v2387
    %v2467 = vmul.f32 %v2190, %v2387
    %v2468 = vmul.f32 %v2194, %v2387
    %v2469 = vmul.f32 %v2198, %v2387
    %v2470 = vmul.f32 %v2202, %v2387
    %v2471 = vmul.f32 %v2206, %v2387
    %v2472 = vmul.f32 %v2210, %v2387
    %v2473 = vmul.f32 %v2214, %v2387
    %v2474 = vmul.f32 %v2218, %v2387
    %v2475 = vmul.f32 %v2222, %v2387
    %v2476 = vmul.f32 %v2226, %v2387
    %v2477 = vmul.f32 %v2230, %v2387
    %v2478 = vmul.f32 %v2234, %v2387
    %v2479 = vmul.f32 %v2238, %v2387
    %v2480 = vmul.f32 %v2242, %v2387
    %v2481 = vmul.f32 %v2246, %v2387
    %v2482 = vmul.f32 %v2250, %v2387
    %v2483 = vmul.f32 %v2254, %v2387
    %v2484 = vmul.f32 %v2258, %v2387
    %v2485 = vmul.f32 %v2262, %v2387
    %v2486 = vmul.f32 %v2266, %v2387
    %v2487 = vmul.f32 %v2270, %v2387
    %v2488 = vmul.f32 %v2274, %v2387
    %v2489 = vmul.f32 %v2278, %v2387
    %v2490 = vmul.f32 %v2282, %v2387
    %v2491 = vmul.f32 %v2286, %v2387
    %v2492 = vmul.f32 %v2290, %v2387
    %v2493 = vmul.f32 %v2294, %v2387
    %v2494 = vmul.f32 %v2298, %v2387
    %v2495 = vmul.f32 %v2302, %v2387
    %v2496 = vmul.f32 %v2306, %v2387
    %v2497 = vmul.f32 %v2310, %v2387
    %v2498 = vmul.f32 %v2314, %v2387
    %v2499 = vmul.f32 %v2318, %v2387
    %v2500 = vmul.f32 %v2322, %v2387
    %v2501 = vmul.f32 %v2326, %v2387
    %v2502 = vmul.f32 %v2330, %v2387
    %v2503 = vmul.f32 %v2334, %v2387
    %v2504 = vmul.f32 %v2338, %v2387
    %v2505 = vmul.f32 %v2342, %v2387
    %v2506 = vmul.f32 %v2346, %v2387
    %v2507 = vmul.f32 %v2350, %v2387
    %v2508 = vmul.f32 %v2354, %v2387
    %v2509 = vmul.f32 %v2358, %v2387
    %v2510 = vmul.f32 %v2362, %v2387
    %v2511 = vmul.f32 %v2366, %v2387
    %v2512 = vmul.f32 %v2370, %v2387
    %v2513 = vmul.f32 %v2374, %v2387
    %v2514 = vmul.f32 %v2378, %v2387
    %v2515 = vmul.f32 %v2382, %v2387
    %v2516 = vadd.f32 %v1362, %v2388
    %v2517 = vadd.f32 %v1365, %v2389
    %v2518 = vadd.f32 %v1370, %v2390
    %v2519 = vadd.f32 %v1373, %v2391
    %v2520 = vadd.f32 %v1378, %v2392
    %v2521 = vadd.f32 %v1381, %v2393
    %v2522 = vadd.f32 %v1386, %v2394
    %v2523 = vadd.f32 %v1389, %v2395
    %v2524 = vadd.f32 %v1394, %v2396
    %v2525 = vadd.f32 %v1397, %v2397
    %v2526 = vadd.f32 %v1402, %v2398
    %v2527 = vadd.f32 %v1405, %v2399
    %v2528 = vadd.f32 %v1410, %v2400
    %v2529 = vadd.f32 %v1413, %v2401
    %v2530 = vadd.f32 %v1418, %v2402
    %v2531 = vadd.f32 %v1421, %v2403
    %v2532 = vadd.f32 %v1426, %v2404
    %v2533 = vadd.f32 %v1429, %v2405
    %v2534 = vadd.f32 %v1434, %v2406
    %v2535 = vadd.f32 %v1437, %v2407
    %v2536 = vadd.f32 %v1442, %v2408
    %v2537 = vadd.f32 %v1445, %v2409
    %v2538 = vadd.f32 %v1450, %v2410
    %v2539 = vadd.f32 %v1453, %v2411
    %v2540 = vadd.f32 %v1458, %v2412
    %v2541 = vadd.f32 %v1461, %v2413
    %v2542 = vadd.f32 %v1466, %v2414
    %v2543 = vadd.f32 %v1469, %v2415
    %v2544 = vadd.f32 %v1474, %v2416
    %v2545 = vadd.f32 %v1477, %v2417
    %v2546 = vadd.f32 %v1482, %v2418
    %v2547 = vadd.f32 %v1485, %v2419
    %v2548 = vadd.f32 %v1490, %v2420
    %v2549 = vadd.f32 %v1493, %v2421
    %v2550 = vadd.f32 %v1498, %v2422
    %v2551 = vadd.f32 %v1501, %v2423
    %v2552 = vadd.f32 %v1506, %v2424
    %v2553 = vadd.f32 %v1509, %v2425
    %v2554 = vadd.f32 %v1514, %v2426
    %v2555 = vadd.f32 %v1517, %v2427
    %v2556 = vadd.f32 %v1522, %v2428
    %v2557 = vadd.f32 %v1525, %v2429
    %v2558 = vadd.f32 %v1530, %v2430
    %v2559 = vadd.f32 %v1533, %v2431
    %v2560 = vadd.f32 %v1538, %v2432
    %v2561 = vadd.f32 %v1541, %v2433
    %v2562 = vadd.f32 %v1546, %v2434
    %v2563 = vadd.f32 %v1549, %v2435
    %v2564 = vadd.f32 %v1554, %v2436
    %v2565 = vadd.f32 %v1557, %v2437
    %v2566 = vadd.f32 %v1562, %v2438
    %v2567 = vadd.f32 %v1565, %v2439
    %v2568 = vadd.f32 %v1570, %v2440
    %v2569 = vadd.f32 %v1573, %v2441
    %v2570 = vadd.f32 %v1578, %v2442
    %v2571 = vadd.f32 %v1581, %v2443
    %v2572 = vadd.f32 %v1586, %v2444
    %v2573 = vadd.f32 %v1589, %v2445
    %v2574 = vadd.f32 %v1594, %v2446
    %v2575 = vadd.f32 %v1597, %v2447
    %v2576 = vadd.f32 %v1602, %v2448
    %v2577 = vadd.f32 %v1605, %v2449
    %v2578 = vadd.f32 %v1610, %v2450
    %v2579 = vadd.f32 %v1613, %v2451
    %v2580 = vadd.f32 %v1618, %v2452
    %v2581 = vadd.f32 %v1621, %v2453
    %v2582 = vadd.f32 %v1626, %v2454
    %v2583 = vadd.f32 %v1629, %v2455
    %v2584 = vadd.f32 %v1634, %v2456
    %v2585 = vadd.f32 %v1637, %v2457
    %v2586 = vadd.f32 %v1642, %v2458
    %v2587 = vadd.f32 %v1645, %v2459
    %v2588 = vadd.f32 %v1650, %v2460
    %v2589 = vadd.f32 %v1653, %v2461
    %v2590 = vadd.f32 %v1658, %v2462
    %v2591 = vadd.f32 %v1661, %v2463
    %v2592 = vadd.f32 %v1666, %v2464
    %v2593 = vadd.f32 %v1669, %v2465
    %v2594 = vadd.f32 %v1674, %v2466
    %v2595 = vadd.f32 %v1677, %v2467
    %v2596 = vadd.f32 %v1682, %v2468
    %v2597 = vadd.f32 %v1685, %v2469
    %v2598 = vadd.f32 %v1690, %v2470
    %v2599 = vadd.f32 %v1693, %v2471
    %v2600 = vadd.f32 %v1698, %v2472
    %v2601 = vadd.f32 %v1701, %v2473
    %v2602 = vadd.f32 %v1706, %v2474
    %v2603 = vadd.f32 %v1709, %v2475
    %v2604 = vadd.f32 %v1714, %v2476
    %v2605 = vadd.f32 %v1717, %v2477
    %v2606 = vadd.f32 %v1722, %v2478
    %v2607 = vadd.f32 %v1725, %v2479
    %v2608 = vadd.f32 %v1730, %v2480
    %v2609 = vadd.f32 %v1733, %v2481
    %v2610 = vadd.f32 %v1738, %v2482
    %v2611 = vadd.f32 %v1741, %v2483
    %v2612 = vadd.f32 %v1746, %v2484
    %v2613 = vadd.f32 %v1749, %v2485
    %v2614 = vadd.f32 %v1754, %v2486
    %v2615 = vadd.f32 %v1757, %v2487
    %v2616 = vadd.f32 %v1762, %v2488
    %v2617 = vadd.f32 %v1765, %v2489
    %v2618 = vadd.f32 %v1770, %v2490
    %v2619 = vadd.f32 %v1773, %v2491
    %v2620 = vadd.f32 %v1778, %v2492
    %v2621 = vadd.f32 %v1781, %v2493
    %v2622 = vadd.f32 %v1786, %v2494
    %v2623 = vadd.f32 %v1789, %v2495
    %v2624 = vadd.f32 %v1794, %v2496
    %v2625 = vadd.f32 %v1797, %v2497
    %v2626 = vadd.f32 %v1802, %v2498
    %v2627 = vadd.f32 %v1805, %v2499
    %v2628 = vadd.f32 %v1810, %v2500
    %v2629 = vadd.f32 %v1813, %v2501
    %v2630 = vadd.f32 %v1818, %v2502
    %v2631 = vadd.f32 %v1821, %v2503
    %v2632 = vadd.f32 %v1826, %v2504
    %v2633 = vadd.f32 %v1829, %v2505
    %v2634 = vadd.f32 %v1834, %v2506
    %v2635 = vadd.f32 %v1837, %v2507
    %v2636 = vadd.f32 %v1842, %v2508
    %v2637 = vadd.f32 %v1845, %v2509
    %v2638 = vadd.f32 %v1850, %v2510
    %v2639 = vadd.f32 %v1853, %v2511
    %v2640 = vadd.f32 %v1858, %v2512
    %v2641 = vadd.f32 %v1861, %v2513
    %v2642 = vadd.f32 %v1866, %v2514
    %v2643 = vadd.f32 %v1869, %v2515
    %2644 = vset.pattern.permute.xlu0 2
    %2645 = vperm.xlu0 %2644, %v226
    %v2646 = vpop.permute.xlu0 %2645
    %2648 = vset.pattern.permute.xlu0 2
    %2649 = vperm.xlu0 %2648, %v227
    %v2650 = vpop.permute.xlu0 %2649
    %2652 = vset.pattern.permute.xlu0 2
    %2653 = vperm.xlu0 %2652, %v228
    %v2654 = vpop.permute.xlu0 %2653
    %2656 = vset.pattern.permute.xlu0 2
    %2657 = vperm.xlu0 %2656, %v229
    %v2658 = vpop.permute.xlu0 %2657
    %2660 = vset.pattern.permute.xlu0 2
    %2661 = vperm.xlu0 %2660, %v230
    %v2662 = vpop.permute.xlu0 %2661
    %2664 = vset.pattern.permute.xlu0 2
    %2665 = vperm.xlu0 %2664, %v231
    %v2666 = vpop.permute.xlu0 %2665
    %2668 = vset.pattern.permute.xlu0 2
    %2669 = vperm.xlu0 %2668, %v232
    %v2670 = vpop.permute.xlu0 %2669
    %2672 = vset.pattern.permute.xlu0 2
    %2673 = vperm.xlu0 %2672, %v233
    %v2674 = vpop.permute.xlu0 %2673
    %2676 = vset.pattern.permute.xlu0 2
    %2677 = vperm.xlu0 %2676, %v234
    %v2678 = vpop.permute.xlu0 %2677
    %2680 = vset.pattern.permute.xlu0 2
    %2681 = vperm.xlu0 %2680, %v235
    %v2682 = vpop.permute.xlu0 %2681
    %2684 = vset.pattern.permute.xlu0 2
    %2685 = vperm.xlu0 %2684, %v236
    %v2686 = vpop.permute.xlu0 %2685
    %2688 = vset.pattern.permute.xlu0 2
    %2689 = vperm.xlu0 %2688, %v237
    %v2690 = vpop.permute.xlu0 %2689
    %2692 = vset.pattern.permute.xlu0 2
    %2693 = vperm.xlu0 %2692, %v238
    %v2694 = vpop.permute.xlu0 %2693
    %2696 = vset.pattern.permute.xlu0 2
    %2697 = vperm.xlu0 %2696, %v239
    %v2698 = vpop.permute.xlu0 %2697
    %2700 = vset.pattern.permute.xlu0 2
    %2701 = vperm.xlu0 %2700, %v240
    %v2702 = vpop.permute.xlu0 %2701
    %2704 = vset.pattern.permute.xlu0 2
    %2705 = vperm.xlu0 %2704, %v241
    %v2706 = vpop.permute.xlu0 %2705
    %2708 = vset.pattern.permute.xlu0 2
    %2709 = vperm.xlu0 %2708, %v242
    %v2710 = vpop.permute.xlu0 %2709
    %2712 = vset.pattern.permute.xlu0 2
    %2713 = vperm.xlu0 %2712, %v243
    %v2714 = vpop.permute.xlu0 %2713
    %2716 = vset.pattern.permute.xlu0 2
    %2717 = vperm.xlu0 %2716, %v244
    %v2718 = vpop.permute.xlu0 %2717
    %2720 = vset.pattern.permute.xlu0 2
    %2721 = vperm.xlu0 %2720, %v245
    %v2722 = vpop.permute.xlu0 %2721
    %2724 = vset.pattern.permute.xlu0 2
    %2725 = vperm.xlu0 %2724, %v246
    %v2726 = vpop.permute.xlu0 %2725
    %2728 = vset.pattern.permute.xlu0 2
    %2729 = vperm.xlu0 %2728, %v247
    %v2730 = vpop.permute.xlu0 %2729
    %2732 = vset.pattern.permute.xlu0 2
    %2733 = vperm.xlu0 %2732, %v248
    %v2734 = vpop.permute.xlu0 %2733
    %2736 = vset.pattern.permute.xlu0 2
    %2737 = vperm.xlu0 %2736, %v249
    %v2738 = vpop.permute.xlu0 %2737
    %2740 = vset.pattern.permute.xlu0 2
    %2741 = vperm.xlu0 %2740, %v250
    %v2742 = vpop.permute.xlu0 %2741
    %2744 = vset.pattern.permute.xlu0 2
    %2745 = vperm.xlu0 %2744, %v251
    %v2746 = vpop.permute.xlu0 %2745
    %2748 = vset.pattern.permute.xlu0 2
    %2749 = vperm.xlu0 %2748, %v252
    %v2750 = vpop.permute.xlu0 %2749
    %2752 = vset.pattern.permute.xlu0 2
    %2753 = vperm.xlu0 %2752, %v253
    %v2754 = vpop.permute.xlu0 %2753
    %2756 = vset.pattern.permute.xlu0 2
    %2757 = vperm.xlu0 %2756, %v254
    %v2758 = vpop.permute.xlu0 %2757
    %2760 = vset.pattern.permute.xlu0 2
    %2761 = vperm.xlu0 %2760, %v255
    %v2762 = vpop.permute.xlu0 %2761
    %2764 = vset.pattern.permute.xlu0 2
    %2765 = vperm.xlu0 %2764, %v256
    %v2766 = vpop.permute.xlu0 %2765
    %2768 = vset.pattern.permute.xlu0 2
    %2769 = vperm.xlu0 %2768, %v257
    %v2770 = vpop.permute.xlu0 %2769
    %2772 = vset.pattern.permute.xlu0 2
    %2773 = vperm.xlu0 %2772, %v258
    %v2774 = vpop.permute.xlu0 %2773
    %2776 = vset.pattern.permute.xlu0 2
    %2777 = vperm.xlu0 %2776, %v259
    %v2778 = vpop.permute.xlu0 %2777
    %2780 = vset.pattern.permute.xlu0 2
    %2781 = vperm.xlu0 %2780, %v260
    %v2782 = vpop.permute.xlu0 %2781
    %2784 = vset.pattern.permute.xlu0 2
    %2785 = vperm.xlu0 %2784, %v261
    %v2786 = vpop.permute.xlu0 %2785
    %2788 = vset.pattern.permute.xlu0 2
    %2789 = vperm.xlu0 %2788, %v262
    %v2790 = vpop.permute.xlu0 %2789
    %2792 = vset.pattern.permute.xlu0 2
    %2793 = vperm.xlu0 %2792, %v263
    %v2794 = vpop.permute.xlu0 %2793
    %2796 = vset.pattern.permute.xlu0 2
    %2797 = vperm.xlu0 %2796, %v264
    %v2798 = vpop.permute.xlu0 %2797
    %2800 = vset.pattern.permute.xlu0 2
    %2801 = vperm.xlu0 %2800, %v265
    %v2802 = vpop.permute.xlu0 %2801
    %2804 = vset.pattern.permute.xlu0 2
    %2805 = vperm.xlu0 %2804, %v266
    %v2806 = vpop.permute.xlu0 %2805
    %2808 = vset.pattern.permute.xlu0 2
    %2809 = vperm.xlu0 %2808, %v267
    %v2810 = vpop.permute.xlu0 %2809
    %2812 = vset.pattern.permute.xlu0 2
    %2813 = vperm.xlu0 %2812, %v268
    %v2814 = vpop.permute.xlu0 %2813
    %2816 = vset.pattern.permute.xlu0 2
    %2817 = vperm.xlu0 %2816, %v269
    %v2818 = vpop.permute.xlu0 %2817
    %2820 = vset.pattern.permute.xlu0 2
    %2821 = vperm.xlu0 %2820, %v270
    %v2822 = vpop.permute.xlu0 %2821
    %2824 = vset.pattern.permute.xlu0 2
    %2825 = vperm.xlu0 %2824, %v271
    %v2826 = vpop.permute.xlu0 %2825
    %2828 = vset.pattern.permute.xlu0 2
    %2829 = vperm.xlu0 %2828, %v272
    %v2830 = vpop.permute.xlu0 %2829
    %2832 = vset.pattern.permute.xlu0 2
    %2833 = vperm.xlu0 %2832, %v273
    %v2834 = vpop.permute.xlu0 %2833
    %2836 = vset.pattern.permute.xlu0 2
    %2837 = vperm.xlu0 %2836, %v274
    %v2838 = vpop.permute.xlu0 %2837
    %2840 = vset.pattern.permute.xlu0 2
    %2841 = vperm.xlu0 %2840, %v275
    %v2842 = vpop.permute.xlu0 %2841
    %2844 = vset.pattern.permute.xlu0 2
    %2845 = vperm.xlu0 %2844, %v276
    %v2846 = vpop.permute.xlu0 %2845
    %2848 = vset.pattern.permute.xlu0 2
    %2849 = vperm.xlu0 %2848, %v277
    %v2850 = vpop.permute.xlu0 %2849
    %2852 = vset.pattern.permute.xlu0 2
    %2853 = vperm.xlu0 %2852, %v278
    %v2854 = vpop.permute.xlu0 %2853
    %2856 = vset.pattern.permute.xlu0 2
    %2857 = vperm.xlu0 %2856, %v279
    %v2858 = vpop.permute.xlu0 %2857
    %2860 = vset.pattern.permute.xlu0 2
    %2861 = vperm.xlu0 %2860, %v280
    %v2862 = vpop.permute.xlu0 %2861
    %2864 = vset.pattern.permute.xlu0 2
    %2865 = vperm.xlu0 %2864, %v281
    %v2866 = vpop.permute.xlu0 %2865
    %2868 = vset.pattern.permute.xlu0 2
    %2869 = vperm.xlu0 %2868, %v282
    %v2870 = vpop.permute.xlu0 %2869
    %2872 = vset.pattern.permute.xlu0 2
    %2873 = vperm.xlu0 %2872, %v283
    %v2874 = vpop.permute.xlu0 %2873
    %2876 = vset.pattern.permute.xlu0 2
    %2877 = vperm.xlu0 %2876, %v284
    %v2878 = vpop.permute.xlu0 %2877
    %2880 = vset.pattern.permute.xlu0 2
    %2881 = vperm.xlu0 %2880, %v285
    %v2882 = vpop.permute.xlu0 %2881
    %2884 = vset.pattern.permute.xlu0 2
    %2885 = vperm.xlu0 %2884, %v286
    %v2886 = vpop.permute.xlu0 %2885
    %2888 = vset.pattern.permute.xlu0 2
    %2889 = vperm.xlu0 %2888, %v287
    %v2890 = vpop.permute.xlu0 %2889
    %2892 = vset.pattern.permute.xlu0 2
    %2893 = vperm.xlu0 %2892, %v288
    %v2894 = vpop.permute.xlu0 %2893
    %2896 = vset.pattern.permute.xlu0 2
    %2897 = vperm.xlu0 %2896, %v289
    %v2898 = vpop.permute.xlu0 %2897
    %2900 = vset.pattern.permute.xlu0 2
    %2901 = vperm.xlu0 %2900, %v290
    %v2902 = vpop.permute.xlu0 %2901
    %2904 = vset.pattern.permute.xlu0 2
    %2905 = vperm.xlu0 %2904, %v291
    %v2906 = vpop.permute.xlu0 %2905
    %2908 = vset.pattern.permute.xlu0 2
    %2909 = vperm.xlu0 %2908, %v292
    %v2910 = vpop.permute.xlu0 %2909
    %2912 = vset.pattern.permute.xlu0 2
    %2913 = vperm.xlu0 %2912, %v293
    %v2914 = vpop.permute.xlu0 %2913
    %2916 = vset.pattern.permute.xlu0 2
    %2917 = vperm.xlu0 %2916, %v294
    %v2918 = vpop.permute.xlu0 %2917
    %2920 = vset.pattern.permute.xlu0 2
    %2921 = vperm.xlu0 %2920, %v295
    %v2922 = vpop.permute.xlu0 %2921
    %2924 = vset.pattern.permute.xlu0 2
    %2925 = vperm.xlu0 %2924, %v296
    %v2926 = vpop.permute.xlu0 %2925
    %2928 = vset.pattern.permute.xlu0 2
    %2929 = vperm.xlu0 %2928, %v297
    %v2930 = vpop.permute.xlu0 %2929
    %2932 = vset.pattern.permute.xlu0 2
    %2933 = vperm.xlu0 %2932, %v298
    %v2934 = vpop.permute.xlu0 %2933
    %2936 = vset.pattern.permute.xlu0 2
    %2937 = vperm.xlu0 %2936, %v299
    %v2938 = vpop.permute.xlu0 %2937
    %2940 = vset.pattern.permute.xlu0 2
    %2941 = vperm.xlu0 %2940, %v300
    %v2942 = vpop.permute.xlu0 %2941
    %2944 = vset.pattern.permute.xlu0 2
    %2945 = vperm.xlu0 %2944, %v301
    %v2946 = vpop.permute.xlu0 %2945
    %2948 = vset.pattern.permute.xlu0 2
    %2949 = vperm.xlu0 %2948, %v302
    %v2950 = vpop.permute.xlu0 %2949
    %2952 = vset.pattern.permute.xlu0 2
    %2953 = vperm.xlu0 %2952, %v303
    %v2954 = vpop.permute.xlu0 %2953
    %2956 = vset.pattern.permute.xlu0 2
    %2957 = vperm.xlu0 %2956, %v304
    %v2958 = vpop.permute.xlu0 %2957
    %2960 = vset.pattern.permute.xlu0 2
    %2961 = vperm.xlu0 %2960, %v305
    %v2962 = vpop.permute.xlu0 %2961
    %2964 = vset.pattern.permute.xlu0 2
    %2965 = vperm.xlu0 %2964, %v306
    %v2966 = vpop.permute.xlu0 %2965
    %2968 = vset.pattern.permute.xlu0 2
    %2969 = vperm.xlu0 %2968, %v307
    %v2970 = vpop.permute.xlu0 %2969
    %2972 = vset.pattern.permute.xlu0 2
    %2973 = vperm.xlu0 %2972, %v308
    %v2974 = vpop.permute.xlu0 %2973
    %2976 = vset.pattern.permute.xlu0 2
    %2977 = vperm.xlu0 %2976, %v309
    %v2978 = vpop.permute.xlu0 %2977
    %2980 = vset.pattern.permute.xlu0 2
    %2981 = vperm.xlu0 %2980, %v310
    %v2982 = vpop.permute.xlu0 %2981
    %2984 = vset.pattern.permute.xlu0 2
    %2985 = vperm.xlu0 %2984, %v311
    %v2986 = vpop.permute.xlu0 %2985
    %2988 = vset.pattern.permute.xlu0 2
    %2989 = vperm.xlu0 %2988, %v312
    %v2990 = vpop.permute.xlu0 %2989
    %2992 = vset.pattern.permute.xlu0 2
    %2993 = vperm.xlu0 %2992, %v313
    %v2994 = vpop.permute.xlu0 %2993
    %2996 = vset.pattern.permute.xlu0 2
    %2997 = vperm.xlu0 %2996, %v314
    %v2998 = vpop.permute.xlu0 %2997
    %3000 = vset.pattern.permute.xlu0 2
    %3001 = vperm.xlu0 %3000, %v315
    %v3002 = vpop.permute.xlu0 %3001
    %3004 = vset.pattern.permute.xlu0 2
    %3005 = vperm.xlu0 %3004, %v316
    %v3006 = vpop.permute.xlu0 %3005
    %3008 = vset.pattern.permute.xlu0 2
    %3009 = vperm.xlu0 %3008, %v317
    %v3010 = vpop.permute.xlu0 %3009
    %3012 = vset.pattern.permute.xlu0 2
    %3013 = vperm.xlu0 %3012, %v318
    %v3014 = vpop.permute.xlu0 %3013
    %3016 = vset.pattern.permute.xlu0 2
    %3017 = vperm.xlu0 %3016, %v319
    %v3018 = vpop.permute.xlu0 %3017
    %3020 = vset.pattern.permute.xlu0 2
    %3021 = vperm.xlu0 %3020, %v320
    %v3022 = vpop.permute.xlu0 %3021
    %3024 = vset.pattern.permute.xlu0 2
    %3025 = vperm.xlu0 %3024, %v321
    %v3026 = vpop.permute.xlu0 %3025
    %3028 = vset.pattern.permute.xlu0 2
    %3029 = vperm.xlu0 %3028, %v322
    %v3030 = vpop.permute.xlu0 %3029
    %3032 = vset.pattern.permute.xlu0 2
    %3033 = vperm.xlu0 %3032, %v323
    %v3034 = vpop.permute.xlu0 %3033
    %3036 = vset.pattern.permute.xlu0 2
    %3037 = vperm.xlu0 %3036, %v324
    %v3038 = vpop.permute.xlu0 %3037
    %3040 = vset.pattern.permute.xlu0 2
    %3041 = vperm.xlu0 %3040, %v325
    %v3042 = vpop.permute.xlu0 %3041
    %3044 = vset.pattern.permute.xlu0 2
    %3045 = vperm.xlu0 %3044, %v326
    %v3046 = vpop.permute.xlu0 %3045
    %3048 = vset.pattern.permute.xlu0 2
    %3049 = vperm.xlu0 %3048, %v327
    %v3050 = vpop.permute.xlu0 %3049
    %3052 = vset.pattern.permute.xlu0 2
    %3053 = vperm.xlu0 %3052, %v328
    %v3054 = vpop.permute.xlu0 %3053
    %3056 = vset.pattern.permute.xlu0 2
    %3057 = vperm.xlu0 %3056, %v329
    %v3058 = vpop.permute.xlu0 %3057
    %3060 = vset.pattern.permute.xlu0 2
    %3061 = vperm.xlu0 %3060, %v330
    %v3062 = vpop.permute.xlu0 %3061
    %3064 = vset.pattern.permute.xlu0 2
    %3065 = vperm.xlu0 %3064, %v331
    %v3066 = vpop.permute.xlu0 %3065
    %3068 = vset.pattern.permute.xlu0 2
    %3069 = vperm.xlu0 %3068, %v332
    %v3070 = vpop.permute.xlu0 %3069
    %3072 = vset.pattern.permute.xlu0 2
    %3073 = vperm.xlu0 %3072, %v333
    %v3074 = vpop.permute.xlu0 %3073
    %3076 = vset.pattern.permute.xlu0 2
    %3077 = vperm.xlu0 %3076, %v334
    %v3078 = vpop.permute.xlu0 %3077
    %3080 = vset.pattern.permute.xlu0 2
    %3081 = vperm.xlu0 %3080, %v335
    %v3082 = vpop.permute.xlu0 %3081
    %3084 = vset.pattern.permute.xlu0 2
    %3085 = vperm.xlu0 %3084, %v336
    %v3086 = vpop.permute.xlu0 %3085
    %3088 = vset.pattern.permute.xlu0 2
    %3089 = vperm.xlu0 %3088, %v337
    %v3090 = vpop.permute.xlu0 %3089
    %3092 = vset.pattern.permute.xlu0 2
    %3093 = vperm.xlu0 %3092, %v338
    %v3094 = vpop.permute.xlu0 %3093
    %3096 = vset.pattern.permute.xlu0 2
    %3097 = vperm.xlu0 %3096, %v339
    %v3098 = vpop.permute.xlu0 %3097
    %3100 = vset.pattern.permute.xlu0 2
    %3101 = vperm.xlu0 %3100, %v340
    %v3102 = vpop.permute.xlu0 %3101
    %3104 = vset.pattern.permute.xlu0 2
    %3105 = vperm.xlu0 %3104, %v341
    %v3106 = vpop.permute.xlu0 %3105
    %3108 = vset.pattern.permute.xlu0 2
    %3109 = vperm.xlu0 %3108, %v342
    %v3110 = vpop.permute.xlu0 %3109
    %3112 = vset.pattern.permute.xlu0 2
    %3113 = vperm.xlu0 %3112, %v343
    %v3114 = vpop.permute.xlu0 %3113
    %3116 = vset.pattern.permute.xlu0 2
    %3117 = vperm.xlu0 %3116, %v344
    %v3118 = vpop.permute.xlu0 %3117
    %3120 = vset.pattern.permute.xlu0 2
    %3121 = vperm.xlu0 %3120, %v345
    %v3122 = vpop.permute.xlu0 %3121
    %3124 = vset.pattern.permute.xlu0 2
    %3125 = vperm.xlu0 %3124, %v346
    %v3126 = vpop.permute.xlu0 %3125
    %3128 = vset.pattern.permute.xlu0 2
    %3129 = vperm.xlu0 %3128, %v347
    %v3130 = vpop.permute.xlu0 %3129
    %3132 = vset.pattern.permute.xlu0 2
    %3133 = vperm.xlu0 %3132, %v348
    %v3134 = vpop.permute.xlu0 %3133
    %3136 = vset.pattern.permute.xlu0 2
    %3137 = vperm.xlu0 %3136, %v349
    %v3138 = vpop.permute.xlu0 %3137
    %3140 = vset.pattern.permute.xlu0 2
    %3141 = vperm.xlu0 %3140, %v350
    %v3142 = vpop.permute.xlu0 %3141
    %3144 = vset.pattern.permute.xlu0 2
    %3145 = vperm.xlu0 %3144, %v351
    %v3146 = vpop.permute.xlu0 %3145
    %3148 = vset.pattern.permute.xlu0 2
    %3149 = vperm.xlu0 %3148, %v352
    %v3150 = vpop.permute.xlu0 %3149
    %3152 = vset.pattern.permute.xlu0 2
    %3153 = vperm.xlu0 %3152, %v353
    %v3154 = vpop.permute.xlu0 %3153
    %v3156 = vlaneseq
    %v3157 = vshrl.u32 %v3156, 7
    %v3158 = vsub.s32 2, %v3157
    %v3159 = vrot.slane %v355, %v3158
    %v3160 = vmul.f32 %v2646, %v3159
    %v3161 = vmul.f32 %v2650, %v3159
    %v3162 = vmul.f32 %v2654, %v3159
    %v3163 = vmul.f32 %v2658, %v3159
    %v3164 = vmul.f32 %v2662, %v3159
    %v3165 = vmul.f32 %v2666, %v3159
    %v3166 = vmul.f32 %v2670, %v3159
    %v3167 = vmul.f32 %v2674, %v3159
    %v3168 = vmul.f32 %v2678, %v3159
    %v3169 = vmul.f32 %v2682, %v3159
    %v3170 = vmul.f32 %v2686, %v3159
    %v3171 = vmul.f32 %v2690, %v3159
    %v3172 = vmul.f32 %v2694, %v3159
    %v3173 = vmul.f32 %v2698, %v3159
    %v3174 = vmul.f32 %v2702, %v3159
    %v3175 = vmul.f32 %v2706, %v3159
    %v3176 = vmul.f32 %v2710, %v3159
    %v3177 = vmul.f32 %v2714, %v3159
    %v3178 = vmul.f32 %v2718, %v3159
    %v3179 = vmul.f32 %v2722, %v3159
    %v3180 = vmul.f32 %v2726, %v3159
    %v3181 = vmul.f32 %v2730, %v3159
    %v3182 = vmul.f32 %v2734, %v3159
    %v3183 = vmul.f32 %v2738, %v3159
    %v3184 = vmul.f32 %v2742, %v3159
    %v3185 = vmul.f32 %v2746, %v3159
    %v3186 = vmul.f32 %v2750, %v3159
    %v3187 = vmul.f32 %v2754, %v3159
    %v3188 = vmul.f32 %v2758, %v3159
    %v3189 = vmul.f32 %v2762, %v3159
    %v3190 = vmul.f32 %v2766, %v3159
    %v3191 = vmul.f32 %v2770, %v3159
    %v3192 = vmul.f32 %v2774, %v3159
    %v3193 = vmul.f32 %v2778, %v3159
    %v3194 = vmul.f32 %v2782, %v3159
    %v3195 = vmul.f32 %v2786, %v3159
    %v3196 = vmul.f32 %v2790, %v3159
    %v3197 = vmul.f32 %v2794, %v3159
    %v3198 = vmul.f32 %v2798, %v3159
    %v3199 = vmul.f32 %v2802, %v3159
    %v3200 = vmul.f32 %v2806, %v3159
    %v3201 = vmul.f32 %v2810, %v3159
    %v3202 = vmul.f32 %v2814, %v3159
    %v3203 = vmul.f32 %v2818, %v3159
    %v3204 = vmul.f32 %v2822, %v3159
    %v3205 = vmul.f32 %v2826, %v3159
    %v3206 = vmul.f32 %v2830, %v3159
    %v3207 = vmul.f32 %v2834, %v3159
    %v3208 = vmul.f32 %v2838, %v3159
    %v3209 = vmul.f32 %v2842, %v3159
    %v3210 = vmul.f32 %v2846, %v3159
    %v3211 = vmul.f32 %v2850, %v3159
    %v3212 = vmul.f32 %v2854, %v3159
    %v3213 = vmul.f32 %v2858, %v3159
    %v3214 = vmul.f32 %v2862, %v3159
    %v3215 = vmul.f32 %v2866, %v3159
    %v3216 = vmul.f32 %v2870, %v3159
    %v3217 = vmul.f32 %v2874, %v3159
    %v3218 = vmul.f32 %v2878, %v3159
    %v3219 = vmul.f32 %v2882, %v3159
    %v3220 = vmul.f32 %v2886, %v3159
    %v3221 = vmul.f32 %v2890, %v3159
    %v3222 = vmul.f32 %v2894, %v3159
    %v3223 = vmul.f32 %v2898, %v3159
    %v3224 = vmul.f32 %v2902, %v3159
    %v3225 = vmul.f32 %v2906, %v3159
    %v3226 = vmul.f32 %v2910, %v3159
    %v3227 = vmul.f32 %v2914, %v3159
    %v3228 = vmul.f32 %v2918, %v3159
    %v3229 = vmul.f32 %v2922, %v3159
    %v3230 = vmul.f32 %v2926, %v3159
    %v3231 = vmul.f32 %v2930, %v3159
    %v3232 = vmul.f32 %v2934, %v3159
    %v3233 = vmul.f32 %v2938, %v3159
    %v3234 = vmul.f32 %v2942, %v3159
    %v3235 = vmul.f32 %v2946, %v3159
    %v3236 = vmul.f32 %v2950, %v3159
    %v3237 = vmul.f32 %v2954, %v3159
    %v3238 = vmul.f32 %v2958, %v3159
    %v3239 = vmul.f32 %v2962, %v3159
    %v3240 = vmul.f32 %v2966, %v3159
    %v3241 = vmul.f32 %v2970, %v3159
    %v3242 = vmul.f32 %v2974, %v3159
    %v3243 = vmul.f32 %v2978, %v3159
    %v3244 = vmul.f32 %v2982, %v3159
    %v3245 = vmul.f32 %v2986, %v3159
    %v3246 = vmul.f32 %v2990, %v3159
    %v3247 = vmul.f32 %v2994, %v3159
    %v3248 = vmul.f32 %v2998, %v3159
    %v3249 = vmul.f32 %v3002, %v3159
    %v3250 = vmul.f32 %v3006, %v3159
    %v3251 = vmul.f32 %v3010, %v3159
    %v3252 = vmul.f32 %v3014, %v3159
    %v3253 = vmul.f32 %v3018, %v3159
    %v3254 = vmul.f32 %v3022, %v3159
    %v3255 = vmul.f32 %v3026, %v3159
    %v3256 = vmul.f32 %v3030, %v3159
    %v3257 = vmul.f32 %v3034, %v3159
    %v3258 = vmul.f32 %v3038, %v3159
    %v3259 = vmul.f32 %v3042, %v3159
    %v3260 = vmul.f32 %v3046, %v3159
    %v3261 = vmul.f32 %v3050, %v3159
    %v3262 = vmul.f32 %v3054, %v3159
    %v3263 = vmul.f32 %v3058, %v3159
    %v3264 = vmul.f32 %v3062, %v3159
    %v3265 = vmul.f32 %v3066, %v3159
    %v3266 = vmul.f32 %v3070, %v3159
    %v3267 = vmul.f32 %v3074, %v3159
    %v3268 = vmul.f32 %v3078, %v3159
    %v3269 = vmul.f32 %v3082, %v3159
    %v3270 = vmul.f32 %v3086, %v3159
    %v3271 = vmul.f32 %v3090, %v3159
    %v3272 = vmul.f32 %v3094, %v3159
    %v3273 = vmul.f32 %v3098, %v3159
    %v3274 = vmul.f32 %v3102, %v3159
    %v3275 = vmul.f32 %v3106, %v3159
    %v3276 = vmul.f32 %v3110, %v3159
    %v3277 = vmul.f32 %v3114, %v3159
    %v3278 = vmul.f32 %v3118, %v3159
    %v3279 = vmul.f32 %v3122, %v3159
    %v3280 = vmul.f32 %v3126, %v3159
    %v3281 = vmul.f32 %v3130, %v3159
    %v3282 = vmul.f32 %v3134, %v3159
    %v3283 = vmul.f32 %v3138, %v3159
    %v3284 = vmul.f32 %v3142, %v3159
    %v3285 = vmul.f32 %v3146, %v3159
    %v3286 = vmul.f32 %v3150, %v3159
    %v3287 = vmul.f32 %v3154, %v3159
    %v3288 = vadd.f32 %v2516, %v3160
    %v3289 = vadd.f32 %v2517, %v3161
    %v3290 = vadd.f32 %v2518, %v3162
    %v3291 = vadd.f32 %v2519, %v3163
    %v3292 = vadd.f32 %v2520, %v3164
    %v3293 = vadd.f32 %v2521, %v3165
    %v3294 = vadd.f32 %v2522, %v3166
    %v3295 = vadd.f32 %v2523, %v3167
    %v3296 = vadd.f32 %v2524, %v3168
    %v3297 = vadd.f32 %v2525, %v3169
    %v3298 = vadd.f32 %v2526, %v3170
    %v3299 = vadd.f32 %v2527, %v3171
    %v3300 = vadd.f32 %v2528, %v3172
    %v3301 = vadd.f32 %v2529, %v3173
    %v3302 = vadd.f32 %v2530, %v3174
    %v3303 = vadd.f32 %v2531, %v3175
    %v3304 = vadd.f32 %v2532, %v3176
    %v3305 = vadd.f32 %v2533, %v3177
    %v3306 = vadd.f32 %v2534, %v3178
    %v3307 = vadd.f32 %v2535, %v3179
    %v3308 = vadd.f32 %v2536, %v3180
    %v3309 = vadd.f32 %v2537, %v3181
    %v3310 = vadd.f32 %v2538, %v3182
    %v3311 = vadd.f32 %v2539, %v3183
    %v3312 = vadd.f32 %v2540, %v3184
    %v3313 = vadd.f32 %v2541, %v3185
    %v3314 = vadd.f32 %v2542, %v3186
    %v3315 = vadd.f32 %v2543, %v3187
    %v3316 = vadd.f32 %v2544, %v3188
    %v3317 = vadd.f32 %v2545, %v3189
    %v3318 = vadd.f32 %v2546, %v3190
    %v3319 = vadd.f32 %v2547, %v3191
    %v3320 = vadd.f32 %v2548, %v3192
    %v3321 = vadd.f32 %v2549, %v3193
    %v3322 = vadd.f32 %v2550, %v3194
    %v3323 = vadd.f32 %v2551, %v3195
    %v3324 = vadd.f32 %v2552, %v3196
    %v3325 = vadd.f32 %v2553, %v3197
    %v3326 = vadd.f32 %v2554, %v3198
    %v3327 = vadd.f32 %v2555, %v3199
    %v3328 = vadd.f32 %v2556, %v3200
    %v3329 = vadd.f32 %v2557, %v3201
    %v3330 = vadd.f32 %v2558, %v3202
    %v3331 = vadd.f32 %v2559, %v3203
    %v3332 = vadd.f32 %v2560, %v3204
    %v3333 = vadd.f32 %v2561, %v3205
    %v3334 = vadd.f32 %v2562, %v3206
    %v3335 = vadd.f32 %v2563, %v3207
    %v3336 = vadd.f32 %v2564, %v3208
    %v3337 = vadd.f32 %v2565, %v3209
    %v3338 = vadd.f32 %v2566, %v3210
    %v3339 = vadd.f32 %v2567, %v3211
    %v3340 = vadd.f32 %v2568, %v3212
    %v3341 = vadd.f32 %v2569, %v3213
    %v3342 = vadd.f32 %v2570, %v3214
    %v3343 = vadd.f32 %v2571, %v3215
    %v3344 = vadd.f32 %v2572, %v3216
    %v3345 = vadd.f32 %v2573, %v3217
    %v3346 = vadd.f32 %v2574, %v3218
    %v3347 = vadd.f32 %v2575, %v3219
    %v3348 = vadd.f32 %v2576, %v3220
    %v3349 = vadd.f32 %v2577, %v3221
    %v3350 = vadd.f32 %v2578, %v3222
    %v3351 = vadd.f32 %v2579, %v3223
    %v3352 = vadd.f32 %v2580, %v3224
    %v3353 = vadd.f32 %v2581, %v3225
    %v3354 = vadd.f32 %v2582, %v3226
    %v3355 = vadd.f32 %v2583, %v3227
    %v3356 = vadd.f32 %v2584, %v3228
    %v3357 = vadd.f32 %v2585, %v3229
    %v3358 = vadd.f32 %v2586, %v3230
    %v3359 = vadd.f32 %v2587, %v3231
    %v3360 = vadd.f32 %v2588, %v3232
    %v3361 = vadd.f32 %v2589, %v3233
    %v3362 = vadd.f32 %v2590, %v3234
    %v3363 = vadd.f32 %v2591, %v3235
    %v3364 = vadd.f32 %v2592, %v3236
    %v3365 = vadd.f32 %v2593, %v3237
    %v3366 = vadd.f32 %v2594, %v3238
    %v3367 = vadd.f32 %v2595, %v3239
    %v3368 = vadd.f32 %v2596, %v3240
    %v3369 = vadd.f32 %v2597, %v3241
    %v3370 = vadd.f32 %v2598, %v3242
    %v3371 = vadd.f32 %v2599, %v3243
    %v3372 = vadd.f32 %v2600, %v3244
    %v3373 = vadd.f32 %v2601, %v3245
    %v3374 = vadd.f32 %v2602, %v3246
    %v3375 = vadd.f32 %v2603, %v3247
    %v3376 = vadd.f32 %v2604, %v3248
    %v3377 = vadd.f32 %v2605, %v3249
    %v3378 = vadd.f32 %v2606, %v3250
    %v3379 = vadd.f32 %v2607, %v3251
    %v3380 = vadd.f32 %v2608, %v3252
    %v3381 = vadd.f32 %v2609, %v3253
    %v3382 = vadd.f32 %v2610, %v3254
    %v3383 = vadd.f32 %v2611, %v3255
    %v3384 = vadd.f32 %v2612, %v3256
    %v3385 = vadd.f32 %v2613, %v3257
    %v3386 = vadd.f32 %v2614, %v3258
    %v3387 = vadd.f32 %v2615, %v3259
    %v3388 = vadd.f32 %v2616, %v3260
    %v3389 = vadd.f32 %v2617, %v3261
    %v3390 = vadd.f32 %v2618, %v3262
    %v3391 = vadd.f32 %v2619, %v3263
    %v3392 = vadd.f32 %v2620, %v3264
    %v3393 = vadd.f32 %v2621, %v3265
    %v3394 = vadd.f32 %v2622, %v3266
    %v3395 = vadd.f32 %v2623, %v3267
    %v3396 = vadd.f32 %v2624, %v3268
    %v3397 = vadd.f32 %v2625, %v3269
    %v3398 = vadd.f32 %v2626, %v3270
    %v3399 = vadd.f32 %v2627, %v3271
    %v3400 = vadd.f32 %v2628, %v3272
    %v3401 = vadd.f32 %v2629, %v3273
    %v3402 = vadd.f32 %v2630, %v3274
    %v3403 = vadd.f32 %v2631, %v3275
    %v3404 = vadd.f32 %v2632, %v3276
    %v3405 = vadd.f32 %v2633, %v3277
    %v3406 = vadd.f32 %v2634, %v3278
    %v3407 = vadd.f32 %v2635, %v3279
    %v3408 = vadd.f32 %v2636, %v3280
    %v3409 = vadd.f32 %v2637, %v3281
    %v3410 = vadd.f32 %v2638, %v3282
    %v3411 = vadd.f32 %v2639, %v3283
    %v3412 = vadd.f32 %v2640, %v3284
    %v3413 = vadd.f32 %v2641, %v3285
    %v3414 = vadd.f32 %v2642, %v3286
    %v3415 = vadd.f32 %v2643, %v3287
    %3416 = vset.pattern.permute.xlu0 3
    %3417 = vperm.xlu0 %3416, %v226
    %v3418 = vpop.permute.xlu0 %3417
    %3420 = vset.pattern.permute.xlu0 3
    %3421 = vperm.xlu0 %3420, %v227
    %v3422 = vpop.permute.xlu0 %3421
    %3424 = vset.pattern.permute.xlu0 3
    %3425 = vperm.xlu0 %3424, %v228
    %v3426 = vpop.permute.xlu0 %3425
    %3428 = vset.pattern.permute.xlu0 3
    %3429 = vperm.xlu0 %3428, %v229
    %v3430 = vpop.permute.xlu0 %3429
    %3432 = vset.pattern.permute.xlu0 3
    %3433 = vperm.xlu0 %3432, %v230
    %v3434 = vpop.permute.xlu0 %3433
    %3436 = vset.pattern.permute.xlu0 3
    %3437 = vperm.xlu0 %3436, %v231
    %v3438 = vpop.permute.xlu0 %3437
    %3440 = vset.pattern.permute.xlu0 3
    %3441 = vperm.xlu0 %3440, %v232
    %v3442 = vpop.permute.xlu0 %3441
    %3444 = vset.pattern.permute.xlu0 3
    %3445 = vperm.xlu0 %3444, %v233
    %v3446 = vpop.permute.xlu0 %3445
    %3448 = vset.pattern.permute.xlu0 3
    %3449 = vperm.xlu0 %3448, %v234
    %v3450 = vpop.permute.xlu0 %3449
    %3452 = vset.pattern.permute.xlu0 3
    %3453 = vperm.xlu0 %3452, %v235
    %v3454 = vpop.permute.xlu0 %3453
    %3456 = vset.pattern.permute.xlu0 3
    %3457 = vperm.xlu0 %3456, %v236
    %v3458 = vpop.permute.xlu0 %3457
    %3460 = vset.pattern.permute.xlu0 3
    %3461 = vperm.xlu0 %3460, %v237
    %v3462 = vpop.permute.xlu0 %3461
    %3464 = vset.pattern.permute.xlu0 3
    %3465 = vperm.xlu0 %3464, %v238
    %v3466 = vpop.permute.xlu0 %3465
    %3468 = vset.pattern.permute.xlu0 3
    %3469 = vperm.xlu0 %3468, %v239
    %v3470 = vpop.permute.xlu0 %3469
    %3472 = vset.pattern.permute.xlu0 3
    %3473 = vperm.xlu0 %3472, %v240
    %v3474 = vpop.permute.xlu0 %3473
    %3476 = vset.pattern.permute.xlu0 3
    %3477 = vperm.xlu0 %3476, %v241
    %v3478 = vpop.permute.xlu0 %3477
    %3480 = vset.pattern.permute.xlu0 3
    %3481 = vperm.xlu0 %3480, %v242
    %v3482 = vpop.permute.xlu0 %3481
    %3484 = vset.pattern.permute.xlu0 3
    %3485 = vperm.xlu0 %3484, %v243
    %v3486 = vpop.permute.xlu0 %3485
    %3488 = vset.pattern.permute.xlu0 3
    %3489 = vperm.xlu0 %3488, %v244
    %v3490 = vpop.permute.xlu0 %3489
    %3492 = vset.pattern.permute.xlu0 3
    %3493 = vperm.xlu0 %3492, %v245
    %v3494 = vpop.permute.xlu0 %3493
    %3496 = vset.pattern.permute.xlu0 3
    %3497 = vperm.xlu0 %3496, %v246
    %v3498 = vpop.permute.xlu0 %3497
    %3500 = vset.pattern.permute.xlu0 3
    %3501 = vperm.xlu0 %3500, %v247
    %v3502 = vpop.permute.xlu0 %3501
    %3504 = vset.pattern.permute.xlu0 3
    %3505 = vperm.xlu0 %3504, %v248
    %v3506 = vpop.permute.xlu0 %3505
    %3508 = vset.pattern.permute.xlu0 3
    %3509 = vperm.xlu0 %3508, %v249
    %v3510 = vpop.permute.xlu0 %3509
    %3512 = vset.pattern.permute.xlu0 3
    %3513 = vperm.xlu0 %3512, %v250
    %v3514 = vpop.permute.xlu0 %3513
    %3516 = vset.pattern.permute.xlu0 3
    %3517 = vperm.xlu0 %3516, %v251
    %v3518 = vpop.permute.xlu0 %3517
    %3520 = vset.pattern.permute.xlu0 3
    %3521 = vperm.xlu0 %3520, %v252
    %v3522 = vpop.permute.xlu0 %3521
    %3524 = vset.pattern.permute.xlu0 3
    %3525 = vperm.xlu0 %3524, %v253
    %v3526 = vpop.permute.xlu0 %3525
    %3528 = vset.pattern.permute.xlu0 3
    %3529 = vperm.xlu0 %3528, %v254
    %v3530 = vpop.permute.xlu0 %3529
    %3532 = vset.pattern.permute.xlu0 3
    %3533 = vperm.xlu0 %3532, %v255
    %v3534 = vpop.permute.xlu0 %3533
    %3536 = vset.pattern.permute.xlu0 3
    %3537 = vperm.xlu0 %3536, %v256
    %v3538 = vpop.permute.xlu0 %3537
    %3540 = vset.pattern.permute.xlu0 3
    %3541 = vperm.xlu0 %3540, %v257
    %v3542 = vpop.permute.xlu0 %3541
    %3544 = vset.pattern.permute.xlu0 3
    %3545 = vperm.xlu0 %3544, %v258
    %v3546 = vpop.permute.xlu0 %3545
    %3548 = vset.pattern.permute.xlu0 3
    %3549 = vperm.xlu0 %3548, %v259
    %v3550 = vpop.permute.xlu0 %3549
    %3552 = vset.pattern.permute.xlu0 3
    %3553 = vperm.xlu0 %3552, %v260
    %v3554 = vpop.permute.xlu0 %3553
    %3556 = vset.pattern.permute.xlu0 3
    %3557 = vperm.xlu0 %3556, %v261
    %v3558 = vpop.permute.xlu0 %3557
    %3560 = vset.pattern.permute.xlu0 3
    %3561 = vperm.xlu0 %3560, %v262
    %v3562 = vpop.permute.xlu0 %3561
    %3564 = vset.pattern.permute.xlu0 3
    %3565 = vperm.xlu0 %3564, %v263
    %v3566 = vpop.permute.xlu0 %3565
    %3568 = vset.pattern.permute.xlu0 3
    %3569 = vperm.xlu0 %3568, %v264
    %v3570 = vpop.permute.xlu0 %3569
    %3572 = vset.pattern.permute.xlu0 3
    %3573 = vperm.xlu0 %3572, %v265
    %v3574 = vpop.permute.xlu0 %3573
    %3576 = vset.pattern.permute.xlu0 3
    %3577 = vperm.xlu0 %3576, %v266
    %v3578 = vpop.permute.xlu0 %3577
    %3580 = vset.pattern.permute.xlu0 3
    %3581 = vperm.xlu0 %3580, %v267
    %v3582 = vpop.permute.xlu0 %3581
    %3584 = vset.pattern.permute.xlu0 3
    %3585 = vperm.xlu0 %3584, %v268
    %v3586 = vpop.permute.xlu0 %3585
    %3588 = vset.pattern.permute.xlu0 3
    %3589 = vperm.xlu0 %3588, %v269
    %v3590 = vpop.permute.xlu0 %3589
    %3592 = vset.pattern.permute.xlu0 3
    %3593 = vperm.xlu0 %3592, %v270
    %v3594 = vpop.permute.xlu0 %3593
    %3596 = vset.pattern.permute.xlu0 3
    %3597 = vperm.xlu0 %3596, %v271
    %v3598 = vpop.permute.xlu0 %3597
    %3600 = vset.pattern.permute.xlu0 3
    %3601 = vperm.xlu0 %3600, %v272
    %v3602 = vpop.permute.xlu0 %3601
    %3604 = vset.pattern.permute.xlu0 3
    %3605 = vperm.xlu0 %3604, %v273
    %v3606 = vpop.permute.xlu0 %3605
    %3608 = vset.pattern.permute.xlu0 3
    %3609 = vperm.xlu0 %3608, %v274
    %v3610 = vpop.permute.xlu0 %3609
    %3612 = vset.pattern.permute.xlu0 3
    %3613 = vperm.xlu0 %3612, %v275
    %v3614 = vpop.permute.xlu0 %3613
    %3616 = vset.pattern.permute.xlu0 3
    %3617 = vperm.xlu0 %3616, %v276
    %v3618 = vpop.permute.xlu0 %3617
    %3620 = vset.pattern.permute.xlu0 3
    %3621 = vperm.xlu0 %3620, %v277
    %v3622 = vpop.permute.xlu0 %3621
    %3624 = vset.pattern.permute.xlu0 3
    %3625 = vperm.xlu0 %3624, %v278
    %v3626 = vpop.permute.xlu0 %3625
    %3628 = vset.pattern.permute.xlu0 3
    %3629 = vperm.xlu0 %3628, %v279
    %v3630 = vpop.permute.xlu0 %3629
    %3632 = vset.pattern.permute.xlu0 3
    %3633 = vperm.xlu0 %3632, %v280
    %v3634 = vpop.permute.xlu0 %3633
    %3636 = vset.pattern.permute.xlu0 3
    %3637 = vperm.xlu0 %3636, %v281
    %v3638 = vpop.permute.xlu0 %3637
    %3640 = vset.pattern.permute.xlu0 3
    %3641 = vperm.xlu0 %3640, %v282
    %v3642 = vpop.permute.xlu0 %3641
    %3644 = vset.pattern.permute.xlu0 3
    %3645 = vperm.xlu0 %3644, %v283
    %v3646 = vpop.permute.xlu0 %3645
    %3648 = vset.pattern.permute.xlu0 3
    %3649 = vperm.xlu0 %3648, %v284
    %v3650 = vpop.permute.xlu0 %3649
    %3652 = vset.pattern.permute.xlu0 3
    %3653 = vperm.xlu0 %3652, %v285
    %v3654 = vpop.permute.xlu0 %3653
    %3656 = vset.pattern.permute.xlu0 3
    %3657 = vperm.xlu0 %3656, %v286
    %v3658 = vpop.permute.xlu0 %3657
    %3660 = vset.pattern.permute.xlu0 3
    %3661 = vperm.xlu0 %3660, %v287
    %v3662 = vpop.permute.xlu0 %3661
    %3664 = vset.pattern.permute.xlu0 3
    %3665 = vperm.xlu0 %3664, %v288
    %v3666 = vpop.permute.xlu0 %3665
    %3668 = vset.pattern.permute.xlu0 3
    %3669 = vperm.xlu0 %3668, %v289
    %v3670 = vpop.permute.xlu0 %3669
    %3672 = vset.pattern.permute.xlu0 3
    %3673 = vperm.xlu0 %3672, %v290
    %v3674 = vpop.permute.xlu0 %3673
    %3676 = vset.pattern.permute.xlu0 3
    %3677 = vperm.xlu0 %3676, %v291
    %v3678 = vpop.permute.xlu0 %3677
    %3680 = vset.pattern.permute.xlu0 3
    %3681 = vperm.xlu0 %3680, %v292
    %v3682 = vpop.permute.xlu0 %3681
    %3684 = vset.pattern.permute.xlu0 3
    %3685 = vperm.xlu0 %3684, %v293
    %v3686 = vpop.permute.xlu0 %3685
    %3688 = vset.pattern.permute.xlu0 3
    %3689 = vperm.xlu0 %3688, %v294
    %v3690 = vpop.permute.xlu0 %3689
    %3692 = vset.pattern.permute.xlu0 3
    %3693 = vperm.xlu0 %3692, %v295
    %v3694 = vpop.permute.xlu0 %3693
    %3696 = vset.pattern.permute.xlu0 3
    %3697 = vperm.xlu0 %3696, %v296
    %v3698 = vpop.permute.xlu0 %3697
    %3700 = vset.pattern.permute.xlu0 3
    %3701 = vperm.xlu0 %3700, %v297
    %v3702 = vpop.permute.xlu0 %3701
    %3704 = vset.pattern.permute.xlu0 3
    %3705 = vperm.xlu0 %3704, %v298
    %v3706 = vpop.permute.xlu0 %3705
    %3708 = vset.pattern.permute.xlu0 3
    %3709 = vperm.xlu0 %3708, %v299
    %v3710 = vpop.permute.xlu0 %3709
    %3712 = vset.pattern.permute.xlu0 3
    %3713 = vperm.xlu0 %3712, %v300
    %v3714 = vpop.permute.xlu0 %3713
    %3716 = vset.pattern.permute.xlu0 3
    %3717 = vperm.xlu0 %3716, %v301
    %v3718 = vpop.permute.xlu0 %3717
    %3720 = vset.pattern.permute.xlu0 3
    %3721 = vperm.xlu0 %3720, %v302
    %v3722 = vpop.permute.xlu0 %3721
    %3724 = vset.pattern.permute.xlu0 3
    %3725 = vperm.xlu0 %3724, %v303
    %v3726 = vpop.permute.xlu0 %3725
    %3728 = vset.pattern.permute.xlu0 3
    %3729 = vperm.xlu0 %3728, %v304
    %v3730 = vpop.permute.xlu0 %3729
    %3732 = vset.pattern.permute.xlu0 3
    %3733 = vperm.xlu0 %3732, %v305
    %v3734 = vpop.permute.xlu0 %3733
    %3736 = vset.pattern.permute.xlu0 3
    %3737 = vperm.xlu0 %3736, %v306
    %v3738 = vpop.permute.xlu0 %3737
    %3740 = vset.pattern.permute.xlu0 3
    %3741 = vperm.xlu0 %3740, %v307
    %v3742 = vpop.permute.xlu0 %3741
    %3744 = vset.pattern.permute.xlu0 3
    %3745 = vperm.xlu0 %3744, %v308
    %v3746 = vpop.permute.xlu0 %3745
    %3748 = vset.pattern.permute.xlu0 3
    %3749 = vperm.xlu0 %3748, %v309
    %v3750 = vpop.permute.xlu0 %3749
    %3752 = vset.pattern.permute.xlu0 3
    %3753 = vperm.xlu0 %3752, %v310
    %v3754 = vpop.permute.xlu0 %3753
    %3756 = vset.pattern.permute.xlu0 3
    %3757 = vperm.xlu0 %3756, %v311
    %v3758 = vpop.permute.xlu0 %3757
    %3760 = vset.pattern.permute.xlu0 3
    %3761 = vperm.xlu0 %3760, %v312
    %v3762 = vpop.permute.xlu0 %3761
    %3764 = vset.pattern.permute.xlu0 3
    %3765 = vperm.xlu0 %3764, %v313
    %v3766 = vpop.permute.xlu0 %3765
    %3768 = vset.pattern.permute.xlu0 3
    %3769 = vperm.xlu0 %3768, %v314
    %v3770 = vpop.permute.xlu0 %3769
    %3772 = vset.pattern.permute.xlu0 3
    %3773 = vperm.xlu0 %3772, %v315
    %v3774 = vpop.permute.xlu0 %3773
    %3776 = vset.pattern.permute.xlu0 3
    %3777 = vperm.xlu0 %3776, %v316
    %v3778 = vpop.permute.xlu0 %3777
    %3780 = vset.pattern.permute.xlu0 3
    %3781 = vperm.xlu0 %3780, %v317
    %v3782 = vpop.permute.xlu0 %3781
    %3784 = vset.pattern.permute.xlu0 3
    %3785 = vperm.xlu0 %3784, %v318
    %v3786 = vpop.permute.xlu0 %3785
    %3788 = vset.pattern.permute.xlu0 3
    %3789 = vperm.xlu0 %3788, %v319
    %v3790 = vpop.permute.xlu0 %3789
    %3792 = vset.pattern.permute.xlu0 3
    %3793 = vperm.xlu0 %3792, %v320
    %v3794 = vpop.permute.xlu0 %3793
    %3796 = vset.pattern.permute.xlu0 3
    %3797 = vperm.xlu0 %3796, %v321
    %v3798 = vpop.permute.xlu0 %3797
    %3800 = vset.pattern.permute.xlu0 3
    %3801 = vperm.xlu0 %3800, %v322
    %v3802 = vpop.permute.xlu0 %3801
    %3804 = vset.pattern.permute.xlu0 3
    %3805 = vperm.xlu0 %3804, %v323
    %v3806 = vpop.permute.xlu0 %3805
    %3808 = vset.pattern.permute.xlu0 3
    %3809 = vperm.xlu0 %3808, %v324
    %v3810 = vpop.permute.xlu0 %3809
    %3812 = vset.pattern.permute.xlu0 3
    %3813 = vperm.xlu0 %3812, %v325
    %v3814 = vpop.permute.xlu0 %3813
    %3816 = vset.pattern.permute.xlu0 3
    %3817 = vperm.xlu0 %3816, %v326
    %v3818 = vpop.permute.xlu0 %3817
    %3820 = vset.pattern.permute.xlu0 3
    %3821 = vperm.xlu0 %3820, %v327
    %v3822 = vpop.permute.xlu0 %3821
    %3824 = vset.pattern.permute.xlu0 3
    %3825 = vperm.xlu0 %3824, %v328
    %v3826 = vpop.permute.xlu0 %3825
    %3828 = vset.pattern.permute.xlu0 3
    %3829 = vperm.xlu0 %3828, %v329
    %v3830 = vpop.permute.xlu0 %3829
    %3832 = vset.pattern.permute.xlu0 3
    %3833 = vperm.xlu0 %3832, %v330
    %v3834 = vpop.permute.xlu0 %3833
    %3836 = vset.pattern.permute.xlu0 3
    %3837 = vperm.xlu0 %3836, %v331
    %v3838 = vpop.permute.xlu0 %3837
    %3840 = vset.pattern.permute.xlu0 3
    %3841 = vperm.xlu0 %3840, %v332
    %v3842 = vpop.permute.xlu0 %3841
    %3844 = vset.pattern.permute.xlu0 3
    %3845 = vperm.xlu0 %3844, %v333
    %v3846 = vpop.permute.xlu0 %3845
    %3848 = vset.pattern.permute.xlu0 3
    %3849 = vperm.xlu0 %3848, %v334
    %v3850 = vpop.permute.xlu0 %3849
    %3852 = vset.pattern.permute.xlu0 3
    %3853 = vperm.xlu0 %3852, %v335
    %v3854 = vpop.permute.xlu0 %3853
    %3856 = vset.pattern.permute.xlu0 3
    %3857 = vperm.xlu0 %3856, %v336
    %v3858 = vpop.permute.xlu0 %3857
    %3860 = vset.pattern.permute.xlu0 3
    %3861 = vperm.xlu0 %3860, %v337
    %v3862 = vpop.permute.xlu0 %3861
    %3864 = vset.pattern.permute.xlu0 3
    %3865 = vperm.xlu0 %3864, %v338
    %v3866 = vpop.permute.xlu0 %3865
    %3868 = vset.pattern.permute.xlu0 3
    %3869 = vperm.xlu0 %3868, %v339
    %v3870 = vpop.permute.xlu0 %3869
    %3872 = vset.pattern.permute.xlu0 3
    %3873 = vperm.xlu0 %3872, %v340
    %v3874 = vpop.permute.xlu0 %3873
    %3876 = vset.pattern.permute.xlu0 3
    %3877 = vperm.xlu0 %3876, %v341
    %v3878 = vpop.permute.xlu0 %3877
    %3880 = vset.pattern.permute.xlu0 3
    %3881 = vperm.xlu0 %3880, %v342
    %v3882 = vpop.permute.xlu0 %3881
    %3884 = vset.pattern.permute.xlu0 3
    %3885 = vperm.xlu0 %3884, %v343
    %v3886 = vpop.permute.xlu0 %3885
    %3888 = vset.pattern.permute.xlu0 3
    %3889 = vperm.xlu0 %3888, %v344
    %v3890 = vpop.permute.xlu0 %3889
    %3892 = vset.pattern.permute.xlu0 3
    %3893 = vperm.xlu0 %3892, %v345
    %v3894 = vpop.permute.xlu0 %3893
    %3896 = vset.pattern.permute.xlu0 3
    %3897 = vperm.xlu0 %3896, %v346
    %v3898 = vpop.permute.xlu0 %3897
    %3900 = vset.pattern.permute.xlu0 3
    %3901 = vperm.xlu0 %3900, %v347
    %v3902 = vpop.permute.xlu0 %3901
    %3904 = vset.pattern.permute.xlu0 3
    %3905 = vperm.xlu0 %3904, %v348
    %v3906 = vpop.permute.xlu0 %3905
    %3908 = vset.pattern.permute.xlu0 3
    %3909 = vperm.xlu0 %3908, %v349
    %v3910 = vpop.permute.xlu0 %3909
    %3912 = vset.pattern.permute.xlu0 3
    %3913 = vperm.xlu0 %3912, %v350
    %v3914 = vpop.permute.xlu0 %3913
    %3916 = vset.pattern.permute.xlu0 3
    %3917 = vperm.xlu0 %3916, %v351
    %v3918 = vpop.permute.xlu0 %3917
    %3920 = vset.pattern.permute.xlu0 3
    %3921 = vperm.xlu0 %3920, %v352
    %v3922 = vpop.permute.xlu0 %3921
    %3924 = vset.pattern.permute.xlu0 3
    %3925 = vperm.xlu0 %3924, %v353
    %v3926 = vpop.permute.xlu0 %3925
    %v3928 = vlaneseq
    %v3929 = vshrl.u32 %v3928, 7
    %v3930 = vsub.s32 3, %v3929
    %v3931 = vrot.slane %v355, %v3930
    %v3932 = vmul.f32 %v3418, %v3931
    %v3933 = vmul.f32 %v3422, %v3931
    %v3934 = vmul.f32 %v3426, %v3931
    %v3935 = vmul.f32 %v3430, %v3931
    %v3936 = vmul.f32 %v3434, %v3931
    %v3937 = vmul.f32 %v3438, %v3931
    %v3938 = vmul.f32 %v3442, %v3931
    %v3939 = vmul.f32 %v3446, %v3931
    %v3940 = vmul.f32 %v3450, %v3931
    %v3941 = vmul.f32 %v3454, %v3931
    %v3942 = vmul.f32 %v3458, %v3931
    %v3943 = vmul.f32 %v3462, %v3931
    %v3944 = vmul.f32 %v3466, %v3931
    %v3945 = vmul.f32 %v3470, %v3931
    %v3946 = vmul.f32 %v3474, %v3931
    %v3947 = vmul.f32 %v3478, %v3931
    %v3948 = vmul.f32 %v3482, %v3931
    %v3949 = vmul.f32 %v3486, %v3931
    %v3950 = vmul.f32 %v3490, %v3931
    %v3951 = vmul.f32 %v3494, %v3931
    %v3952 = vmul.f32 %v3498, %v3931
    %v3953 = vmul.f32 %v3502, %v3931
    %v3954 = vmul.f32 %v3506, %v3931
    %v3955 = vmul.f32 %v3510, %v3931
    %v3956 = vmul.f32 %v3514, %v3931
    %v3957 = vmul.f32 %v3518, %v3931
    %v3958 = vmul.f32 %v3522, %v3931
    %v3959 = vmul.f32 %v3526, %v3931
    %v3960 = vmul.f32 %v3530, %v3931
    %v3961 = vmul.f32 %v3534, %v3931
    %v3962 = vmul.f32 %v3538, %v3931
    %v3963 = vmul.f32 %v3542, %v3931
    %v3964 = vmul.f32 %v3546, %v3931
    %v3965 = vmul.f32 %v3550, %v3931
    %v3966 = vmul.f32 %v3554, %v3931
    %v3967 = vmul.f32 %v3558, %v3931
    %v3968 = vmul.f32 %v3562, %v3931
    %v3969 = vmul.f32 %v3566, %v3931
    %v3970 = vmul.f32 %v3570, %v3931
    %v3971 = vmul.f32 %v3574, %v3931
    %v3972 = vmul.f32 %v3578, %v3931
    %v3973 = vmul.f32 %v3582, %v3931
    %v3974 = vmul.f32 %v3586, %v3931
    %v3975 = vmul.f32 %v3590, %v3931
    %v3976 = vmul.f32 %v3594, %v3931
    %v3977 = vmul.f32 %v3598, %v3931
    %v3978 = vmul.f32 %v3602, %v3931
    %v3979 = vmul.f32 %v3606, %v3931
    %v3980 = vmul.f32 %v3610, %v3931
    %v3981 = vmul.f32 %v3614, %v3931
    %v3982 = vmul.f32 %v3618, %v3931
    %v3983 = vmul.f32 %v3622, %v3931
    %v3984 = vmul.f32 %v3626, %v3931
    %v3985 = vmul.f32 %v3630, %v3931
    %v3986 = vmul.f32 %v3634, %v3931
    %v3987 = vmul.f32 %v3638, %v3931
    %v3988 = vmul.f32 %v3642, %v3931
    %v3989 = vmul.f32 %v3646, %v3931
    %v3990 = vmul.f32 %v3650, %v3931
    %v3991 = vmul.f32 %v3654, %v3931
    %v3992 = vmul.f32 %v3658, %v3931
    %v3993 = vmul.f32 %v3662, %v3931
    %v3994 = vmul.f32 %v3666, %v3931
    %v3995 = vmul.f32 %v3670, %v3931
    %v3996 = vmul.f32 %v3674, %v3931
    %v3997 = vmul.f32 %v3678, %v3931
    %v3998 = vmul.f32 %v3682, %v3931
    %v3999 = vmul.f32 %v3686, %v3931
    %v4000 = vmul.f32 %v3690, %v3931
    %v4001 = vmul.f32 %v3694, %v3931
    %v4002 = vmul.f32 %v3698, %v3931
    %v4003 = vmul.f32 %v3702, %v3931
    %v4004 = vmul.f32 %v3706, %v3931
    %v4005 = vmul.f32 %v3710, %v3931
    %v4006 = vmul.f32 %v3714, %v3931
    %v4007 = vmul.f32 %v3718, %v3931
    %v4008 = vmul.f32 %v3722, %v3931
    %v4009 = vmul.f32 %v3726, %v3931
    %v4010 = vmul.f32 %v3730, %v3931
    %v4011 = vmul.f32 %v3734, %v3931
    %v4012 = vmul.f32 %v3738, %v3931
    %v4013 = vmul.f32 %v3742, %v3931
    %v4014 = vmul.f32 %v3746, %v3931
    %v4015 = vmul.f32 %v3750, %v3931
    %v4016 = vmul.f32 %v3754, %v3931
    %v4017 = vmul.f32 %v3758, %v3931
    %v4018 = vmul.f32 %v3762, %v3931
    %v4019 = vmul.f32 %v3766, %v3931
    %v4020 = vmul.f32 %v3770, %v3931
    %v4021 = vmul.f32 %v3774, %v3931
    %v4022 = vmul.f32 %v3778, %v3931
    %v4023 = vmul.f32 %v3782, %v3931
    %v4024 = vmul.f32 %v3786, %v3931
    %v4025 = vmul.f32 %v3790, %v3931
    %v4026 = vmul.f32 %v3794, %v3931
    %v4027 = vmul.f32 %v3798, %v3931
    %v4028 = vmul.f32 %v3802, %v3931
    %v4029 = vmul.f32 %v3806, %v3931
    %v4030 = vmul.f32 %v3810, %v3931
    %v4031 = vmul.f32 %v3814, %v3931
    %v4032 = vmul.f32 %v3818, %v3931
    %v4033 = vmul.f32 %v3822, %v3931
    %v4034 = vmul.f32 %v3826, %v3931
    %v4035 = vmul.f32 %v3830, %v3931
    %v4036 = vmul.f32 %v3834, %v3931
    %v4037 = vmul.f32 %v3838, %v3931
    %v4038 = vmul.f32 %v3842, %v3931
    %v4039 = vmul.f32 %v3846, %v3931
    %v4040 = vmul.f32 %v3850, %v3931
    %v4041 = vmul.f32 %v3854, %v3931
    %v4042 = vmul.f32 %v3858, %v3931
    %v4043 = vmul.f32 %v3862, %v3931
    %v4044 = vmul.f32 %v3866, %v3931
    %v4045 = vmul.f32 %v3870, %v3931
    %v4046 = vmul.f32 %v3874, %v3931
    %v4047 = vmul.f32 %v3878, %v3931
    %v4048 = vmul.f32 %v3882, %v3931
    %v4049 = vmul.f32 %v3886, %v3931
    %v4050 = vmul.f32 %v3890, %v3931
    %v4051 = vmul.f32 %v3894, %v3931
    %v4052 = vmul.f32 %v3898, %v3931
    %v4053 = vmul.f32 %v3902, %v3931
    %v4054 = vmul.f32 %v3906, %v3931
    %v4055 = vmul.f32 %v3910, %v3931
    %v4056 = vmul.f32 %v3914, %v3931
    %v4057 = vmul.f32 %v3918, %v3931
    %v4058 = vmul.f32 %v3922, %v3931
    %v4059 = vmul.f32 %v3926, %v3931
    %v4060 = vadd.f32 %v3288, %v3932
    %v4061 = vadd.f32 %v3289, %v3933
    %v4062 = vadd.f32 %v3290, %v3934
    %v4063 = vadd.f32 %v3291, %v3935
    %v4064 = vadd.f32 %v3292, %v3936
    %v4065 = vadd.f32 %v3293, %v3937
    %v4066 = vadd.f32 %v3294, %v3938
    %v4067 = vadd.f32 %v3295, %v3939
    %v4068 = vadd.f32 %v3296, %v3940
    %v4069 = vadd.f32 %v3297, %v3941
    %v4070 = vadd.f32 %v3298, %v3942
    %v4071 = vadd.f32 %v3299, %v3943
    %v4072 = vadd.f32 %v3300, %v3944
    %v4073 = vadd.f32 %v3301, %v3945
    %v4074 = vadd.f32 %v3302, %v3946
    %v4075 = vadd.f32 %v3303, %v3947
    %v4076 = vadd.f32 %v3304, %v3948
    %v4077 = vadd.f32 %v3305, %v3949
    %v4078 = vadd.f32 %v3306, %v3950
    %v4079 = vadd.f32 %v3307, %v3951
    %v4080 = vadd.f32 %v3308, %v3952
    %v4081 = vadd.f32 %v3309, %v3953
    %v4082 = vadd.f32 %v3310, %v3954
    %v4083 = vadd.f32 %v3311, %v3955
    %v4084 = vadd.f32 %v3312, %v3956
    %v4085 = vadd.f32 %v3313, %v3957
    %v4086 = vadd.f32 %v3314, %v3958
    %v4087 = vadd.f32 %v3315, %v3959
    %v4088 = vadd.f32 %v3316, %v3960
    %v4089 = vadd.f32 %v3317, %v3961
    %v4090 = vadd.f32 %v3318, %v3962
    %v4091 = vadd.f32 %v3319, %v3963
    %v4092 = vadd.f32 %v3320, %v3964
    %v4093 = vadd.f32 %v3321, %v3965
    %v4094 = vadd.f32 %v3322, %v3966
    %v4095 = vadd.f32 %v3323, %v3967
    %v4096 = vadd.f32 %v3324, %v3968
    %v4097 = vadd.f32 %v3325, %v3969
    %v4098 = vadd.f32 %v3326, %v3970
    %v4099 = vadd.f32 %v3327, %v3971
    %v4100 = vadd.f32 %v3328, %v3972
    %v4101 = vadd.f32 %v3329, %v3973
    %v4102 = vadd.f32 %v3330, %v3974
    %v4103 = vadd.f32 %v3331, %v3975
    %v4104 = vadd.f32 %v3332, %v3976
    %v4105 = vadd.f32 %v3333, %v3977
    %v4106 = vadd.f32 %v3334, %v3978
    %v4107 = vadd.f32 %v3335, %v3979
    %v4108 = vadd.f32 %v3336, %v3980
    %v4109 = vadd.f32 %v3337, %v3981
    %v4110 = vadd.f32 %v3338, %v3982
    %v4111 = vadd.f32 %v3339, %v3983
    %v4112 = vadd.f32 %v3340, %v3984
    %v4113 = vadd.f32 %v3341, %v3985
    %v4114 = vadd.f32 %v3342, %v3986
    %v4115 = vadd.f32 %v3343, %v3987
    %v4116 = vadd.f32 %v3344, %v3988
    %v4117 = vadd.f32 %v3345, %v3989
    %v4118 = vadd.f32 %v3346, %v3990
    %v4119 = vadd.f32 %v3347, %v3991
    %v4120 = vadd.f32 %v3348, %v3992
    %v4121 = vadd.f32 %v3349, %v3993
    %v4122 = vadd.f32 %v3350, %v3994
    %v4123 = vadd.f32 %v3351, %v3995
    %v4124 = vadd.f32 %v3352, %v3996
    %v4125 = vadd.f32 %v3353, %v3997
    %v4126 = vadd.f32 %v3354, %v3998
    %v4127 = vadd.f32 %v3355, %v3999
    %v4128 = vadd.f32 %v3356, %v4000
    %v4129 = vadd.f32 %v3357, %v4001
    %v4130 = vadd.f32 %v3358, %v4002
    %v4131 = vadd.f32 %v3359, %v4003
    %v4132 = vadd.f32 %v3360, %v4004
    %v4133 = vadd.f32 %v3361, %v4005
    %v4134 = vadd.f32 %v3362, %v4006
    %v4135 = vadd.f32 %v3363, %v4007
    %v4136 = vadd.f32 %v3364, %v4008
    %v4137 = vadd.f32 %v3365, %v4009
    %v4138 = vadd.f32 %v3366, %v4010
    %v4139 = vadd.f32 %v3367, %v4011
    %v4140 = vadd.f32 %v3368, %v4012
    %v4141 = vadd.f32 %v3369, %v4013
    %v4142 = vadd.f32 %v3370, %v4014
    %v4143 = vadd.f32 %v3371, %v4015
    %v4144 = vadd.f32 %v3372, %v4016
    %v4145 = vadd.f32 %v3373, %v4017
    %v4146 = vadd.f32 %v3374, %v4018
    %v4147 = vadd.f32 %v3375, %v4019
    %v4148 = vadd.f32 %v3376, %v4020
    %v4149 = vadd.f32 %v3377, %v4021
    %v4150 = vadd.f32 %v3378, %v4022
    %v4151 = vadd.f32 %v3379, %v4023
    %v4152 = vadd.f32 %v3380, %v4024
    %v4153 = vadd.f32 %v3381, %v4025
    %v4154 = vadd.f32 %v3382, %v4026
    %v4155 = vadd.f32 %v3383, %v4027
    %v4156 = vadd.f32 %v3384, %v4028
    %v4157 = vadd.f32 %v3385, %v4029
    %v4158 = vadd.f32 %v3386, %v4030
    %v4159 = vadd.f32 %v3387, %v4031
    %v4160 = vadd.f32 %v3388, %v4032
    %v4161 = vadd.f32 %v3389, %v4033
    %v4162 = vadd.f32 %v3390, %v4034
    %v4163 = vadd.f32 %v3391, %v4035
    %v4164 = vadd.f32 %v3392, %v4036
    %v4165 = vadd.f32 %v3393, %v4037
    %v4166 = vadd.f32 %v3394, %v4038
    %v4167 = vadd.f32 %v3395, %v4039
    %v4168 = vadd.f32 %v3396, %v4040
    %v4169 = vadd.f32 %v3397, %v4041
    %v4170 = vadd.f32 %v3398, %v4042
    %v4171 = vadd.f32 %v3399, %v4043
    %v4172 = vadd.f32 %v3400, %v4044
    %v4173 = vadd.f32 %v3401, %v4045
    %v4174 = vadd.f32 %v3402, %v4046
    %v4175 = vadd.f32 %v3403, %v4047
    %v4176 = vadd.f32 %v3404, %v4048
    %v4177 = vadd.f32 %v3405, %v4049
    %v4178 = vadd.f32 %v3406, %v4050
    %v4179 = vadd.f32 %v3407, %v4051
    %v4180 = vadd.f32 %v3408, %v4052
    %v4181 = vadd.f32 %v3409, %v4053
    %v4182 = vadd.f32 %v3410, %v4054
    %v4183 = vadd.f32 %v3411, %v4055
    %v4184 = vadd.f32 %v3412, %v4056
    %v4185 = vadd.f32 %v3413, %v4057
    %v4186 = vadd.f32 %v3414, %v4058
    %v4187 = vadd.f32 %v3415, %v4059
    %v4188 = vld [vmem:[%s5] sm:$0x1]
    %v4190 = vlaneseq
    %v4191 = vshrl.u32 %v4190, 7
    %v4192 = vsub.s32 0, %v4191
    %v4193 = vrot.slane %v4188, %v4192
    %v4195 = vadd.f32 %v4060, %v4193
    %v4196 = vadd.f32 %v4061, %v4193
    %v4197 = vadd.f32 %v4062, %v4193
    %v4198 = vadd.f32 %v4063, %v4193
    %v4199 = vadd.f32 %v4064, %v4193
    %v4200 = vadd.f32 %v4065, %v4193
    %v4201 = vadd.f32 %v4066, %v4193
    %v4202 = vadd.f32 %v4067, %v4193
    %v4203 = vadd.f32 %v4068, %v4193
    %v4204 = vadd.f32 %v4069, %v4193
    %v4205 = vadd.f32 %v4070, %v4193
    %v4206 = vadd.f32 %v4071, %v4193
    %v4207 = vadd.f32 %v4072, %v4193
    %v4208 = vadd.f32 %v4073, %v4193
    %v4209 = vadd.f32 %v4074, %v4193
    %v4210 = vadd.f32 %v4075, %v4193
    %v4211 = vadd.f32 %v4076, %v4193
    %v4212 = vadd.f32 %v4077, %v4193
    %v4213 = vadd.f32 %v4078, %v4193
    %v4214 = vadd.f32 %v4079, %v4193
    %v4215 = vadd.f32 %v4080, %v4193
    %v4216 = vadd.f32 %v4081, %v4193
    %v4217 = vadd.f32 %v4082, %v4193
    %v4218 = vadd.f32 %v4083, %v4193
    %v4219 = vadd.f32 %v4084, %v4193
    %v4220 = vadd.f32 %v4085, %v4193
    %v4221 = vadd.f32 %v4086, %v4193
    %v4222 = vadd.f32 %v4087, %v4193
    %v4223 = vadd.f32 %v4088, %v4193
    %v4224 = vadd.f32 %v4089, %v4193
    %v4225 = vadd.f32 %v4090, %v4193
    %v4226 = vadd.f32 %v4091, %v4193
    %v4227 = vadd.f32 %v4092, %v4193
    %v4228 = vadd.f32 %v4093, %v4193
    %v4229 = vadd.f32 %v4094, %v4193
    %v4230 = vadd.f32 %v4095, %v4193
    %v4231 = vadd.f32 %v4096, %v4193
    %v4232 = vadd.f32 %v4097, %v4193
    %v4233 = vadd.f32 %v4098, %v4193
    %v4234 = vadd.f32 %v4099, %v4193
    %v4235 = vadd.f32 %v4100, %v4193
    %v4236 = vadd.f32 %v4101, %v4193
    %v4237 = vadd.f32 %v4102, %v4193
    %v4238 = vadd.f32 %v4103, %v4193
    %v4239 = vadd.f32 %v4104, %v4193
    %v4240 = vadd.f32 %v4105, %v4193
    %v4241 = vadd.f32 %v4106, %v4193
    %v4242 = vadd.f32 %v4107, %v4193
    %v4243 = vadd.f32 %v4108, %v4193
    %v4244 = vadd.f32 %v4109, %v4193
    %v4245 = vadd.f32 %v4110, %v4193
    %v4246 = vadd.f32 %v4111, %v4193
    %v4247 = vadd.f32 %v4112, %v4193
    %v4248 = vadd.f32 %v4113, %v4193
    %v4249 = vadd.f32 %v4114, %v4193
    %v4250 = vadd.f32 %v4115, %v4193
    %v4251 = vadd.f32 %v4116, %v4193
    %v4252 = vadd.f32 %v4117, %v4193
    %v4253 = vadd.f32 %v4118, %v4193
    %v4254 = vadd.f32 %v4119, %v4193
    %v4255 = vadd.f32 %v4120, %v4193
    %v4256 = vadd.f32 %v4121, %v4193
    %v4257 = vadd.f32 %v4122, %v4193
    %v4258 = vadd.f32 %v4123, %v4193
    %v4259 = vadd.f32 %v4124, %v4193
    %v4260 = vadd.f32 %v4125, %v4193
    %v4261 = vadd.f32 %v4126, %v4193
    %v4262 = vadd.f32 %v4127, %v4193
    %v4263 = vadd.f32 %v4128, %v4193
    %v4264 = vadd.f32 %v4129, %v4193
    %v4265 = vadd.f32 %v4130, %v4193
    %v4266 = vadd.f32 %v4131, %v4193
    %v4267 = vadd.f32 %v4132, %v4193
    %v4268 = vadd.f32 %v4133, %v4193
    %v4269 = vadd.f32 %v4134, %v4193
    %v4270 = vadd.f32 %v4135, %v4193
    %v4271 = vadd.f32 %v4136, %v4193
    %v4272 = vadd.f32 %v4137, %v4193
    %v4273 = vadd.f32 %v4138, %v4193
    %v4274 = vadd.f32 %v4139, %v4193
    %v4275 = vadd.f32 %v4140, %v4193
    %v4276 = vadd.f32 %v4141, %v4193
    %v4277 = vadd.f32 %v4142, %v4193
    %v4278 = vadd.f32 %v4143, %v4193
    %v4279 = vadd.f32 %v4144, %v4193
    %v4280 = vadd.f32 %v4145, %v4193
    %v4281 = vadd.f32 %v4146, %v4193
    %v4282 = vadd.f32 %v4147, %v4193
    %v4283 = vadd.f32 %v4148, %v4193
    %v4284 = vadd.f32 %v4149, %v4193
    %v4285 = vadd.f32 %v4150, %v4193
    %v4286 = vadd.f32 %v4151, %v4193
    %v4287 = vadd.f32 %v4152, %v4193
    %v4288 = vadd.f32 %v4153, %v4193
    %v4289 = vadd.f32 %v4154, %v4193
    %v4290 = vadd.f32 %v4155, %v4193
    %v4291 = vadd.f32 %v4156, %v4193
    %v4292 = vadd.f32 %v4157, %v4193
    %v4293 = vadd.f32 %v4158, %v4193
    %v4294 = vadd.f32 %v4159, %v4193
    %v4295 = vadd.f32 %v4160, %v4193
    %v4296 = vadd.f32 %v4161, %v4193
    %v4297 = vadd.f32 %v4162, %v4193
    %v4298 = vadd.f32 %v4163, %v4193
    %v4299 = vadd.f32 %v4164, %v4193
    %v4300 = vadd.f32 %v4165, %v4193
    %v4301 = vadd.f32 %v4166, %v4193
    %v4302 = vadd.f32 %v4167, %v4193
    %v4303 = vadd.f32 %v4168, %v4193
    %v4304 = vadd.f32 %v4169, %v4193
    %v4305 = vadd.f32 %v4170, %v4193
    %v4306 = vadd.f32 %v4171, %v4193
    %v4307 = vadd.f32 %v4172, %v4193
    %v4308 = vadd.f32 %v4173, %v4193
    %v4309 = vadd.f32 %v4174, %v4193
    %v4310 = vadd.f32 %v4175, %v4193
    %v4311 = vadd.f32 %v4176, %v4193
    %v4312 = vadd.f32 %v4177, %v4193
    %v4313 = vadd.f32 %v4178, %v4193
    %v4314 = vadd.f32 %v4179, %v4193
    %v4315 = vadd.f32 %v4180, %v4193
    %v4316 = vadd.f32 %v4181, %v4193
    %v4317 = vadd.f32 %v4182, %v4193
    %v4318 = vadd.f32 %v4183, %v4193
    %v4319 = vadd.f32 %v4184, %v4193
    %v4320 = vadd.f32 %v4185, %v4193
    %v4321 = vadd.f32 %v4186, %v4193
    %v4322 = vadd.f32 %v4187, %v4193
    %v4323 = vtanh.pop %v4195
    %v4324 = vtanh.pop %v4196
    %v4325 = vtanh.pop %v4197
    %v4326 = vtanh.pop %v4198
    %v4327 = vtanh.pop %v4199
    %v4328 = vtanh.pop %v4200
    %v4329 = vtanh.pop %v4201
    %v4330 = vtanh.pop %v4202
    %v4331 = vtanh.pop %v4203
    %v4332 = vtanh.pop %v4204
    %v4333 = vtanh.pop %v4205
    %v4334 = vtanh.pop %v4206
    %v4335 = vtanh.pop %v4207
    %v4336 = vtanh.pop %v4208
    %v4337 = vtanh.pop %v4209
    %v4338 = vtanh.pop %v4210
    %v4339 = vtanh.pop %v4211
    %v4340 = vtanh.pop %v4212
    %v4341 = vtanh.pop %v4213
    %v4342 = vtanh.pop %v4214
    %v4343 = vtanh.pop %v4215
    %v4344 = vtanh.pop %v4216
    %v4345 = vtanh.pop %v4217
    %v4346 = vtanh.pop %v4218
    %v4347 = vtanh.pop %v4219
    %v4348 = vtanh.pop %v4220
    %v4349 = vtanh.pop %v4221
    %v4350 = vtanh.pop %v4222
    %v4351 = vtanh.pop %v4223
    %v4352 = vtanh.pop %v4224
    %v4353 = vtanh.pop %v4225
    %v4354 = vtanh.pop %v4226
    %v4355 = vtanh.pop %v4227
    %v4356 = vtanh.pop %v4228
    %v4357 = vtanh.pop %v4229
    %v4358 = vtanh.pop %v4230
    %v4359 = vtanh.pop %v4231
    %v4360 = vtanh.pop %v4232
    %v4361 = vtanh.pop %v4233
    %v4362 = vtanh.pop %v4234
    %v4363 = vtanh.pop %v4235
    %v4364 = vtanh.pop %v4236
    %v4365 = vtanh.pop %v4237
    %v4366 = vtanh.pop %v4238
    %v4367 = vtanh.pop %v4239
    %v4368 = vtanh.pop %v4240
    %v4369 = vtanh.pop %v4241
    %v4370 = vtanh.pop %v4242
    %v4371 = vtanh.pop %v4243
    %v4372 = vtanh.pop %v4244
    %v4373 = vtanh.pop %v4245
    %v4374 = vtanh.pop %v4246
    %v4375 = vtanh.pop %v4247
    %v4376 = vtanh.pop %v4248
    %v4377 = vtanh.pop %v4249
    %v4378 = vtanh.pop %v4250
    %v4379 = vtanh.pop %v4251
    %v4380 = vtanh.pop %v4252
    %v4381 = vtanh.pop %v4253
    %v4382 = vtanh.pop %v4254
    %v4383 = vtanh.pop %v4255
    %v4384 = vtanh.pop %v4256
    %v4385 = vtanh.pop %v4257
    %v4386 = vtanh.pop %v4258
    %v4387 = vtanh.pop %v4259
    %v4388 = vtanh.pop %v4260
    %v4389 = vtanh.pop %v4261
    %v4390 = vtanh.pop %v4262
    %v4391 = vtanh.pop %v4263
    %v4392 = vtanh.pop %v4264
    %v4393 = vtanh.pop %v4265
    %v4394 = vtanh.pop %v4266
    %v4395 = vtanh.pop %v4267
    %v4396 = vtanh.pop %v4268
    %v4397 = vtanh.pop %v4269
    %v4398 = vtanh.pop %v4270
    %v4399 = vtanh.pop %v4271
    %v4400 = vtanh.pop %v4272
    %v4401 = vtanh.pop %v4273
    %v4402 = vtanh.pop %v4274
    %v4403 = vtanh.pop %v4275
    %v4404 = vtanh.pop %v4276
    %v4405 = vtanh.pop %v4277
    %v4406 = vtanh.pop %v4278
    %v4407 = vtanh.pop %v4279
    %v4408 = vtanh.pop %v4280
    %v4409 = vtanh.pop %v4281
    %v4410 = vtanh.pop %v4282
    %v4411 = vtanh.pop %v4283
    %v4412 = vtanh.pop %v4284
    %v4413 = vtanh.pop %v4285
    %v4414 = vtanh.pop %v4286
    %v4415 = vtanh.pop %v4287
    %v4416 = vtanh.pop %v4288
    %v4417 = vtanh.pop %v4289
    %v4418 = vtanh.pop %v4290
    %v4419 = vtanh.pop %v4291
    %v4420 = vtanh.pop %v4292
    %v4421 = vtanh.pop %v4293
    %v4422 = vtanh.pop %v4294
    %v4423 = vtanh.pop %v4295
    %v4424 = vtanh.pop %v4296
    %v4425 = vtanh.pop %v4297
    %v4426 = vtanh.pop %v4298
    %v4427 = vtanh.pop %v4299
    %v4428 = vtanh.pop %v4300
    %v4429 = vtanh.pop %v4301
    %v4430 = vtanh.pop %v4302
    %v4431 = vtanh.pop %v4303
    %v4432 = vtanh.pop %v4304
    %v4433 = vtanh.pop %v4305
    %v4434 = vtanh.pop %v4306
    %v4435 = vtanh.pop %v4307
    %v4436 = vtanh.pop %v4308
    %v4437 = vtanh.pop %v4309
    %v4438 = vtanh.pop %v4310
    %v4439 = vtanh.pop %v4311
    %v4440 = vtanh.pop %v4312
    %v4441 = vtanh.pop %v4313
    %v4442 = vtanh.pop %v4314
    %v4443 = vtanh.pop %v4315
    %v4444 = vtanh.pop %v4316
    %v4445 = vtanh.pop %v4317
    %v4446 = vtanh.pop %v4318
    %v4447 = vtanh.pop %v4319
    %v4448 = vtanh.pop %v4320
    %v4449 = vtanh.pop %v4321
    %v4450 = vtanh.pop %v4322
    %v4451 = vpack.c.bf16 %v4324, %v4323
    %v4452 = vpack.c.bf16 %v4326, %v4325
    %v4453 = vpack.c.bf16 %v4328, %v4327
    %v4454 = vpack.c.bf16 %v4330, %v4329
    %v4455 = vpack.c.bf16 %v4332, %v4331
    %v4456 = vpack.c.bf16 %v4334, %v4333
    %v4457 = vpack.c.bf16 %v4336, %v4335
    %v4458 = vpack.c.bf16 %v4338, %v4337
    %v4459 = vpack.c.bf16 %v4340, %v4339
    %v4460 = vpack.c.bf16 %v4342, %v4341
    %v4461 = vpack.c.bf16 %v4344, %v4343
    %v4462 = vpack.c.bf16 %v4346, %v4345
    %v4463 = vpack.c.bf16 %v4348, %v4347
    %v4464 = vpack.c.bf16 %v4350, %v4349
    %v4465 = vpack.c.bf16 %v4352, %v4351
    %v4466 = vpack.c.bf16 %v4354, %v4353
    %v4467 = vpack.c.bf16 %v4356, %v4355
    %v4468 = vpack.c.bf16 %v4358, %v4357
    %v4469 = vpack.c.bf16 %v4360, %v4359
    %v4470 = vpack.c.bf16 %v4362, %v4361
    %v4471 = vpack.c.bf16 %v4364, %v4363
    %v4472 = vpack.c.bf16 %v4366, %v4365
    %v4473 = vpack.c.bf16 %v4368, %v4367
    %v4474 = vpack.c.bf16 %v4370, %v4369
    %v4475 = vpack.c.bf16 %v4372, %v4371
    %v4476 = vpack.c.bf16 %v4374, %v4373
    %v4477 = vpack.c.bf16 %v4376, %v4375
    %v4478 = vpack.c.bf16 %v4378, %v4377
    %v4479 = vpack.c.bf16 %v4380, %v4379
    %v4480 = vpack.c.bf16 %v4382, %v4381
    %v4481 = vpack.c.bf16 %v4384, %v4383
    %v4482 = vpack.c.bf16 %v4386, %v4385
    %v4483 = vpack.c.bf16 %v4388, %v4387
    %v4484 = vpack.c.bf16 %v4390, %v4389
    %v4485 = vpack.c.bf16 %v4392, %v4391
    %v4486 = vpack.c.bf16 %v4394, %v4393
    %v4487 = vpack.c.bf16 %v4396, %v4395
    %v4488 = vpack.c.bf16 %v4398, %v4397
    %v4489 = vpack.c.bf16 %v4400, %v4399
    %v4490 = vpack.c.bf16 %v4402, %v4401
    %v4491 = vpack.c.bf16 %v4404, %v4403
    %v4492 = vpack.c.bf16 %v4406, %v4405
    %v4493 = vpack.c.bf16 %v4408, %v4407
    %v4494 = vpack.c.bf16 %v4410, %v4409
    %v4495 = vpack.c.bf16 %v4412, %v4411
    %v4496 = vpack.c.bf16 %v4414, %v4413
    %v4497 = vpack.c.bf16 %v4416, %v4415
    %v4498 = vpack.c.bf16 %v4418, %v4417
    %v4499 = vpack.c.bf16 %v4420, %v4419
    %v4500 = vpack.c.bf16 %v4422, %v4421
    %v4501 = vpack.c.bf16 %v4424, %v4423
    %v4502 = vpack.c.bf16 %v4426, %v4425
    %v4503 = vpack.c.bf16 %v4428, %v4427
    %v4504 = vpack.c.bf16 %v4430, %v4429
    %v4505 = vpack.c.bf16 %v4432, %v4431
    %v4506 = vpack.c.bf16 %v4434, %v4433
    %v4507 = vpack.c.bf16 %v4436, %v4435
    %v4508 = vpack.c.bf16 %v4438, %v4437
    %v4509 = vpack.c.bf16 %v4440, %v4439
    %v4510 = vpack.c.bf16 %v4442, %v4441
    %v4511 = vpack.c.bf16 %v4444, %v4443
    %v4512 = vpack.c.bf16 %v4446, %v4445
    %v4513 = vpack.c.bf16 %v4448, %v4447
    %v4514 = vpack.c.bf16 %v4450, %v4449
    %v4515 = vld [vmem:[%s4] sm:$0xf]
    %v4516 = vld [vmem:[%s4 + $0x4] sm:$0xf]
    %v4517 = vld [vmem:[%s4 + $0x8] sm:$0xf]
    %v4518 = vld [vmem:[%s4 + $0xc] sm:$0xf]
    %s4519 = scalar_lea.vmem %s5, 1
    %v4520 = vld [vmem:[%s4519] sm:$0x1]
    %v4522 = vlaneseq
    %v4523 = vshrl.u32 %v4522, 7
    %v4524 = vsub.s32 0, %v4523
    %v4525 = vrot.slane %v4520, %v4524
    %v4531 = vunpack.c.l.b16 %v4515
    %v4532 = vunpack.c.l.b16 %v4516
    %v4533 = vunpack.c.l.b16 %v4517
    %v4534 = vunpack.c.l.b16 %v4518
    %v4535 = vpack.c.b16 %v4532, %v4531
    %v4536 = vpack.c.b16 %v4534, %v4533
    %vm4539 = vcmask 261120
    %v4541 = vsel %vm4539, %v4451, 0
    %v4544 = vsel %vm4539, %v4452, 0
    %v4547 = vsel %vm4539, %v4453, 0
    %v4550 = vsel %vm4539, %v4454, 0
    %v4553 = vsel %vm4539, %v4455, 0
    %v4556 = vsel %vm4539, %v4456, 0
    %v4559 = vsel %vm4539, %v4457, 0
    %v4562 = vsel %vm4539, %v4458, 0
    %v4565 = vsel %vm4539, %v4459, 0
    %v4568 = vsel %vm4539, %v4460, 0
    %v4571 = vsel %vm4539, %v4461, 0
    %v4574 = vsel %vm4539, %v4462, 0
    %v4577 = vsel %vm4539, %v4463, 0
    %v4580 = vsel %vm4539, %v4464, 0
    %v4583 = vsel %vm4539, %v4465, 0
    %v4586 = vsel %vm4539, %v4466, 0
    %v4589 = vsel %vm4539, %v4467, 0
    %v4592 = vsel %vm4539, %v4468, 0
    %v4595 = vsel %vm4539, %v4469, 0
    %v4598 = vsel %vm4539, %v4470, 0
    %v4601 = vsel %vm4539, %v4471, 0
    %v4604 = vsel %vm4539, %v4472, 0
    %v4607 = vsel %vm4539, %v4473, 0
    %v4610 = vsel %vm4539, %v4474, 0
    %v4613 = vsel %vm4539, %v4475, 0
    %v4616 = vsel %vm4539, %v4476, 0
    %v4619 = vsel %vm4539, %v4477, 0
    %v4622 = vsel %vm4539, %v4478, 0
    %v4625 = vsel %vm4539, %v4479, 0
    %v4628 = vsel %vm4539, %v4480, 0
    %v4631 = vsel %vm4539, %v4481, 0
    %v4634 = vsel %vm4539, %v4482, 0
    %v4637 = vsel %vm4539, %v4483, 0
    %v4640 = vsel %vm4539, %v4484, 0
    %v4643 = vsel %vm4539, %v4485, 0
    %v4646 = vsel %vm4539, %v4486, 0
    %v4649 = vsel %vm4539, %v4487, 0
    %v4652 = vsel %vm4539, %v4488, 0
    %v4655 = vsel %vm4539, %v4489, 0
    %v4658 = vsel %vm4539, %v4490, 0
    %v4661 = vsel %vm4539, %v4491, 0
    %v4664 = vsel %vm4539, %v4492, 0
    %v4667 = vsel %vm4539, %v4493, 0
    %v4670 = vsel %vm4539, %v4494, 0
    %v4673 = vsel %vm4539, %v4495, 0
    %v4676 = vsel %vm4539, %v4496, 0
    %v4679 = vsel %vm4539, %v4497, 0
    %v4682 = vsel %vm4539, %v4498, 0
    %v4685 = vsel %vm4539, %v4499, 0
    %v4688 = vsel %vm4539, %v4500, 0
    %v4691 = vsel %vm4539, %v4501, 0
    %v4694 = vsel %vm4539, %v4502, 0
    %v4697 = vsel %vm4539, %v4503, 0
    %v4700 = vsel %vm4539, %v4504, 0
    %v4703 = vsel %vm4539, %v4505, 0
    %v4706 = vsel %vm4539, %v4506, 0
    %v4709 = vsel %vm4539, %v4507, 0
    %v4712 = vsel %vm4539, %v4508, 0
    %v4715 = vsel %vm4539, %v4509, 0
    %v4718 = vsel %vm4539, %v4510, 0
    %v4721 = vsel %vm4539, %v4511, 0
    %v4724 = vsel %vm4539, %v4512, 0
    %v4727 = vsel %vm4539, %v4513, 0
    %v4730 = vsel %vm4539, %v4514, 0
    %4732 = vmatprep.subr.bf16.mxu0 0
    %4733 = vmatpush1.bf16.msra.mxu0 %v4535
    %4734 = vmatprep.subr.bf16.mxu0 0
    %4735 = vmatpush1.bf16.msra.mxu0 %v4536
    %4736 = vmatprep.subr.bf16.mxu0 0
    %4737 = vmatpush1.bf16.msra.mxu0 0
    %4738 = vmatprep.subr.bf16.mxu0 0
    %4739 = vmatpush1.bf16.msra.mxu0 0
    %4740 = vmatprep.subr.bf16.mxu0 0
    %4741 = vmatpush1.bf16.msra.mxu0 0
    %4742 = vmatprep.subr.bf16.mxu0 0
    %4743 = vmatpush1.bf16.msra.mxu0 0
    %4744 = vmatprep.subr.bf16.mxu0 0
    %4745 = vmatpush1.bf16.msra.mxu0 0
    %4746 = vmatprep.subr.bf16.mxu0 0
    %4747 = vmatpush1.bf16.msra.mxu0 0
    %4748 = vmatprep.subr.bf16.mxu0 0
    %4749 = vmatpush1.bf16.msra.mxu0 0
    %4750 = vmatprep.subr.bf16.mxu0 0
    %4751 = vmatpush1.bf16.msra.mxu0 0
    %4752 = vmatprep.subr.bf16.mxu0 0
    %4753 = vmatpush1.bf16.msra.mxu0 0
    %4754 = vmatprep.subr.bf16.mxu0 0
    %4755 = vmatpush1.bf16.msra.mxu0 0
    %4756 = vmatprep.subr.bf16.mxu0 0
    %4757 = vmatpush1.bf16.msra.mxu0 0
    %4758 = vmatprep.subr.bf16.mxu0 0
    %4759 = vmatpush1.bf16.msra.mxu0 0
    %4760 = vmatprep.subr.bf16.mxu0 0
    %4761 = vmatpush1.bf16.msra.mxu0 0
    %4762 = vmatprep.subr.bf16.mxu0 0
    %4763 = vmatpush1.bf16.msra.mxu0 0
    %4764 = vmatprep.mubr.bf16.mxu0 0
    %4765 = vmatmul.mubr.bf16.gmra.mrb[0].mxu0 %v4541
    %v4766 = vpop.f32.mrb[0].mxu0
    %v4767 = vadd.f32 %v4525, %v4766
    %v4768 = vpop.f32.mrb[0].mxu0
    %v4769 = vpop.f32.mrb[0].mxu0
    %v4770 = vadd.f32 %v4525, %v4769
    %v4771 = vpop.f32.mrb[0].mxu0
    %4772 = vmatprep.mubr.bf16.mxu0 0
    %4773 = vmatmul.mubr.bf16.gmra.mrb[0].mxu0 %v4544
    %v4774 = vpop.f32.mrb[0].mxu0
    %v4775 = vadd.f32 %v4525, %v4774
    %v4776 = vpop.f32.mrb[0].mxu0
    %v4777 = vpop.f32.mrb[0].mxu0
    %v4778 = vadd.f32 %v4525, %v4777
    %v4779 = vpop.f32.mrb[0].mxu0
    %4780 = vmatprep.mubr.bf16.mxu0 0
    %4781 = vmatmul.mubr.bf16.gmra.mrb[0].mxu0 %v4547
    %v4782 = vpop.f32.mrb[0].mxu0
    %v4783 = vadd.f32 %v4525, %v4782
    %v4784 = vpop.f32.mrb[0].mxu0
    %v4785 = vpop.f32.mrb[0].mxu0
    %v4786 = vadd.f32 %v4525, %v4785
    %v4787 = vpop.f32.mrb[0].mxu0
    %4788 = vmatprep.mubr.bf16.mxu0 0
    %4789 = vmatmul.mubr.bf16.gmra.mrb[0].mxu0 %v4550
    %v4790 = vpop.f32.mrb[0].mxu0
    %v4791 = vadd.f32 %v4525, %v4790
    %v4792 = vpop.f32.mrb[0].mxu0
    %v4793 = vpop.f32.mrb[0].mxu0
    %v4794 = vadd.f32 %v4525, %v4793
    %v4795 = vpop.f32.mrb[0].mxu0
    %4796 = vmatprep.mubr.bf16.mxu0 0
    %4797 = vmatmul.mubr.bf16.gmra.mrb[0].mxu0 %v4553
    %v4798 = vpop.f32.mrb[0].mxu0
    %v4799 = vadd.f32 %v4525, %v4798
    %v4800 = vpop.f32.mrb[0].mxu0
    %v4801 = vpop.f32.mrb[0].mxu0
    %v4802 = vadd.f32 %v4525, %v4801
    %v4803 = vpop.f32.mrb[0].mxu0
    %4804 = vmatprep.mubr.bf16.mxu0 0
    %4805 = vmatmul.mubr.bf16.gmra.mrb[0].mxu0 %v4556
    %v4806 = vpop.f32.mrb[0].mxu0
    %v4807 = vadd.f32 %v4525, %v4806
    %v4808 = vpop.f32.mrb[0].mxu0
    %v4809 = vpop.f32.mrb[0].mxu0
    %v4810 = vadd.f32 %v4525, %v4809
    %v4811 = vpop.f32.mrb[0].mxu0
    %4812 = vmatprep.mubr.bf16.mxu0 0
    %4813 = vmatmul.mubr.bf16.gmra.mrb[0].mxu0 %v4559
    %v4814 = vpop.f32.mrb[0].mxu0
    %v4815 = vadd.f32 %v4525, %v4814
    %v4816 = vpop.f32.mrb[0].mxu0
    %v4817 = vpop.f32.mrb[0].mxu0
    %v4818 = vadd.f32 %v4525, %v4817
    %v4819 = vpop.f32.mrb[0].mxu0
    %4820 = vmatprep.mubr.bf16.mxu0 0
    %4821 = vmatmul.mubr.bf16.gmra.mrb[0].mxu0 %v4562
    %v4822 = vpop.f32.mrb[0].mxu0
    %v4823 = vadd.f32 %v4525, %v4822
    %v4824 = vpop.f32.mrb[0].mxu0
    %v4825 = vpop.f32.mrb[0].mxu0
    %v4826 = vadd.f32 %v4525, %v4825
    %v4827 = vpop.f32.mrb[0].mxu0
    %4828 = vmatprep.mubr.bf16.mxu0 0
    %4829 = vmatmul.mubr.bf16.gmra.mrb[0].mxu0 %v4565
    %v4830 = vpop.f32.mrb[0].mxu0
    %v4831 = vadd.f32 %v4525, %v4830
    %v4832 = vpop.f32.mrb[0].mxu0
    %v4833 = vpop.f32.mrb[0].mxu0
    %v4834 = vadd.f32 %v4525, %v4833
    %v4835 = vpop.f32.mrb[0].mxu0
    %4836 = vmatprep.mubr.bf16.mxu0 0
    %4837 = vmatmul.mubr.bf16.gmra.mrb[0].mxu0 %v4568
    %v4838 = vpop.f32.mrb[0].mxu0
    %v4839 = vadd.f32 %v4525, %v4838
    %v4840 = vpop.f32.mrb[0].mxu0
    %v4841 = vpop.f32.mrb[0].mxu0
    %v4842 = vadd.f32 %v4525, %v4841
    %v4843 = vpop.f32.mrb[0].mxu0
    %4844 = vmatprep.mubr.bf16.mxu0 0
    %4845 = vmatmul.mubr.bf16.gmra.mrb[0].mxu0 %v4571
    %v4846 = vpop.f32.mrb[0].mxu0
    %v4847 = vadd.f32 %v4525, %v4846
    %v4848 = vpop.f32.mrb[0].mxu0
    %v4849 = vpop.f32.mrb[0].mxu0
    %v4850 = vadd.f32 %v4525, %v4849
    %v4851 = vpop.f32.mrb[0].mxu0
    %4852 = vmatprep.mubr.bf16.mxu0 0
    %4853 = vmatmul.mubr.bf16.gmra.mrb[0].mxu0 %v4574
    %v4854 = vpop.f32.mrb[0].mxu0
    %v4855 = vadd.f32 %v4525, %v4854
    %v4856 = vpop.f32.mrb[0].mxu0
    %v4857 = vpop.f32.mrb[0].mxu0
    %v4858 = vadd.f32 %v4525, %v4857
    %v4859 = vpop.f32.mrb[0].mxu0
    %4860 = vmatprep.mubr.bf16.mxu0 0
    %4861 = vmatmul.mubr.bf16.gmra.mrb[0].mxu0 %v4577
    %v4862 = vpop.f32.mrb[0].mxu0
    %v4863 = vadd.f32 %v4525, %v4862
    %v4864 = vpop.f32.mrb[0].mxu0
    %v4865 = vpop.f32.mrb[0].mxu0
    %v4866 = vadd.f32 %v4525, %v4865
    %v4867 = vpop.f32.mrb[0].mxu0
    %4868 = vmatprep.mubr.bf16.mxu0 0
    %4869 = vmatmul.mubr.bf16.gmra.mrb[0].mxu0 %v4580
    %v4870 = vpop.f32.mrb[0].mxu0
    %v4871 = vadd.f32 %v4525, %v4870
    %v4872 = vpop.f32.mrb[0].mxu0
    %v4873 = vpop.f32.mrb[0].mxu0
    %v4874 = vadd.f32 %v4525, %v4873
    %v4875 = vpop.f32.mrb[0].mxu0
    %4876 = vmatprep.mubr.bf16.mxu0 0
    %4877 = vmatmul.mubr.bf16.gmra.mrb[0].mxu0 %v4583
    %v4878 = vpop.f32.mrb[0].mxu0
    %v4879 = vadd.f32 %v4525, %v4878
    %v4880 = vpop.f32.mrb[0].mxu0
    %v4881 = vpop.f32.mrb[0].mxu0
    %v4882 = vadd.f32 %v4525, %v4881
    %v4883 = vpop.f32.mrb[0].mxu0
    %4884 = vmatprep.mubr.bf16.mxu0 0
    %4885 = vmatmul.mubr.bf16.gmra.mrb[0].mxu0 %v4586
    %v4886 = vpop.f32.mrb[0].mxu0
    %v4887 = vadd.f32 %v4525, %v4886
    %v4888 = vpop.f32.mrb[0].mxu0
    %v4889 = vpop.f32.mrb[0].mxu0
    %v4890 = vadd.f32 %v4525, %v4889
    %v4891 = vpop.f32.mrb[0].mxu0
    %4892 = vmatprep.mubr.bf16.mxu0 0
    %4893 = vmatmul.mubr.bf16.gmra.mrb[0].mxu0 %v4589
    %v4894 = vpop.f32.mrb[0].mxu0
    %v4895 = vadd.f32 %v4525, %v4894
    %v4896 = vpop.f32.mrb[0].mxu0
    %v4897 = vpop.f32.mrb[0].mxu0
    %v4898 = vadd.f32 %v4525, %v4897
    %v4899 = vpop.f32.mrb[0].mxu0
    %4900 = vmatprep.mubr.bf16.mxu0 0
    %4901 = vmatmul.mubr.bf16.gmra.mrb[0].mxu0 %v4592
    %v4902 = vpop.f32.mrb[0].mxu0
    %v4903 = vadd.f32 %v4525, %v4902
    %v4904 = vpop.f32.mrb[0].mxu0
    %v4905 = vpop.f32.mrb[0].mxu0
    %v4906 = vadd.f32 %v4525, %v4905
    %v4907 = vpop.f32.mrb[0].mxu0
    %4908 = vmatprep.mubr.bf16.mxu0 0
    %4909 = vmatmul.mubr.bf16.gmra.mrb[0].mxu0 %v4595
    %v4910 = vpop.f32.mrb[0].mxu0
    %v4911 = vadd.f32 %v4525, %v4910
    %v4912 = vpop.f32.mrb[0].mxu0
    %v4913 = vpop.f32.mrb[0].mxu0
    %v4914 = vadd.f32 %v4525, %v4913
    %v4915 = vpop.f32.mrb[0].mxu0
    %4916 = vmatprep.mubr.bf16.mxu0 0
    %4917 = vmatmul.mubr.bf16.gmra.mrb[0].mxu0 %v4598
    %v4918 = vpop.f32.mrb[0].mxu0
    %v4919 = vadd.f32 %v4525, %v4918
    %v4920 = vpop.f32.mrb[0].mxu0
    %v4921 = vpop.f32.mrb[0].mxu0
    %v4922 = vadd.f32 %v4525, %v4921
    %v4923 = vpop.f32.mrb[0].mxu0
    %4924 = vmatprep.mubr.bf16.mxu0 0
    %4925 = vmatmul.mubr.bf16.gmra.mrb[0].mxu0 %v4601
    %v4926 = vpop.f32.mrb[0].mxu0
    %v4927 = vadd.f32 %v4525, %v4926
    %v4928 = vpop.f32.mrb[0].mxu0
    %v4929 = vpop.f32.mrb[0].mxu0
    %v4930 = vadd.f32 %v4525, %v4929
    %v4931 = vpop.f32.mrb[0].mxu0
    %4932 = vmatprep.mubr.bf16.mxu0 0
    %4933 = vmatmul.mubr.bf16.gmra.mrb[0].mxu0 %v4604
    %v4934 = vpop.f32.mrb[0].mxu0
    %v4935 = vadd.f32 %v4525, %v4934
    %v4936 = vpop.f32.mrb[0].mxu0
    %v4937 = vpop.f32.mrb[0].mxu0
    %v4938 = vadd.f32 %v4525, %v4937
    %v4939 = vpop.f32.mrb[0].mxu0
    %4940 = vmatprep.mubr.bf16.mxu0 0
    %4941 = vmatmul.mubr.bf16.gmra.mrb[0].mxu0 %v4607
    %v4942 = vpop.f32.mrb[0].mxu0
    %v4943 = vadd.f32 %v4525, %v4942
    %v4944 = vpop.f32.mrb[0].mxu0
    %v4945 = vpop.f32.mrb[0].mxu0
    %v4946 = vadd.f32 %v4525, %v4945
    %v4947 = vpop.f32.mrb[0].mxu0
    %4948 = vmatprep.mubr.bf16.mxu0 0
    %4949 = vmatmul.mubr.bf16.gmra.mrb[0].mxu0 %v4610
    %v4950 = vpop.f32.mrb[0].mxu0
    %v4951 = vadd.f32 %v4525, %v4950
    %v4952 = vpop.f32.mrb[0].mxu0
    %v4953 = vpop.f32.mrb[0].mxu0
    %v4954 = vadd.f32 %v4525, %v4953
    %v4955 = vpop.f32.mrb[0].mxu0
    %4956 = vmatprep.mubr.bf16.mxu0 0
    %4957 = vmatmul.mubr.bf16.gmra.mrb[0].mxu0 %v4613
    %v4958 = vpop.f32.mrb[0].mxu0
    %v4959 = vadd.f32 %v4525, %v4958
    %v4960 = vpop.f32.mrb[0].mxu0
    %v4961 = vpop.f32.mrb[0].mxu0
    %v4962 = vadd.f32 %v4525, %v4961
    %v4963 = vpop.f32.mrb[0].mxu0
    %4964 = vmatprep.mubr.bf16.mxu0 0
    %4965 = vmatmul.mubr.bf16.gmra.mrb[0].mxu0 %v4616
    %v4966 = vpop.f32.mrb[0].mxu0
    %v4967 = vadd.f32 %v4525, %v4966
    %v4968 = vpop.f32.mrb[0].mxu0
    %v4969 = vpop.f32.mrb[0].mxu0
    %v4970 = vadd.f32 %v4525, %v4969
    %v4971 = vpop.f32.mrb[0].mxu0
    %4972 = vmatprep.mubr.bf16.mxu0 0
    %4973 = vmatmul.mubr.bf16.gmra.mrb[0].mxu0 %v4619
    %v4974 = vpop.f32.mrb[0].mxu0
    %v4975 = vadd.f32 %v4525, %v4974
    %v4976 = vpop.f32.mrb[0].mxu0
    %v4977 = vpop.f32.mrb[0].mxu0
    %v4978 = vadd.f32 %v4525, %v4977
    %v4979 = vpop.f32.mrb[0].mxu0
    %4980 = vmatprep.mubr.bf16.mxu0 0
    %4981 = vmatmul.mubr.bf16.gmra.mrb[0].mxu0 %v4622
    %v4982 = vpop.f32.mrb[0].mxu0
    %v4983 = vadd.f32 %v4525, %v4982
    %v4984 = vpop.f32.mrb[0].mxu0
    %v4985 = vpop.f32.mrb[0].mxu0
    %v4986 = vadd.f32 %v4525, %v4985
    %v4987 = vpop.f32.mrb[0].mxu0
    %4988 = vmatprep.mubr.bf16.mxu0 0
    %4989 = vmatmul.mubr.bf16.gmra.mrb[0].mxu0 %v4625
    %v4990 = vpop.f32.mrb[0].mxu0
    %v4991 = vadd.f32 %v4525, %v4990
    %v4992 = vpop.f32.mrb[0].mxu0
    %v4993 = vpop.f32.mrb[0].mxu0
    %v4994 = vadd.f32 %v4525, %v4993
    %v4995 = vpop.f32.mrb[0].mxu0
    %4996 = vmatprep.mubr.bf16.mxu0 0
    %4997 = vmatmul.mubr.bf16.gmra.mrb[0].mxu0 %v4628
    %v4998 = vpop.f32.mrb[0].mxu0
    %v4999 = vadd.f32 %v4525, %v4998
    %v5000 = vpop.f32.mrb[0].mxu0
    %v5001 = vpop.f32.mrb[0].mxu0
    %v5002 = vadd.f32 %v4525, %v5001
    %v5003 = vpop.f32.mrb[0].mxu0
    %5004 = vmatprep.mubr.bf16.mxu0 0
    %5005 = vmatmul.mubr.bf16.gmra.mrb[0].mxu0 %v4631
    %v5006 = vpop.f32.mrb[0].mxu0
    %v5007 = vadd.f32 %v4525, %v5006
    %v5008 = vpop.f32.mrb[0].mxu0
    %v5009 = vpop.f32.mrb[0].mxu0
    %v5010 = vadd.f32 %v4525, %v5009
    %v5011 = vpop.f32.mrb[0].mxu0
    %5012 = vmatprep.mubr.bf16.mxu0 0
    %5013 = vmatmul.mubr.bf16.gmra.mrb[0].mxu0 %v4634
    %v5014 = vpop.f32.mrb[0].mxu0
    %v5015 = vadd.f32 %v4525, %v5014
    %v5016 = vpop.f32.mrb[0].mxu0
    %v5017 = vpop.f32.mrb[0].mxu0
    %v5018 = vadd.f32 %v4525, %v5017
    %v5019 = vpop.f32.mrb[0].mxu0
    %5020 = vmatprep.mubr.bf16.mxu0 0
    %5021 = vmatmul.mubr.bf16.gmra.mrb[0].mxu0 %v4637
    %v5022 = vpop.f32.mrb[0].mxu0
    %v5023 = vadd.f32 %v4525, %v5022
    %v5024 = vpop.f32.mrb[0].mxu0
    %v5025 = vpop.f32.mrb[0].mxu0
    %v5026 = vadd.f32 %v4525, %v5025
    %v5027 = vpop.f32.mrb[0].mxu0
    %5028 = vmatprep.mubr.bf16.mxu0 0
    %5029 = vmatmul.mubr.bf16.gmra.mrb[0].mxu0 %v4640
    %v5030 = vpop.f32.mrb[0].mxu0
    %v5031 = vadd.f32 %v4525, %v5030
    %v5032 = vpop.f32.mrb[0].mxu0
    %v5033 = vpop.f32.mrb[0].mxu0
    %v5034 = vadd.f32 %v4525, %v5033
    %v5035 = vpop.f32.mrb[0].mxu0
    %5036 = vmatprep.mubr.bf16.mxu0 0
    %5037 = vmatmul.mubr.bf16.gmra.mrb[0].mxu0 %v4643
    %v5038 = vpop.f32.mrb[0].mxu0
    %v5039 = vadd.f32 %v4525, %v5038
    %v5040 = vpop.f32.mrb[0].mxu0
    %v5041 = vpop.f32.mrb[0].mxu0
    %v5042 = vadd.f32 %v4525, %v5041
    %v5043 = vpop.f32.mrb[0].mxu0
    %5044 = vmatprep.mubr.bf16.mxu0 0
    %5045 = vmatmul.mubr.bf16.gmra.mrb[0].mxu0 %v4646
    %v5046 = vpop.f32.mrb[0].mxu0
    %v5047 = vadd.f32 %v4525, %v5046
    %v5048 = vpop.f32.mrb[0].mxu0
    %v5049 = vpop.f32.mrb[0].mxu0
    %v5050 = vadd.f32 %v4525, %v5049
    %v5051 = vpop.f32.mrb[0].mxu0
    %5052 = vmatprep.mubr.bf16.mxu0 0
    %5053 = vmatmul.mubr.bf16.gmra.mrb[0].mxu0 %v4649
    %v5054 = vpop.f32.mrb[0].mxu0
    %v5055 = vadd.f32 %v4525, %v5054
    %v5056 = vpop.f32.mrb[0].mxu0
    %v5057 = vpop.f32.mrb[0].mxu0
    %v5058 = vadd.f32 %v4525, %v5057
    %v5059 = vpop.f32.mrb[0].mxu0
    %5060 = vmatprep.mubr.bf16.mxu0 0
    %5061 = vmatmul.mubr.bf16.gmra.mrb[0].mxu0 %v4652
    %v5062 = vpop.f32.mrb[0].mxu0
    %v5063 = vadd.f32 %v4525, %v5062
    %v5064 = vpop.f32.mrb[0].mxu0
    %v5065 = vpop.f32.mrb[0].mxu0
    %v5066 = vadd.f32 %v4525, %v5065
    %v5067 = vpop.f32.mrb[0].mxu0
    %5068 = vmatprep.mubr.bf16.mxu0 0
    %5069 = vmatmul.mubr.bf16.gmra.mrb[0].mxu0 %v4655
    %v5070 = vpop.f32.mrb[0].mxu0
    %v5071 = vadd.f32 %v4525, %v5070
    %v5072 = vpop.f32.mrb[0].mxu0
    %v5073 = vpop.f32.mrb[0].mxu0
    %v5074 = vadd.f32 %v4525, %v5073
    %v5075 = vpop.f32.mrb[0].mxu0
    %5076 = vmatprep.mubr.bf16.mxu0 0
    %5077 = vmatmul.mubr.bf16.gmra.mrb[0].mxu0 %v4658
    %v5078 = vpop.f32.mrb[0].mxu0
    %v5079 = vadd.f32 %v4525, %v5078
    %v5080 = vpop.f32.mrb[0].mxu0
    %v5081 = vpop.f32.mrb[0].mxu0
    %v5082 = vadd.f32 %v4525, %v5081
    %v5083 = vpop.f32.mrb[0].mxu0
    %5084 = vmatprep.mubr.bf16.mxu0 0
    %5085 = vmatmul.mubr.bf16.gmra.mrb[0].mxu0 %v4661
    %v5086 = vpop.f32.mrb[0].mxu0
    %v5087 = vadd.f32 %v4525, %v5086
    %v5088 = vpop.f32.mrb[0].mxu0
    %v5089 = vpop.f32.mrb[0].mxu0
    %v5090 = vadd.f32 %v4525, %v5089
    %v5091 = vpop.f32.mrb[0].mxu0
    %5092 = vmatprep.mubr.bf16.mxu0 0
    %5093 = vmatmul.mubr.bf16.gmra.mrb[0].mxu0 %v4664
    %v5094 = vpop.f32.mrb[0].mxu0
    %v5095 = vadd.f32 %v4525, %v5094
    %v5096 = vpop.f32.mrb[0].mxu0
    %v5097 = vpop.f32.mrb[0].mxu0
    %v5098 = vadd.f32 %v4525, %v5097
    %v5099 = vpop.f32.mrb[0].mxu0
    %5100 = vmatprep.mubr.bf16.mxu0 0
    %5101 = vmatmul.mubr.bf16.gmra.mrb[0].mxu0 %v4667
    %v5102 = vpop.f32.mrb[0].mxu0
    %v5103 = vadd.f32 %v4525, %v5102
    %v5104 = vpop.f32.mrb[0].mxu0
    %v5105 = vpop.f32.mrb[0].mxu0
    %v5106 = vadd.f32 %v4525, %v5105
    %v5107 = vpop.f32.mrb[0].mxu0
    %5108 = vmatprep.mubr.bf16.mxu0 0
    %5109 = vmatmul.mubr.bf16.gmra.mrb[0].mxu0 %v4670
    %v5110 = vpop.f32.mrb[0].mxu0
    %v5111 = vadd.f32 %v4525, %v5110
    %v5112 = vpop.f32.mrb[0].mxu0
    %v5113 = vpop.f32.mrb[0].mxu0
    %v5114 = vadd.f32 %v4525, %v5113
    %v5115 = vpop.f32.mrb[0].mxu0
    %5116 = vmatprep.mubr.bf16.mxu0 0
    %5117 = vmatmul.mubr.bf16.gmra.mrb[0].mxu0 %v4673
    %v5118 = vpop.f32.mrb[0].mxu0
    %v5119 = vadd.f32 %v4525, %v5118
    %v5120 = vpop.f32.mrb[0].mxu0
    %v5121 = vpop.f32.mrb[0].mxu0
    %v5122 = vadd.f32 %v4525, %v5121
    %v5123 = vpop.f32.mrb[0].mxu0
    %5124 = vmatprep.mubr.bf16.mxu0 0
    %5125 = vmatmul.mubr.bf16.gmra.mrb[0].mxu0 %v4676
    %v5126 = vpop.f32.mrb[0].mxu0
    %v5127 = vadd.f32 %v4525, %v5126
    %v5128 = vpop.f32.mrb[0].mxu0
    %v5129 = vpop.f32.mrb[0].mxu0
    %v5130 = vadd.f32 %v4525, %v5129
    %v5131 = vpop.f32.mrb[0].mxu0
    %5132 = vmatprep.mubr.bf16.mxu0 0
    %5133 = vmatmul.mubr.bf16.gmra.mrb[0].mxu0 %v4679
    %v5134 = vpop.f32.mrb[0].mxu0
    %v5135 = vadd.f32 %v4525, %v5134
    %v5136 = vpop.f32.mrb[0].mxu0
    %v5137 = vpop.f32.mrb[0].mxu0
    %v5138 = vadd.f32 %v4525, %v5137
    %v5139 = vpop.f32.mrb[0].mxu0
    %5140 = vmatprep.mubr.bf16.mxu0 0
    %5141 = vmatmul.mubr.bf16.gmra.mrb[0].mxu0 %v4682
    %v5142 = vpop.f32.mrb[0].mxu0
    %v5143 = vadd.f32 %v4525, %v5142
    %v5144 = vpop.f32.mrb[0].mxu0
    %v5145 = vpop.f32.mrb[0].mxu0
    %v5146 = vadd.f32 %v4525, %v5145
    %v5147 = vpop.f32.mrb[0].mxu0
    %5148 = vmatprep.mubr.bf16.mxu0 0
    %5149 = vmatmul.mubr.bf16.gmra.mrb[0].mxu0 %v4685
    %v5150 = vpop.f32.mrb[0].mxu0
    %v5151 = vadd.f32 %v4525, %v5150
    %v5152 = vpop.f32.mrb[0].mxu0
    %v5153 = vpop.f32.mrb[0].mxu0
    %v5154 = vadd.f32 %v4525, %v5153
    %v5155 = vpop.f32.mrb[0].mxu0
    %5156 = vmatprep.mubr.bf16.mxu0 0
    %5157 = vmatmul.mubr.bf16.gmra.mrb[0].mxu0 %v4688
    %v5158 = vpop.f32.mrb[0].mxu0
    %v5159 = vadd.f32 %v4525, %v5158
    %v5160 = vpop.f32.mrb[0].mxu0
    %v5161 = vpop.f32.mrb[0].mxu0
    %v5162 = vadd.f32 %v4525, %v5161
    %v5163 = vpop.f32.mrb[0].mxu0
    %5164 = vmatprep.mubr.bf16.mxu0 0
    %5165 = vmatmul.mubr.bf16.gmra.mrb[0].mxu0 %v4691
    %v5166 = vpop.f32.mrb[0].mxu0
    %v5167 = vadd.f32 %v4525, %v5166
    %v5168 = vpop.f32.mrb[0].mxu0
    %v5169 = vpop.f32.mrb[0].mxu0
    %v5170 = vadd.f32 %v4525, %v5169
    %v5171 = vpop.f32.mrb[0].mxu0
    %5172 = vmatprep.mubr.bf16.mxu0 0
    %5173 = vmatmul.mubr.bf16.gmra.mrb[0].mxu0 %v4694
    %v5174 = vpop.f32.mrb[0].mxu0
    %v5175 = vadd.f32 %v4525, %v5174
    %v5176 = vpop.f32.mrb[0].mxu0
    %v5177 = vpop.f32.mrb[0].mxu0
    %v5178 = vadd.f32 %v4525, %v5177
    %v5179 = vpop.f32.mrb[0].mxu0
    %5180 = vmatprep.mubr.bf16.mxu0 0
    %5181 = vmatmul.mubr.bf16.gmra.mrb[0].mxu0 %v4697
    %v5182 = vpop.f32.mrb[0].mxu0
    %v5183 = vadd.f32 %v4525, %v5182
    %v5184 = vpop.f32.mrb[0].mxu0
    %v5185 = vpop.f32.mrb[0].mxu0
    %v5186 = vadd.f32 %v4525, %v5185
    %v5187 = vpop.f32.mrb[0].mxu0
    %5188 = vmatprep.mubr.bf16.mxu0 0
    %5189 = vmatmul.mubr.bf16.gmra.mrb[0].mxu0 %v4700
    %v5190 = vpop.f32.mrb[0].mxu0
    %v5191 = vadd.f32 %v4525, %v5190
    %v5192 = vpop.f32.mrb[0].mxu0
    %v5193 = vpop.f32.mrb[0].mxu0
    %v5194 = vadd.f32 %v4525, %v5193
    %v5195 = vpop.f32.mrb[0].mxu0
    %5196 = vmatprep.mubr.bf16.mxu0 0
    %5197 = vmatmul.mubr.bf16.gmra.mrb[0].mxu0 %v4703
    %v5198 = vpop.f32.mrb[0].mxu0
    %v5199 = vadd.f32 %v4525, %v5198
    %v5200 = vpop.f32.mrb[0].mxu0
    %v5201 = vpop.f32.mrb[0].mxu0
    %v5202 = vadd.f32 %v4525, %v5201
    %v5203 = vpop.f32.mrb[0].mxu0
    %5204 = vmatprep.mubr.bf16.mxu0 0
    %5205 = vmatmul.mubr.bf16.gmra.mrb[0].mxu0 %v4706
    %v5206 = vpop.f32.mrb[0].mxu0
    %v5207 = vadd.f32 %v4525, %v5206
    %v5208 = vpop.f32.mrb[0].mxu0
    %v5209 = vpop.f32.mrb[0].mxu0
    %v5210 = vadd.f32 %v4525, %v5209
    %v5211 = vpop.f32.mrb[0].mxu0
    %5212 = vmatprep.mubr.bf16.mxu0 0
    %5213 = vmatmul.mubr.bf16.gmra.mrb[0].mxu0 %v4709
    %v5214 = vpop.f32.mrb[0].mxu0
    %v5215 = vadd.f32 %v4525, %v5214
    %v5216 = vpop.f32.mrb[0].mxu0
    %v5217 = vpop.f32.mrb[0].mxu0
    %v5218 = vadd.f32 %v4525, %v5217
    %v5219 = vpop.f32.mrb[0].mxu0
    %5220 = vmatprep.mubr.bf16.mxu0 0
    %5221 = vmatmul.mubr.bf16.gmra.mrb[0].mxu0 %v4712
    %v5222 = vpop.f32.mrb[0].mxu0
    %v5223 = vadd.f32 %v4525, %v5222
    %v5224 = vpop.f32.mrb[0].mxu0
    %v5225 = vpop.f32.mrb[0].mxu0
    %v5226 = vadd.f32 %v4525, %v5225
    %v5227 = vpop.f32.mrb[0].mxu0
    %5228 = vmatprep.mubr.bf16.mxu0 0
    %5229 = vmatmul.mubr.bf16.gmra.mrb[0].mxu0 %v4715
    %v5230 = vpop.f32.mrb[0].mxu0
    %v5231 = vadd.f32 %v4525, %v5230
    %v5232 = vpop.f32.mrb[0].mxu0
    %v5233 = vpop.f32.mrb[0].mxu0
    %v5234 = vadd.f32 %v4525, %v5233
    %v5235 = vpop.f32.mrb[0].mxu0
    %5236 = vmatprep.mubr.bf16.mxu0 0
    %5237 = vmatmul.mubr.bf16.gmra.mrb[0].mxu0 %v4718
    %v5238 = vpop.f32.mrb[0].mxu0
    %v5239 = vadd.f32 %v4525, %v5238
    %v5240 = vpop.f32.mrb[0].mxu0
    %v5241 = vpop.f32.mrb[0].mxu0
    %v5242 = vadd.f32 %v4525, %v5241
    %v5243 = vpop.f32.mrb[0].mxu0
    %5244 = vmatprep.mubr.bf16.mxu0 0
    %5245 = vmatmul.mubr.bf16.gmra.mrb[0].mxu0 %v4721
    %v5246 = vpop.f32.mrb[0].mxu0
    %v5247 = vadd.f32 %v4525, %v5246
    %v5248 = vpop.f32.mrb[0].mxu0
    %v5249 = vpop.f32.mrb[0].mxu0
    %v5250 = vadd.f32 %v4525, %v5249
    %v5251 = vpop.f32.mrb[0].mxu0
    %5252 = vmatprep.mubr.bf16.mxu0 0
    %5253 = vmatmul.mubr.bf16.gmra.mrb[0].mxu0 %v4724
    %v5254 = vpop.f32.mrb[0].mxu0
    %v5255 = vadd.f32 %v4525, %v5254
    %v5256 = vpop.f32.mrb[0].mxu0
    %v5257 = vpop.f32.mrb[0].mxu0
    %v5258 = vadd.f32 %v4525, %v5257
    %v5259 = vpop.f32.mrb[0].mxu0
    %5260 = vmatprep.mubr.bf16.mxu0 0
    %5261 = vmatmul.mubr.bf16.gmra.mrb[0].mxu0 %v4727
    %v5262 = vpop.f32.mrb[0].mxu0
    %v5263 = vadd.f32 %v4525, %v5262
    %v5264 = vpop.f32.mrb[0].mxu0
    %v5265 = vpop.f32.mrb[0].mxu0
    %v5266 = vadd.f32 %v4525, %v5265
    %v5267 = vpop.f32.mrb[0].mxu0
    %5268 = vmatprep.mubr.bf16.mxu0 0
    %5269 = vmatmul.mubr.bf16.gmra.mrb[0].mxu0 %v4730
    %v5270 = vpop.f32.mrb[0].mxu0
    %v5271 = vadd.f32 %v4525, %v5270
    %v5272 = vpop.f32.mrb[0].mxu0
    %v5273 = vpop.f32.mrb[0].mxu0
    %v5274 = vadd.f32 %v4525, %v5273
    %v5275 = vpop.f32.mrb[0].mxu0
    %5276 = vdwg.mxu0
    %v5277 = vtanh.pop %v4767
    %v5278 = vtanh.pop %v4770
    %v5279 = vtanh.pop %v4775
    %v5280 = vtanh.pop %v4778
    %v5281 = vtanh.pop %v4783
    %v5282 = vtanh.pop %v4786
    %v5283 = vtanh.pop %v4791
    %v5284 = vtanh.pop %v4794
    %v5285 = vtanh.pop %v4799
    %v5286 = vtanh.pop %v4802
    %v5287 = vtanh.pop %v4807
    %v5288 = vtanh.pop %v4810
    %v5289 = vtanh.pop %v4815
    %v5290 = vtanh.pop %v4818
    %v5291 = vtanh.pop %v4823
    %v5292 = vtanh.pop %v4826
    %v5293 = vtanh.pop %v4831
    %v5294 = vtanh.pop %v4834
    %v5295 = vtanh.pop %v4839
    %v5296 = vtanh.pop %v4842
    %v5297 = vtanh.pop %v4847
    %v5298 = vtanh.pop %v4850
    %v5299 = vtanh.pop %v4855
    %v5300 = vtanh.pop %v4858
    %v5301 = vtanh.pop %v4863
    %v5302 = vtanh.pop %v4866
    %v5303 = vtanh.pop %v4871
    %v5304 = vtanh.pop %v4874
    %v5305 = vtanh.pop %v4879
    %v5306 = vtanh.pop %v4882
    %v5307 = vtanh.pop %v4887
    %v5308 = vtanh.pop %v4890
    %v5309 = vtanh.pop %v4895
    %v5310 = vtanh.pop %v4898
    %v5311 = vtanh.pop %v4903
    %v5312 = vtanh.pop %v4906
    %v5313 = vtanh.pop %v4911
    %v5314 = vtanh.pop %v4914
    %v5315 = vtanh.pop %v4919
    %v5316 = vtanh.pop %v4922
    %v5317 = vtanh.pop %v4927
    %v5318 = vtanh.pop %v4930
    %v5319 = vtanh.pop %v4935
    %v5320 = vtanh.pop %v4938
    %v5321 = vtanh.pop %v4943
    %v5322 = vtanh.pop %v4946
    %v5323 = vtanh.pop %v4951
    %v5324 = vtanh.pop %v4954
    %v5325 = vtanh.pop %v4959
    %v5326 = vtanh.pop %v4962
    %v5327 = vtanh.pop %v4967
    %v5328 = vtanh.pop %v4970
    %v5329 = vtanh.pop %v4975
    %v5330 = vtanh.pop %v4978
    %v5331 = vtanh.pop %v4983
    %v5332 = vtanh.pop %v4986
    %v5333 = vtanh.pop %v4991
    %v5334 = vtanh.pop %v4994
    %v5335 = vtanh.pop %v4999
    %v5336 = vtanh.pop %v5002
    %v5337 = vtanh.pop %v5007
    %v5338 = vtanh.pop %v5010
    %v5339 = vtanh.pop %v5015
    %v5340 = vtanh.pop %v5018
    %v5341 = vtanh.pop %v5023
    %v5342 = vtanh.pop %v5026
    %v5343 = vtanh.pop %v5031
    %v5344 = vtanh.pop %v5034
    %v5345 = vtanh.pop %v5039
    %v5346 = vtanh.pop %v5042
    %v5347 = vtanh.pop %v5047
    %v5348 = vtanh.pop %v5050
    %v5349 = vtanh.pop %v5055
    %v5350 = vtanh.pop %v5058
    %v5351 = vtanh.pop %v5063
    %v5352 = vtanh.pop %v5066
    %v5353 = vtanh.pop %v5071
    %v5354 = vtanh.pop %v5074
    %v5355 = vtanh.pop %v5079
    %v5356 = vtanh.pop %v5082
    %v5357 = vtanh.pop %v5087
    %v5358 = vtanh.pop %v5090
    %v5359 = vtanh.pop %v5095
    %v5360 = vtanh.pop %v5098
    %v5361 = vtanh.pop %v5103
    %v5362 = vtanh.pop %v5106
    %v5363 = vtanh.pop %v5111
    %v5364 = vtanh.pop %v5114
    %v5365 = vtanh.pop %v5119
    %v5366 = vtanh.pop %v5122
    %v5367 = vtanh.pop %v5127
    %v5368 = vtanh.pop %v5130
    %v5369 = vtanh.pop %v5135
    %v5370 = vtanh.pop %v5138
    %v5371 = vtanh.pop %v5143
    %v5372 = vtanh.pop %v5146
    %v5373 = vtanh.pop %v5151
    %v5374 = vtanh.pop %v5154
    %v5375 = vtanh.pop %v5159
    %v5376 = vtanh.pop %v5162
    %v5377 = vtanh.pop %v5167
    %v5378 = vtanh.pop %v5170
    %v5379 = vtanh.pop %v5175
    %v5380 = vtanh.pop %v5178
    %v5381 = vtanh.pop %v5183
    %v5382 = vtanh.pop %v5186
    %v5383 = vtanh.pop %v5191
    %v5384 = vtanh.pop %v5194
    %v5385 = vtanh.pop %v5199
    %v5386 = vtanh.pop %v5202
    %v5387 = vtanh.pop %v5207
    %v5388 = vtanh.pop %v5210
    %v5389 = vtanh.pop %v5215
    %v5390 = vtanh.pop %v5218
    %v5391 = vtanh.pop %v5223
    %v5392 = vtanh.pop %v5226
    %v5393 = vtanh.pop %v5231
    %v5394 = vtanh.pop %v5234
    %v5395 = vtanh.pop %v5239
    %v5396 = vtanh.pop %v5242
    %v5397 = vtanh.pop %v5247
    %v5398 = vtanh.pop %v5250
    %v5399 = vtanh.pop %v5255
    %v5400 = vtanh.pop %v5258
    %v5401 = vtanh.pop %v5263
    %v5402 = vtanh.pop %v5266
    %v5403 = vtanh.pop %v5271
    %v5404 = vtanh.pop %v5274
    %v5405 = vld [vmem:[%s6] sm:$0x1]
    %v5407 = vlaneseq
    %v5408 = vshrl.u32 %v5407, 7
    %v5409 = vsub.s32 0, %v5408
    %v5410 = vrot.slane %v5405, %v5409
    %v5412 = vmul.f32 %v5277, %v5410
    %v5413 = vmul.f32 %v5278, %v5410
    %v5414 = vmul.f32 %v5279, %v5410
    %v5415 = vmul.f32 %v5280, %v5410
    %v5416 = vmul.f32 %v5281, %v5410
    %v5417 = vmul.f32 %v5282, %v5410
    %v5418 = vmul.f32 %v5283, %v5410
    %v5419 = vmul.f32 %v5284, %v5410
    %v5420 = vmul.f32 %v5285, %v5410
    %v5421 = vmul.f32 %v5286, %v5410
    %v5422 = vmul.f32 %v5287, %v5410
    %v5423 = vmul.f32 %v5288, %v5410
    %v5424 = vmul.f32 %v5289, %v5410
    %v5425 = vmul.f32 %v5290, %v5410
    %v5426 = vmul.f32 %v5291, %v5410
    %v5427 = vmul.f32 %v5292, %v5410
    %v5428 = vmul.f32 %v5293, %v5410
    %v5429 = vmul.f32 %v5294, %v5410
    %v5430 = vmul.f32 %v5295, %v5410
    %v5431 = vmul.f32 %v5296, %v5410
    %v5432 = vmul.f32 %v5297, %v5410
    %v5433 = vmul.f32 %v5298, %v5410
    %v5434 = vmul.f32 %v5299, %v5410
    %v5435 = vmul.f32 %v5300, %v5410
    %v5436 = vmul.f32 %v5301, %v5410
    %v5437 = vmul.f32 %v5302, %v5410
    %v5438 = vmul.f32 %v5303, %v5410
    %v5439 = vmul.f32 %v5304, %v5410
    %v5440 = vmul.f32 %v5305, %v5410
    %v5441 = vmul.f32 %v5306, %v5410
    %v5442 = vmul.f32 %v5307, %v5410
    %v5443 = vmul.f32 %v5308, %v5410
    %v5444 = vmul.f32 %v5309, %v5410
    %v5445 = vmul.f32 %v5310, %v5410
    %v5446 = vmul.f32 %v5311, %v5410
    %v5447 = vmul.f32 %v5312, %v5410
    %v5448 = vmul.f32 %v5313, %v5410
    %v5449 = vmul.f32 %v5314, %v5410
    %v5450 = vmul.f32 %v5315, %v5410
    %v5451 = vmul.f32 %v5316, %v5410
    %v5452 = vmul.f32 %v5317, %v5410
    %v5453 = vmul.f32 %v5318, %v5410
    %v5454 = vmul.f32 %v5319, %v5410
    %v5455 = vmul.f32 %v5320, %v5410
    %v5456 = vmul.f32 %v5321, %v5410
    %v5457 = vmul.f32 %v5322, %v5410
    %v5458 = vmul.f32 %v5323, %v5410
    %v5459 = vmul.f32 %v5324, %v5410
    %v5460 = vmul.f32 %v5325, %v5410
    %v5461 = vmul.f32 %v5326, %v5410
    %v5462 = vmul.f32 %v5327, %v5410
    %v5463 = vmul.f32 %v5328, %v5410
    %v5464 = vmul.f32 %v5329, %v5410
    %v5465 = vmul.f32 %v5330, %v5410
    %v5466 = vmul.f32 %v5331, %v5410
    %v5467 = vmul.f32 %v5332, %v5410
    %v5468 = vmul.f32 %v5333, %v5410
    %v5469 = vmul.f32 %v5334, %v5410
    %v5470 = vmul.f32 %v5335, %v5410
    %v5471 = vmul.f32 %v5336, %v5410
    %v5472 = vmul.f32 %v5337, %v5410
    %v5473 = vmul.f32 %v5338, %v5410
    %v5474 = vmul.f32 %v5339, %v5410
    %v5475 = vmul.f32 %v5340, %v5410
    %v5476 = vmul.f32 %v5341, %v5410
    %v5477 = vmul.f32 %v5342, %v5410
    %v5478 = vmul.f32 %v5343, %v5410
    %v5479 = vmul.f32 %v5344, %v5410
    %v5480 = vmul.f32 %v5345, %v5410
    %v5481 = vmul.f32 %v5346, %v5410
    %v5482 = vmul.f32 %v5347, %v5410
    %v5483 = vmul.f32 %v5348, %v5410
    %v5484 = vmul.f32 %v5349, %v5410
    %v5485 = vmul.f32 %v5350, %v5410
    %v5486 = vmul.f32 %v5351, %v5410
    %v5487 = vmul.f32 %v5352, %v5410
    %v5488 = vmul.f32 %v5353, %v5410
    %v5489 = vmul.f32 %v5354, %v5410
    %v5490 = vmul.f32 %v5355, %v5410
    %v5491 = vmul.f32 %v5356, %v5410
    %v5492 = vmul.f32 %v5357, %v5410
    %v5493 = vmul.f32 %v5358, %v5410
    %v5494 = vmul.f32 %v5359, %v5410
    %v5495 = vmul.f32 %v5360, %v5410
    %v5496 = vmul.f32 %v5361, %v5410
    %v5497 = vmul.f32 %v5362, %v5410
    %v5498 = vmul.f32 %v5363, %v5410
    %v5499 = vmul.f32 %v5364, %v5410
    %v5500 = vmul.f32 %v5365, %v5410
    %v5501 = vmul.f32 %v5366, %v5410
    %v5502 = vmul.f32 %v5367, %v5410
    %v5503 = vmul.f32 %v5368, %v5410
    %v5504 = vmul.f32 %v5369, %v5410
    %v5505 = vmul.f32 %v5370, %v5410
    %v5506 = vmul.f32 %v5371, %v5410
    %v5507 = vmul.f32 %v5372, %v5410
    %v5508 = vmul.f32 %v5373, %v5410
    %v5509 = vmul.f32 %v5374, %v5410
    %v5510 = vmul.f32 %v5375, %v5410
    %v5511 = vmul.f32 %v5376, %v5410
    %v5512 = vmul.f32 %v5377, %v5410
    %v5513 = vmul.f32 %v5378, %v5410
    %v5514 = vmul.f32 %v5379, %v5410
    %v5515 = vmul.f32 %v5380, %v5410
    %v5516 = vmul.f32 %v5381, %v5410
    %v5517 = vmul.f32 %v5382, %v5410
    %v5518 = vmul.f32 %v5383, %v5410
    %v5519 = vmul.f32 %v5384, %v5410
    %v5520 = vmul.f32 %v5385, %v5410
    %v5521 = vmul.f32 %v5386, %v5410
    %v5522 = vmul.f32 %v5387, %v5410
    %v5523 = vmul.f32 %v5388, %v5410
    %v5524 = vmul.f32 %v5389, %v5410
    %v5525 = vmul.f32 %v5390, %v5410
    %v5526 = vmul.f32 %v5391, %v5410
    %v5527 = vmul.f32 %v5392, %v5410
    %v5528 = vmul.f32 %v5393, %v5410
    %v5529 = vmul.f32 %v5394, %v5410
    %v5530 = vmul.f32 %v5395, %v5410
    %v5531 = vmul.f32 %v5396, %v5410
    %v5532 = vmul.f32 %v5397, %v5410
    %v5533 = vmul.f32 %v5398, %v5410
    %v5534 = vmul.f32 %v5399, %v5410
    %v5535 = vmul.f32 %v5400, %v5410
    %v5536 = vmul.f32 %v5401, %v5410
    %v5537 = vmul.f32 %v5402, %v5410
    %v5538 = vmul.f32 %v5403, %v5410
    %v5539 = vmul.f32 %v5404, %v5410
    %v5540 = vsel %vm4539, %v5412, 0.0
    %5541 = vadd.xlane.f32.xlu0 %v5540
    %v5542 = vpop.xlane.xlu0 %5541
    %v5543 = vsel %vm4539, %v5413, 0.0
    %5544 = vadd.xlane.f32.xlu0 %v5543
    %v5545 = vpop.xlane.xlu0 %5544
    %v5546 = vsel %vm4539, %v5414, 0.0
    %5547 = vadd.xlane.f32.xlu0 %v5546
    %v5548 = vpop.xlane.xlu0 %5547
    %v5549 = vsel %vm4539, %v5415, 0.0
    %5550 = vadd.xlane.f32.xlu0 %v5549
    %v5551 = vpop.xlane.xlu0 %5550
    %v5552 = vsel %vm4539, %v5416, 0.0
    %5553 = vadd.xlane.f32.xlu0 %v5552
    %v5554 = vpop.xlane.xlu0 %5553
    %v5555 = vsel %vm4539, %v5417, 0.0
    %5556 = vadd.xlane.f32.xlu0 %v5555
    %v5557 = vpop.xlane.xlu0 %5556
    %v5558 = vsel %vm4539, %v5418, 0.0
    %5559 = vadd.xlane.f32.xlu0 %v5558
    %v5560 = vpop.xlane.xlu0 %5559
    %v5561 = vsel %vm4539, %v5419, 0.0
    %5562 = vadd.xlane.f32.xlu0 %v5561
    %v5563 = vpop.xlane.xlu0 %5562
    %v5564 = vsel %vm4539, %v5420, 0.0
    %5565 = vadd.xlane.f32.xlu0 %v5564
    %v5566 = vpop.xlane.xlu0 %5565
    %v5567 = vsel %vm4539, %v5421, 0.0
    %5568 = vadd.xlane.f32.xlu0 %v5567
    %v5569 = vpop.xlane.xlu0 %5568
    %v5570 = vsel %vm4539, %v5422, 0.0
    %5571 = vadd.xlane.f32.xlu0 %v5570
    %v5572 = vpop.xlane.xlu0 %5571
    %v5573 = vsel %vm4539, %v5423, 0.0
    %5574 = vadd.xlane.f32.xlu0 %v5573
    %v5575 = vpop.xlane.xlu0 %5574
    %v5576 = vsel %vm4539, %v5424, 0.0
    %5577 = vadd.xlane.f32.xlu0 %v5576
    %v5578 = vpop.xlane.xlu0 %5577
    %v5579 = vsel %vm4539, %v5425, 0.0
    %5580 = vadd.xlane.f32.xlu0 %v5579
    %v5581 = vpop.xlane.xlu0 %5580
    %v5582 = vsel %vm4539, %v5426, 0.0
    %5583 = vadd.xlane.f32.xlu0 %v5582
    %v5584 = vpop.xlane.xlu0 %5583
    %v5585 = vsel %vm4539, %v5427, 0.0
    %5586 = vadd.xlane.f32.xlu0 %v5585
    %v5587 = vpop.xlane.xlu0 %5586
    %v5588 = vsel %vm4539, %v5428, 0.0
    %5589 = vadd.xlane.f32.xlu0 %v5588
    %v5590 = vpop.xlane.xlu0 %5589
    %v5591 = vsel %vm4539, %v5429, 0.0
    %5592 = vadd.xlane.f32.xlu0 %v5591
    %v5593 = vpop.xlane.xlu0 %5592
    %v5594 = vsel %vm4539, %v5430, 0.0
    %5595 = vadd.xlane.f32.xlu0 %v5594
    %v5596 = vpop.xlane.xlu0 %5595
    %v5597 = vsel %vm4539, %v5431, 0.0
    %5598 = vadd.xlane.f32.xlu0 %v5597
    %v5599 = vpop.xlane.xlu0 %5598
    %v5600 = vsel %vm4539, %v5432, 0.0
    %5601 = vadd.xlane.f32.xlu0 %v5600
    %v5602 = vpop.xlane.xlu0 %5601
    %v5603 = vsel %vm4539, %v5433, 0.0
    %5604 = vadd.xlane.f32.xlu0 %v5603
    %v5605 = vpop.xlane.xlu0 %5604
    %v5606 = vsel %vm4539, %v5434, 0.0
    %5607 = vadd.xlane.f32.xlu0 %v5606
    %v5608 = vpop.xlane.xlu0 %5607
    %v5609 = vsel %vm4539, %v5435, 0.0
    %5610 = vadd.xlane.f32.xlu0 %v5609
    %v5611 = vpop.xlane.xlu0 %5610
    %v5612 = vsel %vm4539, %v5436, 0.0
    %5613 = vadd.xlane.f32.xlu0 %v5612
    %v5614 = vpop.xlane.xlu0 %5613
    %v5615 = vsel %vm4539, %v5437, 0.0
    %5616 = vadd.xlane.f32.xlu0 %v5615
    %v5617 = vpop.xlane.xlu0 %5616
    %v5618 = vsel %vm4539, %v5438, 0.0
    %5619 = vadd.xlane.f32.xlu0 %v5618
    %v5620 = vpop.xlane.xlu0 %5619
    %v5621 = vsel %vm4539, %v5439, 0.0
    %5622 = vadd.xlane.f32.xlu0 %v5621
    %v5623 = vpop.xlane.xlu0 %5622
    %v5624 = vsel %vm4539, %v5440, 0.0
    %5625 = vadd.xlane.f32.xlu0 %v5624
    %v5626 = vpop.xlane.xlu0 %5625
    %v5627 = vsel %vm4539, %v5441, 0.0
    %5628 = vadd.xlane.f32.xlu0 %v5627
    %v5629 = vpop.xlane.xlu0 %5628
    %v5630 = vsel %vm4539, %v5442, 0.0
    %5631 = vadd.xlane.f32.xlu0 %v5630
    %v5632 = vpop.xlane.xlu0 %5631
    %v5633 = vsel %vm4539, %v5443, 0.0
    %5634 = vadd.xlane.f32.xlu0 %v5633
    %v5635 = vpop.xlane.xlu0 %5634
    %v5636 = vsel %vm4539, %v5444, 0.0
    %5637 = vadd.xlane.f32.xlu0 %v5636
    %v5638 = vpop.xlane.xlu0 %5637
    %v5639 = vsel %vm4539, %v5445, 0.0
    %5640 = vadd.xlane.f32.xlu0 %v5639
    %v5641 = vpop.xlane.xlu0 %5640
    %v5642 = vsel %vm4539, %v5446, 0.0
    %5643 = vadd.xlane.f32.xlu0 %v5642
    %v5644 = vpop.xlane.xlu0 %5643
    %v5645 = vsel %vm4539, %v5447, 0.0
    %5646 = vadd.xlane.f32.xlu0 %v5645
    %v5647 = vpop.xlane.xlu0 %5646
    %v5648 = vsel %vm4539, %v5448, 0.0
    %5649 = vadd.xlane.f32.xlu0 %v5648
    %v5650 = vpop.xlane.xlu0 %5649
    %v5651 = vsel %vm4539, %v5449, 0.0
    %5652 = vadd.xlane.f32.xlu0 %v5651
    %v5653 = vpop.xlane.xlu0 %5652
    %v5654 = vsel %vm4539, %v5450, 0.0
    %5655 = vadd.xlane.f32.xlu0 %v5654
    %v5656 = vpop.xlane.xlu0 %5655
    %v5657 = vsel %vm4539, %v5451, 0.0
    %5658 = vadd.xlane.f32.xlu0 %v5657
    %v5659 = vpop.xlane.xlu0 %5658
    %v5660 = vsel %vm4539, %v5452, 0.0
    %5661 = vadd.xlane.f32.xlu0 %v5660
    %v5662 = vpop.xlane.xlu0 %5661
    %v5663 = vsel %vm4539, %v5453, 0.0
    %5664 = vadd.xlane.f32.xlu0 %v5663
    %v5665 = vpop.xlane.xlu0 %5664
    %v5666 = vsel %vm4539, %v5454, 0.0
    %5667 = vadd.xlane.f32.xlu0 %v5666
    %v5668 = vpop.xlane.xlu0 %5667
    %v5669 = vsel %vm4539, %v5455, 0.0
    %5670 = vadd.xlane.f32.xlu0 %v5669
    %v5671 = vpop.xlane.xlu0 %5670
    %v5672 = vsel %vm4539, %v5456, 0.0
    %5673 = vadd.xlane.f32.xlu0 %v5672
    %v5674 = vpop.xlane.xlu0 %5673
    %v5675 = vsel %vm4539, %v5457, 0.0
    %5676 = vadd.xlane.f32.xlu0 %v5675
    %v5677 = vpop.xlane.xlu0 %5676
    %v5678 = vsel %vm4539, %v5458, 0.0
    %5679 = vadd.xlane.f32.xlu0 %v5678
    %v5680 = vpop.xlane.xlu0 %5679
    %v5681 = vsel %vm4539, %v5459, 0.0
    %5682 = vadd.xlane.f32.xlu0 %v5681
    %v5683 = vpop.xlane.xlu0 %5682
    %v5684 = vsel %vm4539, %v5460, 0.0
    %5685 = vadd.xlane.f32.xlu0 %v5684
    %v5686 = vpop.xlane.xlu0 %5685
    %v5687 = vsel %vm4539, %v5461, 0.0
    %5688 = vadd.xlane.f32.xlu0 %v5687
    %v5689 = vpop.xlane.xlu0 %5688
    %v5690 = vsel %vm4539, %v5462, 0.0
    %5691 = vadd.xlane.f32.xlu0 %v5690
    %v5692 = vpop.xlane.xlu0 %5691
    %v5693 = vsel %vm4539, %v5463, 0.0
    %5694 = vadd.xlane.f32.xlu0 %v5693
    %v5695 = vpop.xlane.xlu0 %5694
    %v5696 = vsel %vm4539, %v5464, 0.0
    %5697 = vadd.xlane.f32.xlu0 %v5696
    %v5698 = vpop.xlane.xlu0 %5697
    %v5699 = vsel %vm4539, %v5465, 0.0
    %5700 = vadd.xlane.f32.xlu0 %v5699
    %v5701 = vpop.xlane.xlu0 %5700
    %v5702 = vsel %vm4539, %v5466, 0.0
    %5703 = vadd.xlane.f32.xlu0 %v5702
    %v5704 = vpop.xlane.xlu0 %5703
    %v5705 = vsel %vm4539, %v5467, 0.0
    %5706 = vadd.xlane.f32.xlu0 %v5705
    %v5707 = vpop.xlane.xlu0 %5706
    %v5708 = vsel %vm4539, %v5468, 0.0
    %5709 = vadd.xlane.f32.xlu0 %v5708
    %v5710 = vpop.xlane.xlu0 %5709
    %v5711 = vsel %vm4539, %v5469, 0.0
    %5712 = vadd.xlane.f32.xlu0 %v5711
    %v5713 = vpop.xlane.xlu0 %5712
    %v5714 = vsel %vm4539, %v5470, 0.0
    %5715 = vadd.xlane.f32.xlu0 %v5714
    %v5716 = vpop.xlane.xlu0 %5715
    %v5717 = vsel %vm4539, %v5471, 0.0
    %5718 = vadd.xlane.f32.xlu0 %v5717
    %v5719 = vpop.xlane.xlu0 %5718
    %v5720 = vsel %vm4539, %v5472, 0.0
    %5721 = vadd.xlane.f32.xlu0 %v5720
    %v5722 = vpop.xlane.xlu0 %5721
    %v5723 = vsel %vm4539, %v5473, 0.0
    %5724 = vadd.xlane.f32.xlu0 %v5723
    %v5725 = vpop.xlane.xlu0 %5724
    %v5726 = vsel %vm4539, %v5474, 0.0
    %5727 = vadd.xlane.f32.xlu0 %v5726
    %v5728 = vpop.xlane.xlu0 %5727
    %v5729 = vsel %vm4539, %v5475, 0.0
    %5730 = vadd.xlane.f32.xlu0 %v5729
    %v5731 = vpop.xlane.xlu0 %5730
    %v5732 = vsel %vm4539, %v5476, 0.0
    %5733 = vadd.xlane.f32.xlu0 %v5732
    %v5734 = vpop.xlane.xlu0 %5733
    %v5735 = vsel %vm4539, %v5477, 0.0
    %5736 = vadd.xlane.f32.xlu0 %v5735
    %v5737 = vpop.xlane.xlu0 %5736
    %v5738 = vsel %vm4539, %v5478, 0.0
    %5739 = vadd.xlane.f32.xlu0 %v5738
    %v5740 = vpop.xlane.xlu0 %5739
    %v5741 = vsel %vm4539, %v5479, 0.0
    %5742 = vadd.xlane.f32.xlu0 %v5741
    %v5743 = vpop.xlane.xlu0 %5742
    %v5744 = vsel %vm4539, %v5480, 0.0
    %5745 = vadd.xlane.f32.xlu0 %v5744
    %v5746 = vpop.xlane.xlu0 %5745
    %v5747 = vsel %vm4539, %v5481, 0.0
    %5748 = vadd.xlane.f32.xlu0 %v5747
    %v5749 = vpop.xlane.xlu0 %5748
    %v5750 = vsel %vm4539, %v5482, 0.0
    %5751 = vadd.xlane.f32.xlu0 %v5750
    %v5752 = vpop.xlane.xlu0 %5751
    %v5753 = vsel %vm4539, %v5483, 0.0
    %5754 = vadd.xlane.f32.xlu0 %v5753
    %v5755 = vpop.xlane.xlu0 %5754
    %v5756 = vsel %vm4539, %v5484, 0.0
    %5757 = vadd.xlane.f32.xlu0 %v5756
    %v5758 = vpop.xlane.xlu0 %5757
    %v5759 = vsel %vm4539, %v5485, 0.0
    %5760 = vadd.xlane.f32.xlu0 %v5759
    %v5761 = vpop.xlane.xlu0 %5760
    %v5762 = vsel %vm4539, %v5486, 0.0
    %5763 = vadd.xlane.f32.xlu0 %v5762
    %v5764 = vpop.xlane.xlu0 %5763
    %v5765 = vsel %vm4539, %v5487, 0.0
    %5766 = vadd.xlane.f32.xlu0 %v5765
    %v5767 = vpop.xlane.xlu0 %5766
    %v5768 = vsel %vm4539, %v5488, 0.0
    %5769 = vadd.xlane.f32.xlu0 %v5768
    %v5770 = vpop.xlane.xlu0 %5769
    %v5771 = vsel %vm4539, %v5489, 0.0
    %5772 = vadd.xlane.f32.xlu0 %v5771
    %v5773 = vpop.xlane.xlu0 %5772
    %v5774 = vsel %vm4539, %v5490, 0.0
    %5775 = vadd.xlane.f32.xlu0 %v5774
    %v5776 = vpop.xlane.xlu0 %5775
    %v5777 = vsel %vm4539, %v5491, 0.0
    %5778 = vadd.xlane.f32.xlu0 %v5777
    %v5779 = vpop.xlane.xlu0 %5778
    %v5780 = vsel %vm4539, %v5492, 0.0
    %5781 = vadd.xlane.f32.xlu0 %v5780
    %v5782 = vpop.xlane.xlu0 %5781
    %v5783 = vsel %vm4539, %v5493, 0.0
    %5784 = vadd.xlane.f32.xlu0 %v5783
    %v5785 = vpop.xlane.xlu0 %5784
    %v5786 = vsel %vm4539, %v5494, 0.0
    %5787 = vadd.xlane.f32.xlu0 %v5786
    %v5788 = vpop.xlane.xlu0 %5787
    %v5789 = vsel %vm4539, %v5495, 0.0
    %5790 = vadd.xlane.f32.xlu0 %v5789
    %v5791 = vpop.xlane.xlu0 %5790
    %v5792 = vsel %vm4539, %v5496, 0.0
    %5793 = vadd.xlane.f32.xlu0 %v5792
    %v5794 = vpop.xlane.xlu0 %5793
    %v5795 = vsel %vm4539, %v5497, 0.0
    %5796 = vadd.xlane.f32.xlu0 %v5795
    %v5797 = vpop.xlane.xlu0 %5796
    %v5798 = vsel %vm4539, %v5498, 0.0
    %5799 = vadd.xlane.f32.xlu0 %v5798
    %v5800 = vpop.xlane.xlu0 %5799
    %v5801 = vsel %vm4539, %v5499, 0.0
    %5802 = vadd.xlane.f32.xlu0 %v5801
    %v5803 = vpop.xlane.xlu0 %5802
    %v5804 = vsel %vm4539, %v5500, 0.0
    %5805 = vadd.xlane.f32.xlu0 %v5804
    %v5806 = vpop.xlane.xlu0 %5805
    %v5807 = vsel %vm4539, %v5501, 0.0
    %5808 = vadd.xlane.f32.xlu0 %v5807
    %v5809 = vpop.xlane.xlu0 %5808
    %v5810 = vsel %vm4539, %v5502, 0.0
    %5811 = vadd.xlane.f32.xlu0 %v5810
    %v5812 = vpop.xlane.xlu0 %5811
    %v5813 = vsel %vm4539, %v5503, 0.0
    %5814 = vadd.xlane.f32.xlu0 %v5813
    %v5815 = vpop.xlane.xlu0 %5814
    %v5816 = vsel %vm4539, %v5504, 0.0
    %5817 = vadd.xlane.f32.xlu0 %v5816
    %v5818 = vpop.xlane.xlu0 %5817
    %v5819 = vsel %vm4539, %v5505, 0.0
    %5820 = vadd.xlane.f32.xlu0 %v5819
    %v5821 = vpop.xlane.xlu0 %5820
    %v5822 = vsel %vm4539, %v5506, 0.0
    %5823 = vadd.xlane.f32.xlu0 %v5822
    %v5824 = vpop.xlane.xlu0 %5823
    %v5825 = vsel %vm4539, %v5507, 0.0
    %5826 = vadd.xlane.f32.xlu0 %v5825
    %v5827 = vpop.xlane.xlu0 %5826
    %v5828 = vsel %vm4539, %v5508, 0.0
    %5829 = vadd.xlane.f32.xlu0 %v5828
    %v5830 = vpop.xlane.xlu0 %5829
    %v5831 = vsel %vm4539, %v5509, 0.0
    %5832 = vadd.xlane.f32.xlu0 %v5831
    %v5833 = vpop.xlane.xlu0 %5832
    %v5834 = vsel %vm4539, %v5510, 0.0
    %5835 = vadd.xlane.f32.xlu0 %v5834
    %v5836 = vpop.xlane.xlu0 %5835
    %v5837 = vsel %vm4539, %v5511, 0.0
    %5838 = vadd.xlane.f32.xlu0 %v5837
    %v5839 = vpop.xlane.xlu0 %5838
    %v5840 = vsel %vm4539, %v5512, 0.0
    %5841 = vadd.xlane.f32.xlu0 %v5840
    %v5842 = vpop.xlane.xlu0 %5841
    %v5843 = vsel %vm4539, %v5513, 0.0
    %5844 = vadd.xlane.f32.xlu0 %v5843
    %v5845 = vpop.xlane.xlu0 %5844
    %v5846 = vsel %vm4539, %v5514, 0.0
    %5847 = vadd.xlane.f32.xlu0 %v5846
    %v5848 = vpop.xlane.xlu0 %5847
    %v5849 = vsel %vm4539, %v5515, 0.0
    %5850 = vadd.xlane.f32.xlu0 %v5849
    %v5851 = vpop.xlane.xlu0 %5850
    %v5852 = vsel %vm4539, %v5516, 0.0
    %5853 = vadd.xlane.f32.xlu0 %v5852
    %v5854 = vpop.xlane.xlu0 %5853
    %v5855 = vsel %vm4539, %v5517, 0.0
    %5856 = vadd.xlane.f32.xlu0 %v5855
    %v5857 = vpop.xlane.xlu0 %5856
    %v5858 = vsel %vm4539, %v5518, 0.0
    %5859 = vadd.xlane.f32.xlu0 %v5858
    %v5860 = vpop.xlane.xlu0 %5859
    %v5861 = vsel %vm4539, %v5519, 0.0
    %5862 = vadd.xlane.f32.xlu0 %v5861
    %v5863 = vpop.xlane.xlu0 %5862
    %v5864 = vsel %vm4539, %v5520, 0.0
    %5865 = vadd.xlane.f32.xlu0 %v5864
    %v5866 = vpop.xlane.xlu0 %5865
    %v5867 = vsel %vm4539, %v5521, 0.0
    %5868 = vadd.xlane.f32.xlu0 %v5867
    %v5869 = vpop.xlane.xlu0 %5868
    %v5870 = vsel %vm4539, %v5522, 0.0
    %5871 = vadd.xlane.f32.xlu0 %v5870
    %v5872 = vpop.xlane.xlu0 %5871
    %v5873 = vsel %vm4539, %v5523, 0.0
    %5874 = vadd.xlane.f32.xlu0 %v5873
    %v5875 = vpop.xlane.xlu0 %5874
    %v5876 = vsel %vm4539, %v5524, 0.0
    %5877 = vadd.xlane.f32.xlu0 %v5876
    %v5878 = vpop.xlane.xlu0 %5877
    %v5879 = vsel %vm4539, %v5525, 0.0
    %5880 = vadd.xlane.f32.xlu0 %v5879
    %v5881 = vpop.xlane.xlu0 %5880
    %v5882 = vsel %vm4539, %v5526, 0.0
    %5883 = vadd.xlane.f32.xlu0 %v5882
    %v5884 = vpop.xlane.xlu0 %5883
    %v5885 = vsel %vm4539, %v5527, 0.0
    %5886 = vadd.xlane.f32.xlu0 %v5885
    %v5887 = vpop.xlane.xlu0 %5886
    %v5888 = vsel %vm4539, %v5528, 0.0
    %5889 = vadd.xlane.f32.xlu0 %v5888
    %v5890 = vpop.xlane.xlu0 %5889
    %v5891 = vsel %vm4539, %v5529, 0.0
    %5892 = vadd.xlane.f32.xlu0 %v5891
    %v5893 = vpop.xlane.xlu0 %5892
    %v5894 = vsel %vm4539, %v5530, 0.0
    %5895 = vadd.xlane.f32.xlu0 %v5894
    %v5896 = vpop.xlane.xlu0 %5895
    %v5897 = vsel %vm4539, %v5531, 0.0
    %5898 = vadd.xlane.f32.xlu0 %v5897
    %v5899 = vpop.xlane.xlu0 %5898
    %v5900 = vsel %vm4539, %v5532, 0.0
    %5901 = vadd.xlane.f32.xlu0 %v5900
    %v5902 = vpop.xlane.xlu0 %5901
    %v5903 = vsel %vm4539, %v5533, 0.0
    %5904 = vadd.xlane.f32.xlu0 %v5903
    %v5905 = vpop.xlane.xlu0 %5904
    %v5906 = vsel %vm4539, %v5534, 0.0
    %5907 = vadd.xlane.f32.xlu0 %v5906
    %v5908 = vpop.xlane.xlu0 %5907
    %v5909 = vsel %vm4539, %v5535, 0.0
    %5910 = vadd.xlane.f32.xlu0 %v5909
    %v5911 = vpop.xlane.xlu0 %5910
    %v5912 = vsel %vm4539, %v5536, 0.0
    %5913 = vadd.xlane.f32.xlu0 %v5912
    %v5914 = vpop.xlane.xlu0 %5913
    %v5915 = vsel %vm4539, %v5537, 0.0
    %5916 = vadd.xlane.f32.xlu0 %v5915
    %v5917 = vpop.xlane.xlu0 %5916
    %v5918 = vsel %vm4539, %v5538, 0.0
    %5919 = vadd.xlane.f32.xlu0 %v5918
    %v5920 = vpop.xlane.xlu0 %5919
    %v5921 = vsel %vm4539, %v5539, 0.0
    %5922 = vadd.xlane.f32.xlu0 %v5921
    %v5923 = vpop.xlane.xlu0 %5922
    %s5924 = sld [smem:[#allocation2]]
    %v5925 = vstv %s5924
    %v5926 = vadd.f32 %v5542, %v5925
    %v5927 = vadd.f32 %v5545, %v5925
    %v5928 = vadd.f32 %v5548, %v5925
    %v5929 = vadd.f32 %v5551, %v5925
    %v5930 = vadd.f32 %v5554, %v5925
    %v5931 = vadd.f32 %v5557, %v5925
    %v5932 = vadd.f32 %v5560, %v5925
    %v5933 = vadd.f32 %v5563, %v5925
    %v5934 = vadd.f32 %v5566, %v5925
    %v5935 = vadd.f32 %v5569, %v5925
    %v5936 = vadd.f32 %v5572, %v5925
    %v5937 = vadd.f32 %v5575, %v5925
    %v5938 = vadd.f32 %v5578, %v5925
    %v5939 = vadd.f32 %v5581, %v5925
    %v5940 = vadd.f32 %v5584, %v5925
    %v5941 = vadd.f32 %v5587, %v5925
    %v5942 = vadd.f32 %v5590, %v5925
    %v5943 = vadd.f32 %v5593, %v5925
    %v5944 = vadd.f32 %v5596, %v5925
    %v5945 = vadd.f32 %v5599, %v5925
    %v5946 = vadd.f32 %v5602, %v5925
    %v5947 = vadd.f32 %v5605, %v5925
    %v5948 = vadd.f32 %v5608, %v5925
    %v5949 = vadd.f32 %v5611, %v5925
    %v5950 = vadd.f32 %v5614, %v5925
    %v5951 = vadd.f32 %v5617, %v5925
    %v5952 = vadd.f32 %v5620, %v5925
    %v5953 = vadd.f32 %v5623, %v5925
    %v5954 = vadd.f32 %v5626, %v5925
    %v5955 = vadd.f32 %v5629, %v5925
    %v5956 = vadd.f32 %v5632, %v5925
    %v5957 = vadd.f32 %v5635, %v5925
    %v5958 = vadd.f32 %v5638, %v5925
    %v5959 = vadd.f32 %v5641, %v5925
    %v5960 = vadd.f32 %v5644, %v5925
    %v5961 = vadd.f32 %v5647, %v5925
    %v5962 = vadd.f32 %v5650, %v5925
    %v5963 = vadd.f32 %v5653, %v5925
    %v5964 = vadd.f32 %v5656, %v5925
    %v5965 = vadd.f32 %v5659, %v5925
    %v5966 = vadd.f32 %v5662, %v5925
    %v5967 = vadd.f32 %v5665, %v5925
    %v5968 = vadd.f32 %v5668, %v5925
    %v5969 = vadd.f32 %v5671, %v5925
    %v5970 = vadd.f32 %v5674, %v5925
    %v5971 = vadd.f32 %v5677, %v5925
    %v5972 = vadd.f32 %v5680, %v5925
    %v5973 = vadd.f32 %v5683, %v5925
    %v5974 = vadd.f32 %v5686, %v5925
    %v5975 = vadd.f32 %v5689, %v5925
    %v5976 = vadd.f32 %v5692, %v5925
    %v5977 = vadd.f32 %v5695, %v5925
    %v5978 = vadd.f32 %v5698, %v5925
    %v5979 = vadd.f32 %v5701, %v5925
    %v5980 = vadd.f32 %v5704, %v5925
    %v5981 = vadd.f32 %v5707, %v5925
    %v5982 = vadd.f32 %v5710, %v5925
    %v5983 = vadd.f32 %v5713, %v5925
    %v5984 = vadd.f32 %v5716, %v5925
    %v5985 = vadd.f32 %v5719, %v5925
    %v5986 = vadd.f32 %v5722, %v5925
    %v5987 = vadd.f32 %v5725, %v5925
    %v5988 = vadd.f32 %v5728, %v5925
    %v5989 = vadd.f32 %v5731, %v5925
    %v5990 = vadd.f32 %v5734, %v5925
    %v5991 = vadd.f32 %v5737, %v5925
    %v5992 = vadd.f32 %v5740, %v5925
    %v5993 = vadd.f32 %v5743, %v5925
    %v5994 = vadd.f32 %v5746, %v5925
    %v5995 = vadd.f32 %v5749, %v5925
    %v5996 = vadd.f32 %v5752, %v5925
    %v5997 = vadd.f32 %v5755, %v5925
    %v5998 = vadd.f32 %v5758, %v5925
    %v5999 = vadd.f32 %v5761, %v5925
    %v6000 = vadd.f32 %v5764, %v5925
    %v6001 = vadd.f32 %v5767, %v5925
    %v6002 = vadd.f32 %v5770, %v5925
    %v6003 = vadd.f32 %v5773, %v5925
    %v6004 = vadd.f32 %v5776, %v5925
    %v6005 = vadd.f32 %v5779, %v5925
    %v6006 = vadd.f32 %v5782, %v5925
    %v6007 = vadd.f32 %v5785, %v5925
    %v6008 = vadd.f32 %v5788, %v5925
    %v6009 = vadd.f32 %v5791, %v5925
    %v6010 = vadd.f32 %v5794, %v5925
    %v6011 = vadd.f32 %v5797, %v5925
    %v6012 = vadd.f32 %v5800, %v5925
    %v6013 = vadd.f32 %v5803, %v5925
    %v6014 = vadd.f32 %v5806, %v5925
    %v6015 = vadd.f32 %v5809, %v5925
    %v6016 = vadd.f32 %v5812, %v5925
    %v6017 = vadd.f32 %v5815, %v5925
    %v6018 = vadd.f32 %v5818, %v5925
    %v6019 = vadd.f32 %v5821, %v5925
    %v6020 = vadd.f32 %v5824, %v5925
    %v6021 = vadd.f32 %v5827, %v5925
    %v6022 = vadd.f32 %v5830, %v5925
    %v6023 = vadd.f32 %v5833, %v5925
    %v6024 = vadd.f32 %v5836, %v5925
    %v6025 = vadd.f32 %v5839, %v5925
    %v6026 = vadd.f32 %v5842, %v5925
    %v6027 = vadd.f32 %v5845, %v5925
    %v6028 = vadd.f32 %v5848, %v5925
    %v6029 = vadd.f32 %v5851, %v5925
    %v6030 = vadd.f32 %v5854, %v5925
    %v6031 = vadd.f32 %v5857, %v5925
    %v6032 = vadd.f32 %v5860, %v5925
    %v6033 = vadd.f32 %v5863, %v5925
    %v6034 = vadd.f32 %v5866, %v5925
    %v6035 = vadd.f32 %v5869, %v5925
    %v6036 = vadd.f32 %v5872, %v5925
    %v6037 = vadd.f32 %v5875, %v5925
    %v6038 = vadd.f32 %v5878, %v5925
    %v6039 = vadd.f32 %v5881, %v5925
    %v6040 = vadd.f32 %v5884, %v5925
    %v6041 = vadd.f32 %v5887, %v5925
    %v6042 = vadd.f32 %v5890, %v5925
    %v6043 = vadd.f32 %v5893, %v5925
    %v6044 = vadd.f32 %v5896, %v5925
    %v6045 = vadd.f32 %v5899, %v5925
    %v6046 = vadd.f32 %v5902, %v5925
    %v6047 = vadd.f32 %v5905, %v5925
    %v6048 = vadd.f32 %v5908, %v5925
    %v6049 = vadd.f32 %v5911, %v5925
    %v6050 = vadd.f32 %v5914, %v5925
    %v6051 = vadd.f32 %v5917, %v5925
    %v6052 = vadd.f32 %v5920, %v5925
    %v6053 = vadd.f32 %v5923, %v5925
    %v6070 = vlaneseq
    %v6071 = vand.u32 %v6070, 127
    %v6072 = vlaneseq
    %v6073 = vshrl.u32 %v6072, 7
    %v6074 = vsub.s32 %v6071, %v6073
    %v6075 = vrot.slane %v5926, %v6074
    %v6076 = vadd.s32 %v6071, 4294967288
    %v6077 = vlaneseq
    %v6078 = vshrl.u32 %v6077, 7
    %v6079 = vsub.s32 %v6076, %v6078
    %v6080 = vrot.slane %v5927, %v6079
    %vm6081 = vcmask 130112
    %v6082 = vsel %vm6081, %v6080, %v6075
    %v6083 = vadd.s32 %v6071, 4294967280
    %v6084 = vlaneseq
    %v6085 = vshrl.u32 %v6084, 7
    %v6086 = vsub.s32 %v6083, %v6085
    %v6087 = vrot.slane %v5928, %v6086
    %vm6088 = vcmask 195712
    %v6089 = vsel %vm6088, %v6087, %v6082
    %v6090 = vadd.s32 %v6071, 4294967272
    %v6091 = vlaneseq
    %v6092 = vshrl.u32 %v6091, 7
    %v6093 = vsub.s32 %v6090, %v6092
    %v6094 = vrot.slane %v5929, %v6093
    %vm6095 = vcmask 261312
    %v6096 = vsel %vm6095, %v6094, %v6089
    %v6097 = vadd.s32 %v6071, 4294967264
    %v6098 = vlaneseq
    %v6099 = vshrl.u32 %v6098, 7
    %v6100 = vsub.s32 %v6097, %v6099
    %v6101 = vrot.slane %v5930, %v6100
    %vm6102 = vcmask 326912
    %v6103 = vsel %vm6102, %v6101, %v6096
    %v6104 = vadd.s32 %v6071, 4294967256
    %v6105 = vlaneseq
    %v6106 = vshrl.u32 %v6105, 7
    %v6107 = vsub.s32 %v6104, %v6106
    %v6108 = vrot.slane %v5931, %v6107
    %vm6109 = vcmask 392512
    %v6110 = vsel %vm6109, %v6108, %v6103
    %v6111 = vadd.s32 %v6071, 4294967248
    %v6112 = vlaneseq
    %v6113 = vshrl.u32 %v6112, 7
    %v6114 = vsub.s32 %v6111, %v6113
    %v6115 = vrot.slane %v5932, %v6114
    %vm6116 = vcmask 458112
    %v6117 = vsel %vm6116, %v6115, %v6110
    %v6118 = vadd.s32 %v6071, 4294967240
    %v6119 = vlaneseq
    %v6120 = vshrl.u32 %v6119, 7
    %v6121 = vsub.s32 %v6118, %v6120
    %v6122 = vrot.slane %v5933, %v6121
    %vm6123 = vcmask 523712
    %v6124 = vsel %vm6123, %v6122, %v6117
    %v6125 = vadd.s32 %v6071, 4294967232
    %v6126 = vlaneseq
    %v6127 = vshrl.u32 %v6126, 7
    %v6128 = vsub.s32 %v6125, %v6127
    %v6129 = vrot.slane %v5934, %v6128
    %vm6130 = vcmask 589312
    %v6131 = vsel %vm6130, %v6129, %v6124
    %v6132 = vadd.s32 %v6071, 4294967224
    %v6133 = vlaneseq
    %v6134 = vshrl.u32 %v6133, 7
    %v6135 = vsub.s32 %v6132, %v6134
    %v6136 = vrot.slane %v5935, %v6135
    %vm6137 = vcmask 654912
    %v6138 = vsel %vm6137, %v6136, %v6131
    %v6139 = vadd.s32 %v6071, 4294967216
    %v6140 = vlaneseq
    %v6141 = vshrl.u32 %v6140, 7
    %v6142 = vsub.s32 %v6139, %v6141
    %v6143 = vrot.slane %v5936, %v6142
    %vm6144 = vcmask 720512
    %v6145 = vsel %vm6144, %v6143, %v6138
    %v6146 = vadd.s32 %v6071, 4294967208
    %v6147 = vlaneseq
    %v6148 = vshrl.u32 %v6147, 7
    %v6149 = vsub.s32 %v6146, %v6148
    %v6150 = vrot.slane %v5937, %v6149
    %vm6151 = vcmask 786112
    %v6152 = vsel %vm6151, %v6150, %v6145
    %v6153 = vadd.s32 %v6071, 4294967200
    %v6154 = vlaneseq
    %v6155 = vshrl.u32 %v6154, 7
    %v6156 = vsub.s32 %v6153, %v6155
    %v6157 = vrot.slane %v5938, %v6156
    %vm6158 = vcmask 851712
    %v6159 = vsel %vm6158, %v6157, %v6152
    %v6160 = vadd.s32 %v6071, 4294967192
    %v6161 = vlaneseq
    %v6162 = vshrl.u32 %v6161, 7
    %v6163 = vsub.s32 %v6160, %v6162
    %v6164 = vrot.slane %v5939, %v6163
    %vm6165 = vcmask 917312
    %v6166 = vsel %vm6165, %v6164, %v6159
    %v6167 = vadd.s32 %v6071, 4294967184
    %v6168 = vlaneseq
    %v6169 = vshrl.u32 %v6168, 7
    %v6170 = vsub.s32 %v6167, %v6169
    %v6171 = vrot.slane %v5940, %v6170
    %vm6172 = vcmask 982912
    %v6173 = vsel %vm6172, %v6171, %v6166
    %v6174 = vadd.s32 %v6071, 4294967176
    %v6175 = vlaneseq
    %v6176 = vshrl.u32 %v6175, 7
    %v6177 = vsub.s32 %v6174, %v6176
    %v6178 = vrot.slane %v5941, %v6177
    %vm6179 = vcmask 1048512
    %v6180 = vsel %vm6179, %v6178, %v6173
    %6181 = vst [vmem:[#allocation3] ss:$8 sm:$0x1] %v6180
    %6182 = vst [vmem:[#allocation3] ss:$8 sm:$0x0] %v6180
    %v6199 = vlaneseq
    %v6200 = vshrl.u32 %v6199, 7
    %v6201 = vsub.s32 %v6071, %v6200
    %v6202 = vrot.slane %v5942, %v6201
    %v6203 = vlaneseq
    %v6204 = vshrl.u32 %v6203, 7
    %v6205 = vsub.s32 %v6076, %v6204
    %v6206 = vrot.slane %v5943, %v6205
    %v6207 = vsel %vm6081, %v6206, %v6202
    %v6208 = vlaneseq
    %v6209 = vshrl.u32 %v6208, 7
    %v6210 = vsub.s32 %v6083, %v6209
    %v6211 = vrot.slane %v5944, %v6210
    %v6212 = vsel %vm6088, %v6211, %v6207
    %v6213 = vlaneseq
    %v6214 = vshrl.u32 %v6213, 7
    %v6215 = vsub.s32 %v6090, %v6214
    %v6216 = vrot.slane %v5945, %v6215
    %v6217 = vsel %vm6095, %v6216, %v6212
    %v6218 = vlaneseq
    %v6219 = vshrl.u32 %v6218, 7
    %v6220 = vsub.s32 %v6097, %v6219
    %v6221 = vrot.slane %v5946, %v6220
    %v6222 = vsel %vm6102, %v6221, %v6217
    %v6223 = vlaneseq
    %v6224 = vshrl.u32 %v6223, 7
    %v6225 = vsub.s32 %v6104, %v6224
    %v6226 = vrot.slane %v5947, %v6225
    %v6227 = vsel %vm6109, %v6226, %v6222
    %v6228 = vlaneseq
    %v6229 = vshrl.u32 %v6228, 7
    %v6230 = vsub.s32 %v6111, %v6229
    %v6231 = vrot.slane %v5948, %v6230
    %v6232 = vsel %vm6116, %v6231, %v6227
    %v6233 = vlaneseq
    %v6234 = vshrl.u32 %v6233, 7
    %v6235 = vsub.s32 %v6118, %v6234
    %v6236 = vrot.slane %v5949, %v6235
    %v6237 = vsel %vm6123, %v6236, %v6232
    %v6238 = vlaneseq
    %v6239 = vshrl.u32 %v6238, 7
    %v6240 = vsub.s32 %v6125, %v6239
    %v6241 = vrot.slane %v5950, %v6240
    %v6242 = vsel %vm6130, %v6241, %v6237
    %v6243 = vlaneseq
    %v6244 = vshrl.u32 %v6243, 7
    %v6245 = vsub.s32 %v6132, %v6244
    %v6246 = vrot.slane %v5951, %v6245
    %v6247 = vsel %vm6137, %v6246, %v6242
    %v6248 = vlaneseq
    %v6249 = vshrl.u32 %v6248, 7
    %v6250 = vsub.s32 %v6139, %v6249
    %v6251 = vrot.slane %v5952, %v6250
    %v6252 = vsel %vm6144, %v6251, %v6247
    %v6253 = vlaneseq
    %v6254 = vshrl.u32 %v6253, 7
    %v6255 = vsub.s32 %v6146, %v6254
    %v6256 = vrot.slane %v5953, %v6255
    %v6257 = vsel %vm6151, %v6256, %v6252
    %v6258 = vlaneseq
    %v6259 = vshrl.u32 %v6258, 7
    %v6260 = vsub.s32 %v6153, %v6259
    %v6261 = vrot.slane %v5954, %v6260
    %v6262 = vsel %vm6158, %v6261, %v6257
    %v6263 = vlaneseq
    %v6264 = vshrl.u32 %v6263, 7
    %v6265 = vsub.s32 %v6160, %v6264
    %v6266 = vrot.slane %v5955, %v6265
    %v6267 = vsel %vm6165, %v6266, %v6262
    %v6268 = vlaneseq
    %v6269 = vshrl.u32 %v6268, 7
    %v6270 = vsub.s32 %v6167, %v6269
    %v6271 = vrot.slane %v5956, %v6270
    %v6272 = vsel %vm6172, %v6271, %v6267
    %v6273 = vlaneseq
    %v6274 = vshrl.u32 %v6273, 7
    %v6275 = vsub.s32 %v6174, %v6274
    %v6276 = vrot.slane %v5957, %v6275
    %v6277 = vsel %vm6179, %v6276, %v6272
    %s6278 = scalar_lea.vmem [#allocation3], 1
    %6279 = vst [vmem:[%s6278] ss:$8 sm:$0x1] %v6277
    %6280 = vst [vmem:[%s6278] ss:$8 sm:$0x0] %v6277
    %v6297 = vlaneseq
    %v6298 = vshrl.u32 %v6297, 7
    %v6299 = vsub.s32 %v6071, %v6298
    %v6300 = vrot.slane %v5958, %v6299
    %v6301 = vlaneseq
    %v6302 = vshrl.u32 %v6301, 7
    %v6303 = vsub.s32 %v6076, %v6302
    %v6304 = vrot.slane %v5959, %v6303
    %v6305 = vsel %vm6081, %v6304, %v6300
    %v6306 = vlaneseq
    %v6307 = vshrl.u32 %v6306, 7
    %v6308 = vsub.s32 %v6083, %v6307
    %v6309 = vrot.slane %v5960, %v6308
    %v6310 = vsel %vm6088, %v6309, %v6305
    %v6311 = vlaneseq
    %v6312 = vshrl.u32 %v6311, 7
    %v6313 = vsub.s32 %v6090, %v6312
    %v6314 = vrot.slane %v5961, %v6313
    %v6315 = vsel %vm6095, %v6314, %v6310
    %v6316 = vlaneseq
    %v6317 = vshrl.u32 %v6316, 7
    %v6318 = vsub.s32 %v6097, %v6317
    %v6319 = vrot.slane %v5962, %v6318
    %v6320 = vsel %vm6102, %v6319, %v6315
    %v6321 = vlaneseq
    %v6322 = vshrl.u32 %v6321, 7
    %v6323 = vsub.s32 %v6104, %v6322
    %v6324 = vrot.slane %v5963, %v6323
    %v6325 = vsel %vm6109, %v6324, %v6320
    %v6326 = vlaneseq
    %v6327 = vshrl.u32 %v6326, 7
    %v6328 = vsub.s32 %v6111, %v6327
    %v6329 = vrot.slane %v5964, %v6328
    %v6330 = vsel %vm6116, %v6329, %v6325
    %v6331 = vlaneseq
    %v6332 = vshrl.u32 %v6331, 7
    %v6333 = vsub.s32 %v6118, %v6332
    %v6334 = vrot.slane %v5965, %v6333
    %v6335 = vsel %vm6123, %v6334, %v6330
    %v6336 = vlaneseq
    %v6337 = vshrl.u32 %v6336, 7
    %v6338 = vsub.s32 %v6125, %v6337
    %v6339 = vrot.slane %v5966, %v6338
    %v6340 = vsel %vm6130, %v6339, %v6335
    %v6341 = vlaneseq
    %v6342 = vshrl.u32 %v6341, 7
    %v6343 = vsub.s32 %v6132, %v6342
    %v6344 = vrot.slane %v5967, %v6343
    %v6345 = vsel %vm6137, %v6344, %v6340
    %v6346 = vlaneseq
    %v6347 = vshrl.u32 %v6346, 7
    %v6348 = vsub.s32 %v6139, %v6347
    %v6349 = vrot.slane %v5968, %v6348
    %v6350 = vsel %vm6144, %v6349, %v6345
    %v6351 = vlaneseq
    %v6352 = vshrl.u32 %v6351, 7
    %v6353 = vsub.s32 %v6146, %v6352
    %v6354 = vrot.slane %v5969, %v6353
    %v6355 = vsel %vm6151, %v6354, %v6350
    %v6356 = vlaneseq
    %v6357 = vshrl.u32 %v6356, 7
    %v6358 = vsub.s32 %v6153, %v6357
    %v6359 = vrot.slane %v5970, %v6358
    %v6360 = vsel %vm6158, %v6359, %v6355
    %v6361 = vlaneseq
    %v6362 = vshrl.u32 %v6361, 7
    %v6363 = vsub.s32 %v6160, %v6362
    %v6364 = vrot.slane %v5971, %v6363
    %v6365 = vsel %vm6165, %v6364, %v6360
    %v6366 = vlaneseq
    %v6367 = vshrl.u32 %v6366, 7
    %v6368 = vsub.s32 %v6167, %v6367
    %v6369 = vrot.slane %v5972, %v6368
    %v6370 = vsel %vm6172, %v6369, %v6365
    %v6371 = vlaneseq
    %v6372 = vshrl.u32 %v6371, 7
    %v6373 = vsub.s32 %v6174, %v6372
    %v6374 = vrot.slane %v5973, %v6373
    %v6375 = vsel %vm6179, %v6374, %v6370
    %s6376 = scalar_lea.vmem [#allocation3], 2
    %6377 = vst [vmem:[%s6376] ss:$8 sm:$0x1] %v6375
    %6378 = vst [vmem:[%s6376] ss:$8 sm:$0x0] %v6375
    %v6395 = vlaneseq
    %v6396 = vshrl.u32 %v6395, 7
    %v6397 = vsub.s32 %v6071, %v6396
    %v6398 = vrot.slane %v5974, %v6397
    %v6399 = vlaneseq
    %v6400 = vshrl.u32 %v6399, 7
    %v6401 = vsub.s32 %v6076, %v6400
    %v6402 = vrot.slane %v5975, %v6401
    %v6403 = vsel %vm6081, %v6402, %v6398
    %v6404 = vlaneseq
    %v6405 = vshrl.u32 %v6404, 7
    %v6406 = vsub.s32 %v6083, %v6405
    %v6407 = vrot.slane %v5976, %v6406
    %v6408 = vsel %vm6088, %v6407, %v6403
    %v6409 = vlaneseq
    %v6410 = vshrl.u32 %v6409, 7
    %v6411 = vsub.s32 %v6090, %v6410
    %v6412 = vrot.slane %v5977, %v6411
    %v6413 = vsel %vm6095, %v6412, %v6408
    %v6414 = vlaneseq
    %v6415 = vshrl.u32 %v6414, 7
    %v6416 = vsub.s32 %v6097, %v6415
    %v6417 = vrot.slane %v5978, %v6416
    %v6418 = vsel %vm6102, %v6417, %v6413
    %v6419 = vlaneseq
    %v6420 = vshrl.u32 %v6419, 7
    %v6421 = vsub.s32 %v6104, %v6420
    %v6422 = vrot.slane %v5979, %v6421
    %v6423 = vsel %vm6109, %v6422, %v6418
    %v6424 = vlaneseq
    %v6425 = vshrl.u32 %v6424, 7
    %v6426 = vsub.s32 %v6111, %v6425
    %v6427 = vrot.slane %v5980, %v6426
    %v6428 = vsel %vm6116, %v6427, %v6423
    %v6429 = vlaneseq
    %v6430 = vshrl.u32 %v6429, 7
    %v6431 = vsub.s32 %v6118, %v6430
    %v6432 = vrot.slane %v5981, %v6431
    %v6433 = vsel %vm6123, %v6432, %v6428
    %v6434 = vlaneseq
    %v6435 = vshrl.u32 %v6434, 7
    %v6436 = vsub.s32 %v6125, %v6435
    %v6437 = vrot.slane %v5982, %v6436
    %v6438 = vsel %vm6130, %v6437, %v6433
    %v6439 = vlaneseq
    %v6440 = vshrl.u32 %v6439, 7
    %v6441 = vsub.s32 %v6132, %v6440
    %v6442 = vrot.slane %v5983, %v6441
    %v6443 = vsel %vm6137, %v6442, %v6438
    %v6444 = vlaneseq
    %v6445 = vshrl.u32 %v6444, 7
    %v6446 = vsub.s32 %v6139, %v6445
    %v6447 = vrot.slane %v5984, %v6446
    %v6448 = vsel %vm6144, %v6447, %v6443
    %v6449 = vlaneseq
    %v6450 = vshrl.u32 %v6449, 7
    %v6451 = vsub.s32 %v6146, %v6450
    %v6452 = vrot.slane %v5985, %v6451
    %v6453 = vsel %vm6151, %v6452, %v6448
    %v6454 = vlaneseq
    %v6455 = vshrl.u32 %v6454, 7
    %v6456 = vsub.s32 %v6153, %v6455
    %v6457 = vrot.slane %v5986, %v6456
    %v6458 = vsel %vm6158, %v6457, %v6453
    %v6459 = vlaneseq
    %v6460 = vshrl.u32 %v6459, 7
    %v6461 = vsub.s32 %v6160, %v6460
    %v6462 = vrot.slane %v5987, %v6461
    %v6463 = vsel %vm6165, %v6462, %v6458
    %v6464 = vlaneseq
    %v6465 = vshrl.u32 %v6464, 7
    %v6466 = vsub.s32 %v6167, %v6465
    %v6467 = vrot.slane %v5988, %v6466
    %v6468 = vsel %vm6172, %v6467, %v6463
    %v6469 = vlaneseq
    %v6470 = vshrl.u32 %v6469, 7
    %v6471 = vsub.s32 %v6174, %v6470
    %v6472 = vrot.slane %v5989, %v6471
    %v6473 = vsel %vm6179, %v6472, %v6468
    %s6474 = scalar_lea.vmem [#allocation3], 3
    %6475 = vst [vmem:[%s6474] ss:$8 sm:$0x1] %v6473
    %6476 = vst [vmem:[%s6474] ss:$8 sm:$0x0] %v6473
    %v6493 = vlaneseq
    %v6494 = vshrl.u32 %v6493, 7
    %v6495 = vsub.s32 %v6071, %v6494
    %v6496 = vrot.slane %v5990, %v6495
    %v6497 = vlaneseq
    %v6498 = vshrl.u32 %v6497, 7
    %v6499 = vsub.s32 %v6076, %v6498
    %v6500 = vrot.slane %v5991, %v6499
    %v6501 = vsel %vm6081, %v6500, %v6496
    %v6502 = vlaneseq
    %v6503 = vshrl.u32 %v6502, 7
    %v6504 = vsub.s32 %v6083, %v6503
    %v6505 = vrot.slane %v5992, %v6504
    %v6506 = vsel %vm6088, %v6505, %v6501
    %v6507 = vlaneseq
    %v6508 = vshrl.u32 %v6507, 7
    %v6509 = vsub.s32 %v6090, %v6508
    %v6510 = vrot.slane %v5993, %v6509
    %v6511 = vsel %vm6095, %v6510, %v6506
    %v6512 = vlaneseq
    %v6513 = vshrl.u32 %v6512, 7
    %v6514 = vsub.s32 %v6097, %v6513
    %v6515 = vrot.slane %v5994, %v6514
    %v6516 = vsel %vm6102, %v6515, %v6511
    %v6517 = vlaneseq
    %v6518 = vshrl.u32 %v6517, 7
    %v6519 = vsub.s32 %v6104, %v6518
    %v6520 = vrot.slane %v5995, %v6519
    %v6521 = vsel %vm6109, %v6520, %v6516
    %v6522 = vlaneseq
    %v6523 = vshrl.u32 %v6522, 7
    %v6524 = vsub.s32 %v6111, %v6523
    %v6525 = vrot.slane %v5996, %v6524
    %v6526 = vsel %vm6116, %v6525, %v6521
    %v6527 = vlaneseq
    %v6528 = vshrl.u32 %v6527, 7
    %v6529 = vsub.s32 %v6118, %v6528
    %v6530 = vrot.slane %v5997, %v6529
    %v6531 = vsel %vm6123, %v6530, %v6526
    %v6532 = vlaneseq
    %v6533 = vshrl.u32 %v6532, 7
    %v6534 = vsub.s32 %v6125, %v6533
    %v6535 = vrot.slane %v5998, %v6534
    %v6536 = vsel %vm6130, %v6535, %v6531
    %v6537 = vlaneseq
    %v6538 = vshrl.u32 %v6537, 7
    %v6539 = vsub.s32 %v6132, %v6538
    %v6540 = vrot.slane %v5999, %v6539
    %v6541 = vsel %vm6137, %v6540, %v6536
    %v6542 = vlaneseq
    %v6543 = vshrl.u32 %v6542, 7
    %v6544 = vsub.s32 %v6139, %v6543
    %v6545 = vrot.slane %v6000, %v6544
    %v6546 = vsel %vm6144, %v6545, %v6541
    %v6547 = vlaneseq
    %v6548 = vshrl.u32 %v6547, 7
    %v6549 = vsub.s32 %v6146, %v6548
    %v6550 = vrot.slane %v6001, %v6549
    %v6551 = vsel %vm6151, %v6550, %v6546
    %v6552 = vlaneseq
    %v6553 = vshrl.u32 %v6552, 7
    %v6554 = vsub.s32 %v6153, %v6553
    %v6555 = vrot.slane %v6002, %v6554
    %v6556 = vsel %vm6158, %v6555, %v6551
    %v6557 = vlaneseq
    %v6558 = vshrl.u32 %v6557, 7
    %v6559 = vsub.s32 %v6160, %v6558
    %v6560 = vrot.slane %v6003, %v6559
    %v6561 = vsel %vm6165, %v6560, %v6556
    %v6562 = vlaneseq
    %v6563 = vshrl.u32 %v6562, 7
    %v6564 = vsub.s32 %v6167, %v6563
    %v6565 = vrot.slane %v6004, %v6564
    %v6566 = vsel %vm6172, %v6565, %v6561
    %v6567 = vlaneseq
    %v6568 = vshrl.u32 %v6567, 7
    %v6569 = vsub.s32 %v6174, %v6568
    %v6570 = vrot.slane %v6005, %v6569
    %v6571 = vsel %vm6179, %v6570, %v6566
    %s6572 = scalar_lea.vmem [#allocation3], 4
    %6573 = vst [vmem:[%s6572] ss:$8 sm:$0x1] %v6571
    %6574 = vst [vmem:[%s6572] ss:$8 sm:$0x0] %v6571
    %v6591 = vlaneseq
    %v6592 = vshrl.u32 %v6591, 7
    %v6593 = vsub.s32 %v6071, %v6592
    %v6594 = vrot.slane %v6006, %v6593
    %v6595 = vlaneseq
    %v6596 = vshrl.u32 %v6595, 7
    %v6597 = vsub.s32 %v6076, %v6596
    %v6598 = vrot.slane %v6007, %v6597
    %v6599 = vsel %vm6081, %v6598, %v6594
    %v6600 = vlaneseq
    %v6601 = vshrl.u32 %v6600, 7
    %v6602 = vsub.s32 %v6083, %v6601
    %v6603 = vrot.slane %v6008, %v6602
    %v6604 = vsel %vm6088, %v6603, %v6599
    %v6605 = vlaneseq
    %v6606 = vshrl.u32 %v6605, 7
    %v6607 = vsub.s32 %v6090, %v6606
    %v6608 = vrot.slane %v6009, %v6607
    %v6609 = vsel %vm6095, %v6608, %v6604
    %v6610 = vlaneseq
    %v6611 = vshrl.u32 %v6610, 7
    %v6612 = vsub.s32 %v6097, %v6611
    %v6613 = vrot.slane %v6010, %v6612
    %v6614 = vsel %vm6102, %v6613, %v6609
    %v6615 = vlaneseq
    %v6616 = vshrl.u32 %v6615, 7
    %v6617 = vsub.s32 %v6104, %v6616
    %v6618 = vrot.slane %v6011, %v6617
    %v6619 = vsel %vm6109, %v6618, %v6614
    %v6620 = vlaneseq
    %v6621 = vshrl.u32 %v6620, 7
    %v6622 = vsub.s32 %v6111, %v6621
    %v6623 = vrot.slane %v6012, %v6622
    %v6624 = vsel %vm6116, %v6623, %v6619
    %v6625 = vlaneseq
    %v6626 = vshrl.u32 %v6625, 7
    %v6627 = vsub.s32 %v6118, %v6626
    %v6628 = vrot.slane %v6013, %v6627
    %v6629 = vsel %vm6123, %v6628, %v6624
    %v6630 = vlaneseq
    %v6631 = vshrl.u32 %v6630, 7
    %v6632 = vsub.s32 %v6125, %v6631
    %v6633 = vrot.slane %v6014, %v6632
    %v6634 = vsel %vm6130, %v6633, %v6629
    %v6635 = vlaneseq
    %v6636 = vshrl.u32 %v6635, 7
    %v6637 = vsub.s32 %v6132, %v6636
    %v6638 = vrot.slane %v6015, %v6637
    %v6639 = vsel %vm6137, %v6638, %v6634
    %v6640 = vlaneseq
    %v6641 = vshrl.u32 %v6640, 7
    %v6642 = vsub.s32 %v6139, %v6641
    %v6643 = vrot.slane %v6016, %v6642
    %v6644 = vsel %vm6144, %v6643, %v6639
    %v6645 = vlaneseq
    %v6646 = vshrl.u32 %v6645, 7
    %v6647 = vsub.s32 %v6146, %v6646
    %v6648 = vrot.slane %v6017, %v6647
    %v6649 = vsel %vm6151, %v6648, %v6644
    %v6650 = vlaneseq
    %v6651 = vshrl.u32 %v6650, 7
    %v6652 = vsub.s32 %v6153, %v6651
    %v6653 = vrot.slane %v6018, %v6652
    %v6654 = vsel %vm6158, %v6653, %v6649
    %v6655 = vlaneseq
    %v6656 = vshrl.u32 %v6655, 7
    %v6657 = vsub.s32 %v6160, %v6656
    %v6658 = vrot.slane %v6019, %v6657
    %v6659 = vsel %vm6165, %v6658, %v6654
    %v6660 = vlaneseq
    %v6661 = vshrl.u32 %v6660, 7
    %v6662 = vsub.s32 %v6167, %v6661
    %v6663 = vrot.slane %v6020, %v6662
    %v6664 = vsel %vm6172, %v6663, %v6659
    %v6665 = vlaneseq
    %v6666 = vshrl.u32 %v6665, 7
    %v6667 = vsub.s32 %v6174, %v6666
    %v6668 = vrot.slane %v6021, %v6667
    %v6669 = vsel %vm6179, %v6668, %v6664
    %s6670 = scalar_lea.vmem [#allocation3], 5
    %6671 = vst [vmem:[%s6670] ss:$8 sm:$0x1] %v6669
    %6672 = vst [vmem:[%s6670] ss:$8 sm:$0x0] %v6669
    %v6689 = vlaneseq
    %v6690 = vshrl.u32 %v6689, 7
    %v6691 = vsub.s32 %v6071, %v6690
    %v6692 = vrot.slane %v6022, %v6691
    %v6693 = vlaneseq
    %v6694 = vshrl.u32 %v6693, 7
    %v6695 = vsub.s32 %v6076, %v6694
    %v6696 = vrot.slane %v6023, %v6695
    %v6697 = vsel %vm6081, %v6696, %v6692
    %v6698 = vlaneseq
    %v6699 = vshrl.u32 %v6698, 7
    %v6700 = vsub.s32 %v6083, %v6699
    %v6701 = vrot.slane %v6024, %v6700
    %v6702 = vsel %vm6088, %v6701, %v6697
    %v6703 = vlaneseq
    %v6704 = vshrl.u32 %v6703, 7
    %v6705 = vsub.s32 %v6090, %v6704
    %v6706 = vrot.slane %v6025, %v6705
    %v6707 = vsel %vm6095, %v6706, %v6702
    %v6708 = vlaneseq
    %v6709 = vshrl.u32 %v6708, 7
    %v6710 = vsub.s32 %v6097, %v6709
    %v6711 = vrot.slane %v6026, %v6710
    %v6712 = vsel %vm6102, %v6711, %v6707
    %v6713 = vlaneseq
    %v6714 = vshrl.u32 %v6713, 7
    %v6715 = vsub.s32 %v6104, %v6714
    %v6716 = vrot.slane %v6027, %v6715
    %v6717 = vsel %vm6109, %v6716, %v6712
    %v6718 = vlaneseq
    %v6719 = vshrl.u32 %v6718, 7
    %v6720 = vsub.s32 %v6111, %v6719
    %v6721 = vrot.slane %v6028, %v6720
    %v6722 = vsel %vm6116, %v6721, %v6717
    %v6723 = vlaneseq
    %v6724 = vshrl.u32 %v6723, 7
    %v6725 = vsub.s32 %v6118, %v6724
    %v6726 = vrot.slane %v6029, %v6725
    %v6727 = vsel %vm6123, %v6726, %v6722
    %v6728 = vlaneseq
    %v6729 = vshrl.u32 %v6728, 7
    %v6730 = vsub.s32 %v6125, %v6729
    %v6731 = vrot.slane %v6030, %v6730
    %v6732 = vsel %vm6130, %v6731, %v6727
    %v6733 = vlaneseq
    %v6734 = vshrl.u32 %v6733, 7
    %v6735 = vsub.s32 %v6132, %v6734
    %v6736 = vrot.slane %v6031, %v6735
    %v6737 = vsel %vm6137, %v6736, %v6732
    %v6738 = vlaneseq
    %v6739 = vshrl.u32 %v6738, 7
    %v6740 = vsub.s32 %v6139, %v6739
    %v6741 = vrot.slane %v6032, %v6740
    %v6742 = vsel %vm6144, %v6741, %v6737
    %v6743 = vlaneseq
    %v6744 = vshrl.u32 %v6743, 7
    %v6745 = vsub.s32 %v6146, %v6744
    %v6746 = vrot.slane %v6033, %v6745
    %v6747 = vsel %vm6151, %v6746, %v6742
    %v6748 = vlaneseq
    %v6749 = vshrl.u32 %v6748, 7
    %v6750 = vsub.s32 %v6153, %v6749
    %v6751 = vrot.slane %v6034, %v6750
    %v6752 = vsel %vm6158, %v6751, %v6747
    %v6753 = vlaneseq
    %v6754 = vshrl.u32 %v6753, 7
    %v6755 = vsub.s32 %v6160, %v6754
    %v6756 = vrot.slane %v6035, %v6755
    %v6757 = vsel %vm6165, %v6756, %v6752
    %v6758 = vlaneseq
    %v6759 = vshrl.u32 %v6758, 7
    %v6760 = vsub.s32 %v6167, %v6759
    %v6761 = vrot.slane %v6036, %v6760
    %v6762 = vsel %vm6172, %v6761, %v6757
    %v6763 = vlaneseq
    %v6764 = vshrl.u32 %v6763, 7
    %v6765 = vsub.s32 %v6174, %v6764
    %v6766 = vrot.slane %v6037, %v6765
    %v6767 = vsel %vm6179, %v6766, %v6762
    %s6768 = scalar_lea.vmem [#allocation3], 6
    %6769 = vst [vmem:[%s6768] ss:$8 sm:$0x1] %v6767
    %6770 = vst [vmem:[%s6768] ss:$8 sm:$0x0] %v6767
    %v6787 = vlaneseq
    %v6788 = vshrl.u32 %v6787, 7
    %v6789 = vsub.s32 %v6071, %v6788
    %v6790 = vrot.slane %v6038, %v6789
    %v6791 = vlaneseq
    %v6792 = vshrl.u32 %v6791, 7
    %v6793 = vsub.s32 %v6076, %v6792
    %v6794 = vrot.slane %v6039, %v6793
    %v6795 = vsel %vm6081, %v6794, %v6790
    %v6796 = vlaneseq
    %v6797 = vshrl.u32 %v6796, 7
    %v6798 = vsub.s32 %v6083, %v6797
    %v6799 = vrot.slane %v6040, %v6798
    %v6800 = vsel %vm6088, %v6799, %v6795
    %v6801 = vlaneseq
    %v6802 = vshrl.u32 %v6801, 7
    %v6803 = vsub.s32 %v6090, %v6802
    %v6804 = vrot.slane %v6041, %v6803
    %v6805 = vsel %vm6095, %v6804, %v6800
    %v6806 = vlaneseq
    %v6807 = vshrl.u32 %v6806, 7
    %v6808 = vsub.s32 %v6097, %v6807
    %v6809 = vrot.slane %v6042, %v6808
    %v6810 = vsel %vm6102, %v6809, %v6805
    %v6811 = vlaneseq
    %v6812 = vshrl.u32 %v6811, 7
    %v6813 = vsub.s32 %v6104, %v6812
    %v6814 = vrot.slane %v6043, %v6813
    %v6815 = vsel %vm6109, %v6814, %v6810
    %v6816 = vlaneseq
    %v6817 = vshrl.u32 %v6816, 7
    %v6818 = vsub.s32 %v6111, %v6817
    %v6819 = vrot.slane %v6044, %v6818
    %v6820 = vsel %vm6116, %v6819, %v6815
    %v6821 = vlaneseq
    %v6822 = vshrl.u32 %v6821, 7
    %v6823 = vsub.s32 %v6118, %v6822
    %v6824 = vrot.slane %v6045, %v6823
    %v6825 = vsel %vm6123, %v6824, %v6820
    %v6826 = vlaneseq
    %v6827 = vshrl.u32 %v6826, 7
    %v6828 = vsub.s32 %v6125, %v6827
    %v6829 = vrot.slane %v6046, %v6828
    %v6830 = vsel %vm6130, %v6829, %v6825
    %v6831 = vlaneseq
    %v6832 = vshrl.u32 %v6831, 7
    %v6833 = vsub.s32 %v6132, %v6832
    %v6834 = vrot.slane %v6047, %v6833
    %v6835 = vsel %vm6137, %v6834, %v6830
    %v6836 = vlaneseq
    %v6837 = vshrl.u32 %v6836, 7
    %v6838 = vsub.s32 %v6139, %v6837
    %v6839 = vrot.slane %v6048, %v6838
    %v6840 = vsel %vm6144, %v6839, %v6835
    %v6841 = vlaneseq
    %v6842 = vshrl.u32 %v6841, 7
    %v6843 = vsub.s32 %v6146, %v6842
    %v6844 = vrot.slane %v6049, %v6843
    %v6845 = vsel %vm6151, %v6844, %v6840
    %v6846 = vlaneseq
    %v6847 = vshrl.u32 %v6846, 7
    %v6848 = vsub.s32 %v6153, %v6847
    %v6849 = vrot.slane %v6050, %v6848
    %v6850 = vsel %vm6158, %v6849, %v6845
    %v6851 = vlaneseq
    %v6852 = vshrl.u32 %v6851, 7
    %v6853 = vsub.s32 %v6160, %v6852
    %v6854 = vrot.slane %v6051, %v6853
    %v6855 = vsel %vm6165, %v6854, %v6850
    %v6856 = vlaneseq
    %v6857 = vshrl.u32 %v6856, 7
    %v6858 = vsub.s32 %v6167, %v6857
    %v6859 = vrot.slane %v6052, %v6858
    %v6860 = vsel %vm6172, %v6859, %v6855
    %v6861 = vlaneseq
    %v6862 = vshrl.u32 %v6861, 7
    %v6863 = vsub.s32 %v6174, %v6862
    %v6864 = vrot.slane %v6053, %v6863
    %v6865 = vsel %vm6179, %v6864, %v6860
    %s6866 = scalar_lea.vmem [#allocation3], 7
    %6867 = vst [vmem:[%s6866] ss:$8 sm:$0x1] %v6865
    %6868 = vst [vmem:[%s6866] ss:$8 sm:$0x0] %v6865
    // Predicated region
    $region34: #{tpu_custom_call.1} parent=1 // pred_check
      _
    $region35: #{tpu_custom_call.1} parent=1 // pred_check_branch
      %6870 = sbr.rel (0) target = $region37
    $region36: #{tpu_custom_call.1} parent=1 // pred_region
      %s6872 = ssub.s32 128, 128
      %6873 = vsyncadd [#allocation4], %s6872
      %s6875 = sshll.u32 [#allocation3], 4
      %s6876 = int_to_ptr.vmem [resolvable:$true] %s6875
      %6878 = dma.vmem_to_hbm [thread:$0]  %s6876, 128, %s8, [#allocation4]
    $region37: #{tpu_custom_call.1} parent=1 // pred_fallthru
      _
    // Predicated region
    $region38: #{tpu_custom_call.1} parent=1 // pred_check
      _
    $region39: #{tpu_custom_call.1} parent=1 // pred_check_branch
      %6880 = sbr.rel (0) target = $region41
    $region40: #{tpu_custom_call.1} parent=1 // pred_region
      %6881 = dma.done [#allocation4], 128
    $region41: #{tpu_custom_call.1} parent=1 // pred_fallthru
      _
    %6882 = vsyncpa [#allocation4], 1

</llo_original>
